<compile_context>
chip_gen: v6e
topology: v6e:2x2x1
jax: 0.10.0
libtpu: 0.0.40
codegen_flags: <defaults>
</compile_context>

<pallas_src>
import functools
import math

import jax
import jax.numpy as jnp
from jax.experimental import pallas as pl
from jax.experimental.pallas import tpu as pltpu


# --------------------------------------------------------------------------------------
# helpers
# --------------------------------------------------------------------------------------

def _full_spec(shape):
    nd = len(shape)
    return pl.BlockSpec(shape, lambda *args, _nd=nd: (0,) * _nd)


def _pick_sample_tile(n, cap=64):
    """Largest multiple-of-8 divisor of n that is <= cap (keeps reshapes layout-free)."""
    hi = min(n, cap)
    hi -= hi % 8
    for t in range(hi, 0, -8):
        if n % t == 0:
            return t
    return n


# --------------------------------------------------------------------------------------
# Kernel A: fused tokenizer  (3x3 conv + ReLU  ->  flatten  ->  FC + ReLU)
#   input layout : (H, N, W*C)   rows shot-major, lanes (w, c)
#   conv weights : banded (3, W*C, W*O) so each kh tap is one K=W*C GEMM
#   fc weights   : (H, W*O, F)   so the FC is H aligned-slice GEMMs with K = W*O
# --------------------------------------------------------------------------------------

def _tokenizer_kernel(x_ref, wband_ref, cb_ref, wtok_ref, tb_ref, o_ref, *, H, W, C, O, F):
    WC = W * C
    WO = W * O
    nt = x_ref.shape[1]

    xb = x_ref[...].astype(jnp.bfloat16)                        # (H, nt, W*C)
    zrow = jnp.zeros((1, nt, WC), jnp.bfloat16)
    xpad = jnp.concatenate([zrow, xb, zrow], axis=0)            # (H+2, nt, W*C), vertical pad

    # conv: 3 banded GEMMs (horizontal padding is zeros inside wband), rows = h*nt + n
    acc = jnp.zeros((H * nt, WO), jnp.float32)
    for kh in range(3):
        lhs = xpad[kh:kh + H].reshape(H * nt, WC)               # layout-free merge (nt % 8 == 0)
        acc = acc + jnp.dot(lhs, wband_ref[kh], preferred_element_type=jnp.float32)
    conv = jnp.maximum(acc + cb_ref[...], 0.0)                  # (H*nt, W*O) f32
    convb = conv.astype(jnp.bfloat16)

    # tokenizer FC directly on the VMEM-resident conv activation: H GEMMs with K = W*O
    tok = jnp.zeros((nt, F), jnp.float32)
    for h in range(H):
        tok = tok + jnp.dot(convb[h * nt:(h + 1) * nt, :], wtok_ref[h],
                            preferred_element_type=jnp.float32)
    tok = jnp.maximum(tok + tb_ref[...], 0.0)
    o_ref[...] = tok.astype(o_ref.dtype)


def pallas_tokenizer(x_t, kp, *, H, W, C):
    """x_t: (H, N, W*C) f32 (shot-major rows) -> tokens (N, F) f32."""
    Ht, N, WC = x_t.shape
    assert Ht == H and WC == W * C
    WO = kp['conv_band'].shape[-1]
    O = WO // W
    F = kp['tok_w'].shape[-1]
    nt = _pick_sample_tile(N)
    assert N % nt == 0
    return pl.pallas_call(
        functools.partial(_tokenizer_kernel, H=H, W=W, C=C, O=O, F=F),
        out_shape=jax.ShapeDtypeStruct((N, F), jnp.float32),
        grid=(N // nt,),
        in_specs=[
            pl.BlockSpec((H, nt, WC), lambda i: (0, i, 0)),
            pl.BlockSpec((3, WC, WO), lambda i: (0, 0, 0)),
            pl.BlockSpec((1, WO), lambda i: (0, 0)),
            pl.BlockSpec((H, WO, F), lambda i: (0, 0, 0)),
            pl.BlockSpec((1, F), lambda i: (0, 0)),
        ],
        out_specs=pl.BlockSpec((nt, F), lambda i: (i, 0)),
        compiler_params=pltpu.CompilerParams(
            dimension_semantics=("parallel",),
            vmem_limit_bytes=32 * 1024 * 1024),
    )(x_t, kp['conv_band'], kp['conv_b'], kp['tok_w'], kp['tok_b'])


# --------------------------------------------------------------------------------------
# Kernel B: fused transformer encoder layer (block-diagonal attention) + mean-over-shots
#           + merged hypernetwork heads.   tokens are shot-major: row = shot*classes + class
# --------------------------------------------------------------------------------------

def _encoder_heads_kernel(tok_ref, wqkv_ref, bqkv_ref, wo_ref, bo_ref,
                          g1_ref, be1_ref, w1_ref, b1_ref, w2_ref, b2_ref,
                          g2_ref, be2_ref, wh1_ref, bh1_ref, wh2_ref, bh2_ref,
                          out_ref, *, num_shots, nheads, eps):
    x = tok_ref[...]                                            # (SB, D) f32, shot-major
    SB, D = x.shape
    B = num_shots
    S = SB // B                                                 # classes (= attention seq len)
    dh = D // nheads
    scale = 1.0 / math.sqrt(dh)

    # ---- one QKV GEMM for all tokens ----
    qkv = jnp.dot(x.astype(jnp.bfloat16), wqkv_ref[...],
                  preferred_element_type=jnp.float32) + bqkv_ref[...]
    q, k, v = qkv[:, :D], qkv[:, D:2 * D], qkv[:, 2 * D:]

    # ---- block-diagonal attention: num_shots independent (S x S) attentions, no mask ----
    group_outs = []
    for g in range(B):
        r = slice(g * S, (g + 1) * S)
        qg, kg, vg = q[r], k[r], v[r]
        head_outs = []
        for h in range(nheads):
            c = slice(h * dh, (h + 1) * dh)
            s = jax.lax.dot_general(qg[:, c], kg[:, c], (((1,), (1,)), ((), ())),
                                    preferred_element_type=jnp.float32) * scale
            s = s - jnp.max(s, axis=-1, keepdims=True)
            p = jnp.exp(s)
            p = p / jnp.sum(p, axis=-1, keepdims=True)
            head_outs.append(jnp.dot(p, vg[:, c], preferred_element_type=jnp.float32))
        group_outs.append(jnp.concatenate(head_outs, axis=-1))  # (S, D)
    attn = jnp.concatenate(group_outs, axis=0)                  # (SB, D)

    # ---- single K=D out-projection GEMM, residual, LN1 ----
    proj = jnp.dot(attn.astype(jnp.bfloat16), wo_ref[...],
                   preferred_element_type=jnp.float32) + bo_ref[...]

    def layernorm(t, gamma, beta):
        mu = jnp.mean(t, axis=-1, keepdims=True)
        var = jnp.mean((t - mu) ** 2, axis=-1, keepdims=True)
        return (t - mu) * jax.lax.rsqrt(var + eps) * gamma + beta

    x = layernorm(x + proj, g1_ref[...], be1_ref[...])

    # ---- feed-forward (ReLU), residual, LN2 ----
    h1 = jnp.maximum(jnp.dot(x.astype(jnp.bfloat16), w1_ref[...],
                             preferred_element_type=jnp.float32) + b1_ref[...], 0.0)
    ff = jnp.dot(h1.astype(jnp.bfloat16), w2_ref[...],
                 preferred_element_type=jnp.float32) + b2_ref[...]
    x = layernorm(x + ff, g2_ref[...], be2_ref[...])

    # ---- mean over shots: VPU slice-accumulate over the B contiguous groups ----
    ct = x[0:S, :]
    for g in range(1, B):
        ct = ct + x[g * S:(g + 1) * S, :]
    ct = ct * (1.0 / B)                                         # (S, D), rows = classes

    # ---- merged hypernetwork heads (weight head || bias head), lane-dense padded output ----
    hh = jnp.maximum(jnp.dot(ct.astype(jnp.bfloat16), wh1_ref[...],
                             preferred_element_type=jnp.float32) + bh1_ref[...], 0.0)
    out = jnp.dot(hh.astype(jnp.bfloat16), wh2_ref[...],
                  preferred_element_type=jnp.float32) + bh2_ref[...]
    out_ref[...] = out.astype(out_ref.dtype)


def pallas_encoder_and_heads(tokens, kp, *, num_shots, nheads, eps=1e-5):
    SB, D = tokens.shape
    assert SB % num_shots == 0 and D % nheads == 0
    S = SB // num_shots
    out_pad = kp['head_w2'].shape[-1]
    args = (tokens, kp['wqkv'], kp['bqkv'], kp['wo'], kp['bo'],
            kp['ln1_g'], kp['ln1_b'], kp['ffn_w1'], kp['ffn_b1'],
            kp['ffn_w2'], kp['ffn_b2'], kp['ln2_g'], kp['ln2_b'],
            kp['head_w1'], kp['head_b1'], kp['head_w2'], kp['head_b2'])
    return pl.pallas_call(
        functools.partial(_encoder_heads_kernel, num_shots=num_shots, nheads=nheads, eps=eps),
        out_shape=jax.ShapeDtypeStruct((S, out_pad), jnp.float32),
        grid=(1,),
        in_specs=[_full_spec(a.shape) for a in args],
        out_specs=_full_spec((S, out_pad)),
        compiler_params=pltpu.CompilerParams(
            dimension_semantics=("arbitrary",),
            vmem_limit_bytes=32 * 1024 * 1024),
    )(*args)


# --------------------------------------------------------------------------------------
# One-time parameter preparation (band expansion, flatten-order permutation, head merge, bf16)
# --------------------------------------------------------------------------------------

def prepare_params(p, *, H, W, head_out_dim):
    O, C = p['conv_w'].shape[0], p['conv_w'].shape[1]
    F = p['tok_fc_w'].shape[0]
    Hf = p['wh_fc1_w'].shape[0]
    assert p['bh_fc1_w'].shape[0] == Hf
    out_pad = max(128, ((head_out_dim + 1 + 127) // 128) * 128)
    bias_value = -math.log((1 - 0.01) / 0.01)

    # Banded conv weight: band[kh][w'*C + c, w*O + o] = conv_w[o, c, kh, w'-w+1]
    # (zeros elsewhere implement the horizontal zero padding).
    wtap = jnp.transpose(p['conv_w'], (2, 3, 1, 0))             # (3, 3, C, O)  [kh, kw, c, o]
    band = jnp.zeros((3, W * C, W * O), jnp.float32)
    for kw in range(3):
        for w in range(W):
            wp = w + kw - 1
            if 0 <= wp < W:
                band = band.at[:, wp * C:(wp + 1) * C, w * O:(w + 1) * O].set(wtap[:, kw])
    conv_b_row = jnp.tile(p['conv_b'], W).reshape(1, W * O).astype(jnp.float32)

    # Tokenizer FC: permute columns from torch (o, h, w)-flatten to per-h (w*O + o) blocks
    # and pre-transpose so the kernel does plain (nt, W*O) @ (W*O, F) per h.
    wtok = p['tok_fc_w'].reshape(F, O, H, W).transpose(2, 3, 1, 0).reshape(H, W * O, F)

    # Merged hypernetwork heads: fc1 concatenated, fc2 block-diagonal, padded to 128 lanes;
    # the classification prior (-log(99)) is baked into the bias column.
    wh2 = jnp.zeros((2 * Hf, out_pad), jnp.float32)
    wh2 = wh2.at[:Hf, :head_out_dim].set(p['wh_fc2_w'].T)
    wh2 = wh2.at[Hf:, head_out_dim].set(p['bh_fc2_w'][0])
    bh2 = jnp.zeros((1, out_pad), jnp.float32)
    bh2 = bh2.at[0, :head_out_dim].set(p['wh_fc2_b'])
    bh2 = bh2.at[0, head_out_dim].set(p['bh_fc2_b'][0] + bias_value)

    bf = lambda a: a.astype(jnp.bfloat16)
    row = lambda a: a.reshape(1, -1).astype(jnp.float32)
    return {
        'conv_band': bf(band), 'conv_b': conv_b_row,
        'tok_w': bf(wtok), 'tok_b': row(p['tok_fc_b']),
        'wqkv': bf(p['attn_in_w'].T), 'bqkv': row(p['attn_in_b']),
        'wo': bf(p['attn_out_w'].T), 'bo': row(p['attn_out_b']),
        'ln1_g': row(p['ln1_g']), 'ln1_b': row(p['ln1_b']),
        'ffn_w1': bf(p['ffn_w1'].T), 'ffn_b1': row(p['ffn_b1']),
        'ffn_w2': bf(p['ffn_w2'].T), 'ffn_b2': row(p['ffn_b2']),
        'ln2_g': row(p['ln2_g']), 'ln2_b': row(p['ln2_b']),
        'head_w1': bf(jnp.concatenate([p['wh_fc1_w'].T, p['bh_fc1_w'].T], axis=1)),
        'head_b1': row(jnp.concatenate([p['wh_fc1_b'], p['bh_fc1_b']])),
        'head_w2': bf(wh2), 'head_b2': bh2,
    }


# --------------------------------------------------------------------------------------
# ROIEncoder forward
# --------------------------------------------------------------------------------------

def roi_encoder_forward(box_features, kparams, *, num_shots, nheads, head_out_dim):
    """box_features: (total_shots, C, H, W)  (output of the box_pooler, NCHW, class-major)."""
    total_shots, C, H, W = box_features.shape
    assert total_shots % num_shots == 0
    batch_size = total_shots // num_shots

    # Single wrapper relayout: NCHW class-major -> (H, shot-major rows, W*C).
    # Folding the shot-major permutation here makes the attention block-diagonal & contiguous.
    x5 = box_features.reshape(batch_size, num_shots, C, H, W)
    x_t = jnp.transpose(x5, (3, 1, 0, 4, 2)).reshape(H, total_shots, W * C)

    # Kernel A: conv3x3+ReLU fused with tokenizer FC+ReLU  -> (total_shots, D) tokens
    tokens = pallas_tokenizer(x_t, kparams, H=H, W=W, C=C)

    # Kernel B: transformer encoder layer + mean over shots + merged heads
    out = pallas_encoder_and_heads(tokens, kparams, num_shots=num_shots, nheads=nheads)

    class_weights = out[:, :head_out_dim].reshape(batch_size, head_out_dim, 1, 1)
    class_bias = out[:, head_out_dim]
    return {'cls_conv': class_weights, 'cls_bias': class_bias}


# --------------------------------------------------------------------------------------
# Pure-JAX reference (mirrors the torch module semantics) for a tolerance check
# --------------------------------------------------------------------------------------

def reference_forward(box_features, p, *, num_shots, nheads, head_out_dim, eps=1e-5):
    N, C, H, W = box_features.shape
    batch = N // num_shots
    x = jax.lax.conv_general_dilated(box_features, p['conv_w'], (1, 1), 'SAME',
                                     dimension_numbers=('NCHW', 'OIHW', 'NCHW'))
    x = jax.nn.relu(x + p['conv_b'][None, :, None, None])
    flat = x.reshape(N, -1)                                      # torch flatten (C, H, W)
    tok = jax.nn.relu(flat @ p['tok_fc_w'].T + p['tok_fc_b'])    # (N, D)
    D = tok.shape[-1]
    t = tok.reshape(batch, num_shots, D)                         # (seq=classes, batch=shots, D)
    q = t @ p['attn_in_w'][:D].T + p['attn_in_b'][:D]
    k = t @ p['attn_in_w'][D:2 * D].T + p['attn_in_b'][D:2 * D]
    v = t @ p['attn_in_w'][2 * D:].T + p['attn_in_b'][2 * D:]
    dh = D // nheads
    split = lambda a: a.reshape(batch, num_shots, nheads, dh)
    qh, kh, vh = split(q), split(k), split(v)
    scores = jnp.einsum('qbhd,kbhd->bhqk', qh, kh) / math.sqrt(dh)
    attnp = jax.nn.softmax(scores, axis=-1)
    oh = jnp.einsum('bhqk,kbhd->qbhd', attnp, vh).reshape(batch, num_shots, D)
    attn_out = oh @ p['attn_out_w'].T + p['attn_out_b']

    def layernorm(a, g, b):
        mu = a.mean(-1, keepdims=True)
        var = ((a - mu) ** 2).mean(-1, keepdims=True)
        return (a - mu) / jnp.sqrt(var + eps) * g + b

    t = layernorm(t + attn_out, p['ln1_g'], p['ln1_b'])
    ffh = jax.nn.relu(t @ p['ffn_w1'].T + p['ffn_b1'])
    ff = ffh @ p['ffn_w2'].T + p['ffn_b2']
    t = layernorm(t + ff, p['ln2_g'], p['ln2_b'])
    ct = t.mean(axis=1)                                          # (batch, D)
    wh = jax.nn.relu(ct @ p['wh_fc1_w'].T + p['wh_fc1_b']) @ p['wh_fc2_w'].T + p['wh_fc2_b']
    bh = jax.nn.relu(ct @ p['bh_fc1_w'].T + p['bh_fc1_b']) @ p['bh_fc2_w'].T + p['bh_fc2_b']
    bias_value = -math.log((1 - 0.01) / 0.01)
    return {'cls_conv': wh.reshape(batch, head_out_dim, 1, 1),
            'cls_bias': (bias_value + bh).reshape(-1)}


# --------------------------------------------------------------------------------------
# Deterministic parameter construction (synthetic; shapes follow the module's __init__)
# --------------------------------------------------------------------------------------

def init_params(key, *, C, H, W, conv_dim, fc_dim, head_fc_dim, head_out_dim):
    ks = jax.random.split(key, 20)

    def w(k, shape, scale=0.05):
        return scale * jax.random.normal(k, shape, dtype=jnp.float32)

    return {
        'conv_w': w(ks[0], (conv_dim, C, 3, 3)),
        'conv_b': w(ks[1], (conv_dim,)),
        'tok_fc_w': w(ks[2], (fc_dim, conv_dim * H * W)),
        'tok_fc_b': w(ks[3], (fc_dim,)),
        'attn_in_w': w(ks[4], (3 * fc_dim, fc_dim)),
        'attn_in_b': w(ks[5], (3 * fc_dim,)),
        'attn_out_w': w(ks[6], (fc_dim, fc_dim)),
        'attn_out_b': w(ks[7], (fc_dim,)),
        'ln1_g': jnp.ones((fc_dim,), jnp.float32),
        'ln1_b': jnp.zeros((fc_dim,), jnp.float32),
        'ffn_w1': w(ks[8], (4 * fc_dim, fc_dim)),
        'ffn_b1': w(ks[9], (4 * fc_dim,)),
        'ffn_w2': w(ks[10], (fc_dim, 4 * fc_dim)),
        'ffn_b2': w(ks[11], (fc_dim,)),
        'ln2_g': jnp.ones((fc_dim,), jnp.float32),
        'ln2_b': jnp.zeros((fc_dim,), jnp.float32),
        'wh_fc1_w': w(ks[12], (head_fc_dim, fc_dim)),
        'wh_fc1_b': w(ks[13], (head_fc_dim,)),
        'wh_fc2_w': w(ks[14], (head_out_dim, head_fc_dim)),
        'wh_fc2_b': w(ks[15], (head_out_dim,)),
        'bh_fc1_w': w(ks[16], (head_fc_dim, fc_dim)),
        'bh_fc1_b': w(ks[17], (head_fc_dim,)),
        'bh_fc2_w': w(ks[18], (1, head_fc_dim)),
        'bh_fc2_b': w(ks[19], (1,)),
    }


# --------------------------------------------------------------------------------------
# Main
# --------------------------------------------------------------------------------------

if __name__ == "__main__":
    batch_size = 2        # number of classes / support sets
    num_shots = 4         # shots per class
    C = 4                 # feature channels into the tokenizer
    H = W = 8             # POOLER_RESOLUTION
    conv_dim = 8          # TOKENIZER.CONV_DIM (NUM_CONV = 1)
    fc_dim = 32           # TOKENIZER.FC_DIM   (NUM_FC = 1) == transformer d_model
    nheads = 4            # TRANSFORMER_ENCODER.HEADS (LAYERS = 1, DROPOUT = 0)
    head_fc_dim = 32      # HEAD.FC_DIM  (HEAD.NUM_FC = 2)
    head_out_dim = 16     # HEAD.OUTPUT_DIM

    total_shots = batch_size * num_shots

    key = jax.random.PRNGKey(0)
    k_params, k_x = jax.random.split(key)
    params = init_params(k_params, C=C, H=H, W=W, conv_dim=conv_dim, fc_dim=fc_dim,
                         head_fc_dim=head_fc_dim, head_out_dim=head_out_dim)
    kparams = prepare_params(params, H=H, W=W, head_out_dim=head_out_dim)

    # box_features: what box_pooler would have produced (NCHW, class-major rows)
    box_features = jax.random.normal(k_x, (total_shots, C, H, W), dtype=jnp.float32)

    fwd = jax.jit(functools.partial(roi_encoder_forward, num_shots=num_shots,
                                    nheads=nheads, head_out_dim=head_out_dim))
    outputs = jax.block_until_ready(fwd(box_features, kparams))

    assert outputs['cls_conv'].shape == (batch_size, head_out_dim, 1, 1), outputs['cls_conv'].shape
    assert outputs['cls_bias'].shape == (batch_size,), outputs['cls_bias'].shape
    assert jnp.all(jnp.isfinite(outputs['cls_conv']))
    assert jnp.all(jnp.isfinite(outputs['cls_bias']))

    ref = reference_forward(box_features, params, num_shots=num_shots, nheads=nheads,
                            head_out_dim=head_out_dim)
    assert bool(jnp.allclose(outputs['cls_conv'], ref['cls_conv'], rtol=2e-2, atol=2e-2)), \
        float(jnp.max(jnp.abs(outputs['cls_conv'] - ref['cls_conv'])))
    assert bool(jnp.allclose(outputs['cls_bias'], ref['cls_bias'], rtol=2e-2, atol=2e-2)), \
        float(jnp.max(jnp.abs(outputs['cls_bias'] - ref['cls_bias'])))

    print("KERNEL_OK")
</pallas_src>

<mosaic_0001>
module attributes {stable_mosaic.version = 11 : i64} {
  func.func @_tokenizer_kernel(%arg0: i32, %arg1: memref<8x8x32xf32, #tpu.memory_space<vmem>>, %arg2: memref<3x32x64xbf16, #tpu.memory_space<vmem>>, %arg3: memref<1x64xf32, #tpu.memory_space<vmem>>, %arg4: memref<8x64x32xbf16, #tpu.memory_space<vmem>>, %arg5: memref<1x32xf32, #tpu.memory_space<vmem>>, %arg6: memref<8x32xf32, #tpu.memory_space<vmem>>) attributes {dimension_semantics = [#tpu.dimension_semantics<parallel>], iteration_bounds = array<i64: 1>, scalar_prefetch = 0 : i64, scratch_operands = 0 : i64, tpu.core_type = #tpu.core_type<tc>, window_params = [{transform_indices = @transform_0, window_bounds = array<i64: 8, 8, 32>}, {pipeline_mode = #tpu.pipeline_mode<synchronous>, transform_indices = @transform_1, window_bounds = array<i64: 3, 32, 64>}, {pipeline_mode = #tpu.pipeline_mode<synchronous>, transform_indices = @transform_2, window_bounds = array<i64: 1, 64>}, {pipeline_mode = #tpu.pipeline_mode<synchronous>, transform_indices = @transform_3, window_bounds = array<i64: 8, 64, 32>}, {pipeline_mode = #tpu.pipeline_mode<synchronous>, transform_indices = @transform_4, window_bounds = array<i64: 1, 32>}, {transform_indices = @transform_5, window_bounds = array<i64: 8, 32>}]} {
    %c0 = arith.constant 0 : index
    %c0_0 = arith.constant 0 : index
    %c0_1 = arith.constant 0 : index
    %0 = vector.load %arg1[%c0, %c0_0, %c0_1] : memref<8x8x32xf32, #tpu.memory_space<vmem>>, vector<8x8x32xf32>
    %1 = arith.truncf %0 : vector<8x8x32xf32> to vector<8x8x32xbf16>
    %cst = arith.constant 0.000000e+00 : bf16
    %2 = vector.broadcast %cst : bf16 to vector<1x8x32xbf16>
    %3 = tpu.concatenate %2, %1, %2 in 0 : vector<1x8x32xbf16>, vector<8x8x32xbf16>, vector<1x8x32xbf16> -> vector<10x8x32xbf16>
    %cst_2 = arith.constant 0.000000e+00 : f32
    %4 = vector.broadcast %cst_2 : f32 to vector<64x64xf32>
    %5 = vector.extract_strided_slice %3 {offsets = [0, 0, 0], sizes = [8, 8, 32], strides = [1, 1, 1]} : vector<10x8x32xbf16> to vector<8x8x32xbf16>
    %6 = vector.shape_cast %5 : vector<8x8x32xbf16> to vector<64x32xbf16>
    %c0_3 = arith.constant 0 : index
    %c0_4 = arith.constant 0 : index
    %c0_5 = arith.constant 0 : index
    %7 = vector.load %arg2[%c0_3, %c0_4, %c0_5] : memref<3x32x64xbf16, #tpu.memory_space<vmem>>, vector<1x32x64xbf16>
    %8 = vector.shape_cast %7 : vector<1x32x64xbf16> to vector<32x64xbf16>
    %cst_6 = arith.constant dense<0.000000e+00> : vector<64x64xf32>
    %9 = tpu.matmul %6, %8, %cst_6 {dimension_numbers = #tpu.dot_dimension_numbers<[1], [0], [0], [1], [0, 0, 1, 1], [], []>} : vector<64x32xbf16>, vector<32x64xbf16>, vector<64x64xf32> -> vector<64x64xf32>
    %10 = arith.addf %4, %9 : vector<64x64xf32>
    %11 = vector.extract_strided_slice %3 {offsets = [1, 0, 0], sizes = [8, 8, 32], strides = [1, 1, 1]} : vector<10x8x32xbf16> to vector<8x8x32xbf16>
    %12 = vector.shape_cast %11 : vector<8x8x32xbf16> to vector<64x32xbf16>
    %c1 = arith.constant 1 : index
    %c0_7 = arith.constant 0 : index
    %c0_8 = arith.constant 0 : index
    %13 = vector.load %arg2[%c1, %c0_7, %c0_8] : memref<3x32x64xbf16, #tpu.memory_space<vmem>>, vector<1x32x64xbf16>
    %14 = vector.shape_cast %13 : vector<1x32x64xbf16> to vector<32x64xbf16>
    %cst_9 = arith.constant dense<0.000000e+00> : vector<64x64xf32>
    %15 = tpu.matmul %12, %14, %cst_9 {dimension_numbers = #tpu.dot_dimension_numbers<[1], [0], [0], [1], [0, 0, 1, 1], [], []>} : vector<64x32xbf16>, vector<32x64xbf16>, vector<64x64xf32> -> vector<64x64xf32>
    %16 = arith.addf %10, %15 : vector<64x64xf32>
    %17 = vector.extract_strided_slice %3 {offsets = [2, 0, 0], sizes = [8, 8, 32], strides = [1, 1, 1]} : vector<10x8x32xbf16> to vector<8x8x32xbf16>
    %18 = vector.shape_cast %17 : vector<8x8x32xbf16> to vector<64x32xbf16>
    %c2 = arith.constant 2 : index
    %c0_10 = arith.constant 0 : index
    %c0_11 = arith.constant 0 : index
    %19 = vector.load %arg2[%c2, %c0_10, %c0_11] : memref<3x32x64xbf16, #tpu.memory_space<vmem>>, vector<1x32x64xbf16>
    %20 = vector.shape_cast %19 : vector<1x32x64xbf16> to vector<32x64xbf16>
    %cst_12 = arith.constant dense<0.000000e+00> : vector<64x64xf32>
    %21 = tpu.matmul %18, %20, %cst_12 {dimension_numbers = #tpu.dot_dimension_numbers<[1], [0], [0], [1], [0, 0, 1, 1], [], []>} : vector<64x32xbf16>, vector<32x64xbf16>, vector<64x64xf32> -> vector<64x64xf32>
    %22 = arith.addf %16, %21 : vector<64x64xf32>
    %c0_13 = arith.constant 0 : index
    %c0_14 = arith.constant 0 : index
    %23 = vector.load %arg3[%c0_13, %c0_14] : memref<1x64xf32, #tpu.memory_space<vmem>>, vector<1x64xf32>
    %24 = vector.broadcast %23 : vector<1x64xf32> to vector<64x64xf32>
    %25 = arith.addf %22, %24 : vector<64x64xf32>
    %cst_15 = arith.constant 0.000000e+00 : f32
    %26 = vector.broadcast %cst_15 : f32 to vector<64x64xf32>
    %27 = arith.maximumf %25, %26 : vector<64x64xf32>
    %28 = arith.truncf %27 : vector<64x64xf32> to vector<64x64xbf16>
    %cst_16 = arith.constant 0.000000e+00 : f32
    %29 = vector.broadcast %cst_16 : f32 to vector<8x32xf32>
    %30 = vector.extract_strided_slice %28 {offsets = [0, 0], sizes = [8, 64], strides = [1, 1]} : vector<64x64xbf16> to vector<8x64xbf16>
    %c0_17 = arith.constant 0 : index
    %c0_18 = arith.constant 0 : index
    %c0_19 = arith.constant 0 : index
    %31 = vector.load %arg4[%c0_17, %c0_18, %c0_19] : memref<8x64x32xbf16, #tpu.memory_space<vmem>>, vector<1x64x32xbf16>
    %32 = vector.shape_cast %31 : vector<1x64x32xbf16> to vector<64x32xbf16>
    %cst_20 = arith.constant dense<0.000000e+00> : vector<8x32xf32>
    %33 = tpu.matmul %30, %32, %cst_20 {dimension_numbers = #tpu.dot_dimension_numbers<[1], [0], [0], [1], [0, 0, 1, 1], [], []>} : vector<8x64xbf16>, vector<64x32xbf16>, vector<8x32xf32> -> vector<8x32xf32>
    %34 = arith.addf %29, %33 : vector<8x32xf32>
    %35 = vector.extract_strided_slice %28 {offsets = [8, 0], sizes = [8, 64], strides = [1, 1]} : vector<64x64xbf16> to vector<8x64xbf16>
    %c1_21 = arith.constant 1 : index
    %c0_22 = arith.constant 0 : index
    %c0_23 = arith.constant 0 : index
    %36 = vector.load %arg4[%c1_21, %c0_22, %c0_23] : memref<8x64x32xbf16, #tpu.memory_space<vmem>>, vector<1x64x32xbf16>
    %37 = vector.shape_cast %36 : vector<1x64x32xbf16> to vector<64x32xbf16>
    %cst_24 = arith.constant dense<0.000000e+00> : vector<8x32xf32>
    %38 = tpu.matmul %35, %37, %cst_24 {dimension_numbers = #tpu.dot_dimension_numbers<[1], [0], [0], [1], [0, 0, 1, 1], [], []>} : vector<8x64xbf16>, vector<64x32xbf16>, vector<8x32xf32> -> vector<8x32xf32>
    %39 = arith.addf %34, %38 : vector<8x32xf32>
    %40 = vector.extract_strided_slice %28 {offsets = [16, 0], sizes = [8, 64], strides = [1, 1]} : vector<64x64xbf16> to vector<8x64xbf16>
    %c2_25 = arith.constant 2 : index
    %c0_26 = arith.constant 0 : index
    %c0_27 = arith.constant 0 : index
    %41 = vector.load %arg4[%c2_25, %c0_26, %c0_27] : memref<8x64x32xbf16, #tpu.memory_space<vmem>>, vector<1x64x32xbf16>
    %42 = vector.shape_cast %41 : vector<1x64x32xbf16> to vector<64x32xbf16>
    %cst_28 = arith.constant dense<0.000000e+00> : vector<8x32xf32>
    %43 = tpu.matmul %40, %42, %cst_28 {dimension_numbers = #tpu.dot_dimension_numbers<[1], [0], [0], [1], [0, 0, 1, 1], [], []>} : vector<8x64xbf16>, vector<64x32xbf16>, vector<8x32xf32> -> vector<8x32xf32>
    %44 = arith.addf %39, %43 : vector<8x32xf32>
    %45 = vector.extract_strided_slice %28 {offsets = [24, 0], sizes = [8, 64], strides = [1, 1]} : vector<64x64xbf16> to vector<8x64xbf16>
    %c3 = arith.constant 3 : index
    %c0_29 = arith.constant 0 : index
    %c0_30 = arith.constant 0 : index
    %46 = vector.load %arg4[%c3, %c0_29, %c0_30] : memref<8x64x32xbf16, #tpu.memory_space<vmem>>, vector<1x64x32xbf16>
    %47 = vector.shape_cast %46 : vector<1x64x32xbf16> to vector<64x32xbf16>
    %cst_31 = arith.constant dense<0.000000e+00> : vector<8x32xf32>
    %48 = tpu.matmul %45, %47, %cst_31 {dimension_numbers = #tpu.dot_dimension_numbers<[1], [0], [0], [1], [0, 0, 1, 1], [], []>} : vector<8x64xbf16>, vector<64x32xbf16>, vector<8x32xf32> -> vector<8x32xf32>
    %49 = arith.addf %44, %48 : vector<8x32xf32>
    %50 = vector.extract_strided_slice %28 {offsets = [32, 0], sizes = [8, 64], strides = [1, 1]} : vector<64x64xbf16> to vector<8x64xbf16>
    %c4 = arith.constant 4 : index
    %c0_32 = arith.constant 0 : index
    %c0_33 = arith.constant 0 : index
    %51 = vector.load %arg4[%c4, %c0_32, %c0_33] : memref<8x64x32xbf16, #tpu.memory_space<vmem>>, vector<1x64x32xbf16>
    %52 = vector.shape_cast %51 : vector<1x64x32xbf16> to vector<64x32xbf16>
    %cst_34 = arith.constant dense<0.000000e+00> : vector<8x32xf32>
    %53 = tpu.matmul %50, %52, %cst_34 {dimension_numbers = #tpu.dot_dimension_numbers<[1], [0], [0], [1], [0, 0, 1, 1], [], []>} : vector<8x64xbf16>, vector<64x32xbf16>, vector<8x32xf32> -> vector<8x32xf32>
    %54 = arith.addf %49, %53 : vector<8x32xf32>
    %55 = vector.extract_strided_slice %28 {offsets = [40, 0], sizes = [8, 64], strides = [1, 1]} : vector<64x64xbf16> to vector<8x64xbf16>
    %c5 = arith.constant 5 : index
    %c0_35 = arith.constant 0 : index
    %c0_36 = arith.constant 0 : index
    %56 = vector.load %arg4[%c5, %c0_35, %c0_36] : memref<8x64x32xbf16, #tpu.memory_space<vmem>>, vector<1x64x32xbf16>
    %57 = vector.shape_cast %56 : vector<1x64x32xbf16> to vector<64x32xbf16>
    %cst_37 = arith.constant dense<0.000000e+00> : vector<8x32xf32>
    %58 = tpu.matmul %55, %57, %cst_37 {dimension_numbers = #tpu.dot_dimension_numbers<[1], [0], [0], [1], [0, 0, 1, 1], [], []>} : vector<8x64xbf16>, vector<64x32xbf16>, vector<8x32xf32> -> vector<8x32xf32>
    %59 = arith.addf %54, %58 : vector<8x32xf32>
    %60 = vector.extract_strided_slice %28 {offsets = [48, 0], sizes = [8, 64], strides = [1, 1]} : vector<64x64xbf16> to vector<8x64xbf16>
    %c6 = arith.constant 6 : index
    %c0_38 = arith.constant 0 : index
    %c0_39 = arith.constant 0 : index
    %61 = vector.load %arg4[%c6, %c0_38, %c0_39] : memref<8x64x32xbf16, #tpu.memory_space<vmem>>, vector<1x64x32xbf16>
    %62 = vector.shape_cast %61 : vector<1x64x32xbf16> to vector<64x32xbf16>
    %cst_40 = arith.constant dense<0.000000e+00> : vector<8x32xf32>
    %63 = tpu.matmul %60, %62, %cst_40 {dimension_numbers = #tpu.dot_dimension_numbers<[1], [0], [0], [1], [0, 0, 1, 1], [], []>} : vector<8x64xbf16>, vector<64x32xbf16>, vector<8x32xf32> -> vector<8x32xf32>
    %64 = arith.addf %59, %63 : vector<8x32xf32>
    %65 = vector.extract_strided_slice %28 {offsets = [56, 0], sizes = [8, 64], strides = [1, 1]} : vector<64x64xbf16> to vector<8x64xbf16>
    %c7 = arith.constant 7 : index
    %c0_41 = arith.constant 0 : index
    %c0_42 = arith.constant 0 : index
    %66 = vector.load %arg4[%c7, %c0_41, %c0_42] : memref<8x64x32xbf16, #tpu.memory_space<vmem>>, vector<1x64x32xbf16>
    %67 = vector.shape_cast %66 : vector<1x64x32xbf16> to vector<64x32xbf16>
    %cst_43 = arith.constant dense<0.000000e+00> : vector<8x32xf32>
    %68 = tpu.matmul %65, %67, %cst_43 {dimension_numbers = #tpu.dot_dimension_numbers<[1], [0], [0], [1], [0, 0, 1, 1], [], []>} : vector<8x64xbf16>, vector<64x32xbf16>, vector<8x32xf32> -> vector<8x32xf32>
    %69 = arith.addf %64, %68 : vector<8x32xf32>
    %c0_44 = arith.constant 0 : index
    %c0_45 = arith.constant 0 : index
    %70 = vector.load %arg5[%c0_44, %c0_45] : memref<1x32xf32, #tpu.memory_space<vmem>>, vector<1x32xf32>
    %71 = vector.broadcast %70 : vector<1x32xf32> to vector<8x32xf32>
    %72 = arith.addf %69, %71 : vector<8x32xf32>
    %cst_46 = arith.constant 0.000000e+00 : f32
    %73 = vector.broadcast %cst_46 : f32 to vector<8x32xf32>
    %74 = arith.maximumf %72, %73 : vector<8x32xf32>
    %c0_47 = arith.constant 0 : index
    %c0_48 = arith.constant 0 : index
    %75 = vector.load %arg6[%c0_47, %c0_48] : memref<8x32xf32, #tpu.memory_space<vmem>>, vector<8x32xf32>
    tpu.vector_store %arg6[%c0_47, %c0_48], %74 {strides = array<i32>} : memref<8x32xf32, #tpu.memory_space<vmem>>, vector<8x32xf32>,
    return
  }
  func.func @transform_0(%arg0: i32) -> (i32, i32, i32) {
    %c0_i32 = arith.constant 0 : i32
    %c0_i32_0 = arith.constant 0 : i32
    %c0_i32_1 = arith.constant 0 : i32
    return %c0_i32, %arg0, %c0_i32_0 : i32, i32, i32
  }
  func.func @transform_1(%arg0: i32) -> (i32, i32, i32) {
    %c0_i32 = arith.constant 0 : i32
    %c0_i32_0 = arith.constant 0 : i32
    %c0_i32_1 = arith.constant 0 : i32
    %c0_i32_2 = arith.constant 0 : i32
    return %c0_i32, %c0_i32_0, %c0_i32_1 : i32, i32, i32
  }
  func.func @transform_2(%arg0: i32) -> (i32, i32) {
    %c0_i32 = arith.constant 0 : i32
    %c0_i32_0 = arith.constant 0 : i32
    %c0_i32_1 = arith.constant 0 : i32
    return %c0_i32, %c0_i32_0 : i32, i32
  }
  func.func @transform_3(%arg0: i32) -> (i32, i32, i32) {
    %c0_i32 = arith.constant 0 : i32
    %c0_i32_0 = arith.constant 0 : i32
    %c0_i32_1 = arith.constant 0 : i32
    %c0_i32_2 = arith.constant 0 : i32
    return %c0_i32, %c0_i32_0, %c0_i32_1 : i32, i32, i32
  }
  func.func @transform_4(%arg0: i32) -> (i32, i32) {
    %c0_i32 = arith.constant 0 : i32
    %c0_i32_0 = arith.constant 0 : i32
    %c0_i32_1 = arith.constant 0 : i32
    return %c0_i32, %c0_i32_0 : i32, i32
  }
  func.func @transform_5(%arg0: i32) -> (i32, i32) {
    %c0_i32 = arith.constant 0 : i32
    %c0_i32_0 = arith.constant 0 : i32
    return %arg0, %c0_i32 : i32, i32
  }
}

module attributes {stable_mosaic.version = 11 : i64} {
  func.func @_encoder_heads_kernel(%arg0: i32, %arg1: memref<8x32xf32, #tpu.memory_space<vmem>>, %arg2: memref<32x96xbf16, #tpu.memory_space<vmem>>, %arg3: memref<1x96xf32, #tpu.memory_space<vmem>>, %arg4: memref<32x32xbf16, #tpu.memory_space<vmem>>, %arg5: memref<1x32xf32, #tpu.memory_space<vmem>>, %arg6: memref<1x32xf32, #tpu.memory_space<vmem>>, %arg7: memref<1x32xf32, #tpu.memory_space<vmem>>, %arg8: memref<32x128xbf16, #tpu.memory_space<vmem>>, %arg9: memref<1x128xf32, #tpu.memory_space<vmem>>, %arg10: memref<128x32xbf16, #tpu.memory_space<vmem>>, %arg11: memref<1x32xf32, #tpu.memory_space<vmem>>, %arg12: memref<1x32xf32, #tpu.memory_space<vmem>>, %arg13: memref<1x32xf32, #tpu.memory_space<vmem>>, %arg14: memref<32x64xbf16, #tpu.memory_space<vmem>>, %arg15: memref<1x64xf32, #tpu.memory_space<vmem>>, %arg16: memref<64x128xbf16, #tpu.memory_space<vmem>>, %arg17: memref<1x128xf32, #tpu.memory_space<vmem>>, %arg18: memref<2x128xf32, #tpu.memory_space<vmem>>) attributes {dimension_semantics = [#tpu.dimension_semantics<arbitrary>], iteration_bounds = array<i64: 1>, scalar_prefetch = 0 : i64, scratch_operands = 0 : i64, tpu.core_type = #tpu.core_type<tc>, window_params = [{pipeline_mode = #tpu.pipeline_mode<synchronous>, transform_indices = @transform_0, window_bounds = array<i64: 8, 32>}, {pipeline_mode = #tpu.pipeline_mode<synchronous>, transform_indices = @transform_1, window_bounds = array<i64: 32, 96>}, {pipeline_mode = #tpu.pipeline_mode<synchronous>, transform_indices = @transform_2, window_bounds = array<i64: 1, 96>}, {pipeline_mode = #tpu.pipeline_mode<synchronous>, transform_indices = @transform_3, window_bounds = array<i64: 32, 32>}, {pipeline_mode = #tpu.pipeline_mode<synchronous>, transform_indices = @transform_4, window_bounds = array<i64: 1, 32>}, {pipeline_mode = #tpu.pipeline_mode<synchronous>, transform_indices = @transform_5, window_bounds = array<i64: 1, 32>}, {pipeline_mode = #tpu.pipeline_mode<synchronous>, transform_indices = @transform_6, window_bounds = array<i64: 1, 32>}, {pipeline_mode = #tpu.pipeline_mode<synchronous>, transform_indices = @transform_7, window_bounds = array<i64: 32, 128>}, {pipeline_mode = #tpu.pipeline_mode<synchronous>, transform_indices = @transform_8, window_bounds = array<i64: 1, 128>}, {pipeline_mode = #tpu.pipeline_mode<synchronous>, transform_indices = @transform_9, window_bounds = array<i64: 128, 32>}, {pipeline_mode = #tpu.pipeline_mode<synchronous>, transform_indices = @transform_10, window_bounds = array<i64: 1, 32>}, {pipeline_mode = #tpu.pipeline_mode<synchronous>, transform_indices = @transform_11, window_bounds = array<i64: 1, 32>}, {pipeline_mode = #tpu.pipeline_mode<synchronous>, transform_indices = @transform_12, window_bounds = array<i64: 1, 32>}, {pipeline_mode = #tpu.pipeline_mode<synchronous>, transform_indices = @transform_13, window_bounds = array<i64: 32, 64>}, {pipeline_mode = #tpu.pipeline_mode<synchronous>, transform_indices = @transform_14, window_bounds = array<i64: 1, 64>}, {pipeline_mode = #tpu.pipeline_mode<synchronous>, transform_indices = @transform_15, window_bounds = array<i64: 64, 128>}, {pipeline_mode = #tpu.pipeline_mode<synchronous>, transform_indices = @transform_16, window_bounds = array<i64: 1, 128>}, {pipeline_mode = #tpu.pipeline_mode<synchronous>, transform_indices = @transform_17, window_bounds = array<i64: 2, 128>}]} {
    %c0 = arith.constant 0 : index
    %c0_0 = arith.constant 0 : index
    %0 = vector.load %arg1[%c0, %c0_0] : memref<8x32xf32, #tpu.memory_space<vmem>>, vector<8x32xf32>
    %1 = arith.truncf %0 : vector<8x32xf32> to vector<8x32xbf16>
    %c0_1 = arith.constant 0 : index
    %c0_2 = arith.constant 0 : index
    %2 = vector.load %arg2[%c0_1, %c0_2] : memref<32x96xbf16, #tpu.memory_space<vmem>>, vector<32x96xbf16>
    %cst = arith.constant dense<0.000000e+00> : vector<8x96xf32>
    %3 = tpu.matmul %1, %2, %cst {dimension_numbers = #tpu.dot_dimension_numbers<[1], [0], [0], [1], [0, 0, 1, 1], [], []>} : vector<8x32xbf16>, vector<32x96xbf16>, vector<8x96xf32> -> vector<8x96xf32>
    %c0_3 = arith.constant 0 : index
    %c0_4 = arith.constant 0 : index
    %4 = vector.load %arg3[%c0_3, %c0_4] : memref<1x96xf32, #tpu.memory_space<vmem>>, vector<1x96xf32>
    %5 = vector.broadcast %4 : vector<1x96xf32> to vector<8x96xf32>
    %6 = arith.addf %3, %5 : vector<8x96xf32>
    %7 = vector.extract_strided_slice %6 {offsets = [0, 0], sizes = [8, 32], strides = [1, 1]} : vector<8x96xf32> to vector<8x32xf32>
    %8 = vector.extract_strided_slice %6 {offsets = [0, 32], sizes = [8, 32], strides = [1, 1]} : vector<8x96xf32> to vector<8x32xf32>
    %9 = vector.extract_strided_slice %6 {offsets = [0, 64], sizes = [8, 32], strides = [1, 1]} : vector<8x96xf32> to vector<8x32xf32>
    %10 = vector.extract_strided_slice %7 {offsets = [0, 0], sizes = [2, 32], strides = [1, 1]} : vector<8x32xf32> to vector<2x32xf32>
    %11 = vector.extract_strided_slice %8 {offsets = [0, 0], sizes = [2, 32], strides = [1, 1]} : vector<8x32xf32> to vector<2x32xf32>
    %12 = vector.extract_strided_slice %9 {offsets = [0, 0], sizes = [2, 32], strides = [1, 1]} : vector<8x32xf32> to vector<2x32xf32>
    %13 = vector.extract_strided_slice %10 {offsets = [0, 0], sizes = [2, 8], strides = [1, 1]} : vector<2x32xf32> to vector<2x8xf32>
    %14 = vector.extract_strided_slice %11 {offsets = [0, 0], sizes = [2, 8], strides = [1, 1]} : vector<2x32xf32> to vector<2x8xf32>
    %cst_5 = arith.constant dense<0.000000e+00> : vector<2x2xf32>
    %15 = tpu.matmul %13, %14, %cst_5 {dimension_numbers = #tpu.dot_dimension_numbers<[1], [1], [0], [0], [0, 0, 1, 0], [], []>} : vector<2x8xf32>, vector<2x8xf32>, vector<2x2xf32> -> vector<2x2xf32>
    %cst_6 = arith.constant 0.353553385 : f32
    %16 = vector.broadcast %cst_6 : f32 to vector<2x2xf32>
    %17 = arith.mulf %15, %16 : vector<2x2xf32>
    %cst_7 = arith.constant dense<0xFF800000> : vector<2xf32>
    %18 = vector.multi_reduction <maximumf>, %17, %cst_7 [1] : vector<2x2xf32> to vector<2xf32>
    %19 = vector.shape_cast %18 : vector<2xf32> to vector<2x1xf32>
    %20 = vector.broadcast %19 : vector<2x1xf32> to vector<2x2xf32>
    %21 = arith.subf %17, %20 : vector<2x2xf32>
    %22 = math.exp %21 : vector<2x2xf32>
    %cst_8 = arith.constant dense<0.000000e+00> : vector<2xf32>
    %23 = vector.multi_reduction <add>, %22, %cst_8 [1] : vector<2x2xf32> to vector<2xf32>
    %24 = vector.shape_cast %23 : vector<2xf32> to vector<2x1xf32>
    %25 = vector.broadcast %24 : vector<2x1xf32> to vector<2x2xf32>
    %26 = arith.divf %22, %25 : vector<2x2xf32>
    %27 = vector.extract_strided_slice %12 {offsets = [0, 0], sizes = [2, 8], strides = [1, 1]} : vector<2x32xf32> to vector<2x8xf32>
    %cst_9 = arith.constant dense<0.000000e+00> : vector<2x8xf32>
    %28 = tpu.matmul %26, %27, %cst_9 {dimension_numbers = #tpu.dot_dimension_numbers<[1], [0], [0], [1], [0, 0, 1, 1], [], []>} : vector<2x2xf32>, vector<2x8xf32>, vector<2x8xf32> -> vector<2x8xf32>
    %29 = vector.extract_strided_slice %10 {offsets = [0, 8], sizes = [2, 8], strides = [1, 1]} : vector<2x32xf32> to vector<2x8xf32>
    %30 = vector.extract_strided_slice %11 {offsets = [0, 8], sizes = [2, 8], strides = [1, 1]} : vector<2x32xf32> to vector<2x8xf32>
    %cst_10 = arith.constant dense<0.000000e+00> : vector<2x2xf32>
    %31 = tpu.matmul %29, %30, %cst_10 {dimension_numbers = #tpu.dot_dimension_numbers<[1], [1], [0], [0], [0, 0, 1, 0], [], []>} : vector<2x8xf32>, vector<2x8xf32>, vector<2x2xf32> -> vector<2x2xf32>
    %cst_11 = arith.constant 0.353553385 : f32
    %32 = vector.broadcast %cst_11 : f32 to vector<2x2xf32>
    %33 = arith.mulf %31, %32 : vector<2x2xf32>
    %cst_12 = arith.constant dense<0xFF800000> : vector<2xf32>
    %34 = vector.multi_reduction <maximumf>, %33, %cst_12 [1] : vector<2x2xf32> to vector<2xf32>
    %35 = vector.shape_cast %34 : vector<2xf32> to vector<2x1xf32>
    %36 = vector.broadcast %35 : vector<2x1xf32> to vector<2x2xf32>
    %37 = arith.subf %33, %36 : vector<2x2xf32>
    %38 = math.exp %37 : vector<2x2xf32>
    %cst_13 = arith.constant dense<0.000000e+00> : vector<2xf32>
    %39 = vector.multi_reduction <add>, %38, %cst_13 [1] : vector<2x2xf32> to vector<2xf32>
    %40 = vector.shape_cast %39 : vector<2xf32> to vector<2x1xf32>
    %41 = vector.broadcast %40 : vector<2x1xf32> to vector<2x2xf32>
    %42 = arith.divf %38, %41 : vector<2x2xf32>
    %43 = vector.extract_strided_slice %12 {offsets = [0, 8], sizes = [2, 8], strides = [1, 1]} : vector<2x32xf32> to vector<2x8xf32>
    %cst_14 = arith.constant dense<0.000000e+00> : vector<2x8xf32>
    %44 = tpu.matmul %42, %43, %cst_14 {dimension_numbers = #tpu.dot_dimension_numbers<[1], [0], [0], [1], [0, 0, 1, 1], [], []>} : vector<2x2xf32>, vector<2x8xf32>, vector<2x8xf32> -> vector<2x8xf32>
    %45 = vector.extract_strided_slice %10 {offsets = [0, 16], sizes = [2, 8], strides = [1, 1]} : vector<2x32xf32> to vector<2x8xf32>
    %46 = vector.extract_strided_slice %11 {offsets = [0, 16], sizes = [2, 8], strides = [1, 1]} : vector<2x32xf32> to vector<2x8xf32>
    %cst_15 = arith.constant dense<0.000000e+00> : vector<2x2xf32>
    %47 = tpu.matmul %45, %46, %cst_15 {dimension_numbers = #tpu.dot_dimension_numbers<[1], [1], [0], [0], [0, 0, 1, 0], [], []>} : vector<2x8xf32>, vector<2x8xf32>, vector<2x2xf32> -> vector<2x2xf32>
    %cst_16 = arith.constant 0.353553385 : f32
    %48 = vector.broadcast %cst_16 : f32 to vector<2x2xf32>
    %49 = arith.mulf %47, %48 : vector<2x2xf32>
    %cst_17 = arith.constant dense<0xFF800000> : vector<2xf32>
    %50 = vector.multi_reduction <maximumf>, %49, %cst_17 [1] : vector<2x2xf32> to vector<2xf32>
    %51 = vector.shape_cast %50 : vector<2xf32> to vector<2x1xf32>
    %52 = vector.broadcast %51 : vector<2x1xf32> to vector<2x2xf32>
    %53 = arith.subf %49, %52 : vector<2x2xf32>
    %54 = math.exp %53 : vector<2x2xf32>
    %cst_18 = arith.constant dense<0.000000e+00> : vector<2xf32>
    %55 = vector.multi_reduction <add>, %54, %cst_18 [1] : vector<2x2xf32> to vector<2xf32>
    %56 = vector.shape_cast %55 : vector<2xf32> to vector<2x1xf32>
    %57 = vector.broadcast %56 : vector<2x1xf32> to vector<2x2xf32>
    %58 = arith.divf %54, %57 : vector<2x2xf32>
    %59 = vector.extract_strided_slice %12 {offsets = [0, 16], sizes = [2, 8], strides = [1, 1]} : vector<2x32xf32> to vector<2x8xf32>
    %cst_19 = arith.constant dense<0.000000e+00> : vector<2x8xf32>
    %60 = tpu.matmul %58, %59, %cst_19 {dimension_numbers = #tpu.dot_dimension_numbers<[1], [0], [0], [1], [0, 0, 1, 1], [], []>} : vector<2x2xf32>, vector<2x8xf32>, vector<2x8xf32> -> vector<2x8xf32>
    %61 = vector.extract_strided_slice %10 {offsets = [0, 24], sizes = [2, 8], strides = [1, 1]} : vector<2x32xf32> to vector<2x8xf32>
    %62 = vector.extract_strided_slice %11 {offsets = [0, 24], sizes = [2, 8], strides = [1, 1]} : vector<2x32xf32> to vector<2x8xf32>
    %cst_20 = arith.constant dense<0.000000e+00> : vector<2x2xf32>
    %63 = tpu.matmul %61, %62, %cst_20 {dimension_numbers = #tpu.dot_dimension_numbers<[1], [1], [0], [0], [0, 0, 1, 0], [], []>} : vector<2x8xf32>, vector<2x8xf32>, vector<2x2xf32> -> vector<2x2xf32>
    %cst_21 = arith.constant 0.353553385 : f32
    %64 = vector.broadcast %cst_21 : f32 to vector<2x2xf32>
    %65 = arith.mulf %63, %64 : vector<2x2xf32>
    %cst_22 = arith.constant dense<0xFF800000> : vector<2xf32>
    %66 = vector.multi_reduction <maximumf>, %65, %cst_22 [1] : vector<2x2xf32> to vector<2xf32>
    %67 = vector.shape_cast %66 : vector<2xf32> to vector<2x1xf32>
    %68 = vector.broadcast %67 : vector<2x1xf32> to vector<2x2xf32>
    %69 = arith.subf %65, %68 : vector<2x2xf32>
    %70 = math.exp %69 : vector<2x2xf32>
    %cst_23 = arith.constant dense<0.000000e+00> : vector<2xf32>
    %71 = vector.multi_reduction <add>, %70, %cst_23 [1] : vector<2x2xf32> to vector<2xf32>
    %72 = vector.shape_cast %71 : vector<2xf32> to vector<2x1xf32>
    %73 = vector.broadcast %72 : vector<2x1xf32> to vector<2x2xf32>
    %74 = arith.divf %70, %73 : vector<2x2xf32>
    %75 = vector.extract_strided_slice %12 {offsets = [0, 24], sizes = [2, 8], strides = [1, 1]} : vector<2x32xf32> to vector<2x8xf32>
    %cst_24 = arith.constant dense<0.000000e+00> : vector<2x8xf32>
    %76 = tpu.matmul %74, %75, %cst_24 {dimension_numbers = #tpu.dot_dimension_numbers<[1], [0], [0], [1], [0, 0, 1, 1], [], []>} : vector<2x2xf32>, vector<2x8xf32>, vector<2x8xf32> -> vector<2x8xf32>
    %77 = tpu.concatenate %28, %44, %60, %76 in 1 : vector<2x8xf32>, vector<2x8xf32>, vector<2x8xf32>, vector<2x8xf32> -> vector<2x32xf32>
    %78 = vector.extract_strided_slice %7 {offsets = [2, 0], sizes = [2, 32], strides = [1, 1]} : vector<8x32xf32> to vector<2x32xf32>
    %79 = vector.extract_strided_slice %8 {offsets = [2, 0], sizes = [2, 32], strides = [1, 1]} : vector<8x32xf32> to vector<2x32xf32>
    %80 = vector.extract_strided_slice %9 {offsets = [2, 0], sizes = [2, 32], strides = [1, 1]} : vector<8x32xf32> to vector<2x32xf32>
    %81 = vector.extract_strided_slice %78 {offsets = [0, 0], sizes = [2, 8], strides = [1, 1]} : vector<2x32xf32> to vector<2x8xf32>
    %82 = vector.extract_strided_slice %79 {offsets = [0, 0], sizes = [2, 8], strides = [1, 1]} : vector<2x32xf32> to vector<2x8xf32>
    %cst_25 = arith.constant dense<0.000000e+00> : vector<2x2xf32>
    %83 = tpu.matmul %81, %82, %cst_25 {dimension_numbers = #tpu.dot_dimension_numbers<[1], [1], [0], [0], [0, 0, 1, 0], [], []>} : vector<2x8xf32>, vector<2x8xf32>, vector<2x2xf32> -> vector<2x2xf32>
    %cst_26 = arith.constant 0.353553385 : f32
    %84 = vector.broadcast %cst_26 : f32 to vector<2x2xf32>
    %85 = arith.mulf %83, %84 : vector<2x2xf32>
    %cst_27 = arith.constant dense<0xFF800000> : vector<2xf32>
    %86 = vector.multi_reduction <maximumf>, %85, %cst_27 [1] : vector<2x2xf32> to vector<2xf32>
    %87 = vector.shape_cast %86 : vector<2xf32> to vector<2x1xf32>
    %88 = vector.broadcast %87 : vector<2x1xf32> to vector<2x2xf32>
    %89 = arith.subf %85, %88 : vector<2x2xf32>
    %90 = math.exp %89 : vector<2x2xf32>
    %cst_28 = arith.constant dense<0.000000e+00> : vector<2xf32>
    %91 = vector.multi_reduction <add>, %90, %cst_28 [1] : vector<2x2xf32> to vector<2xf32>
    %92 = vector.shape_cast %91 : vector<2xf32> to vector<2x1xf32>
    %93 = vector.broadcast %92 : vector<2x1xf32> to vector<2x2xf32>
    %94 = arith.divf %90, %93 : vector<2x2xf32>
    %95 = vector.extract_strided_slice %80 {offsets = [0, 0], sizes = [2, 8], strides = [1, 1]} : vector<2x32xf32> to vector<2x8xf32>
    %cst_29 = arith.constant dense<0.000000e+00> : vector<2x8xf32>
    %96 = tpu.matmul %94, %95, %cst_29 {dimension_numbers = #tpu.dot_dimension_numbers<[1], [0], [0], [1], [0, 0, 1, 1], [], []>} : vector<2x2xf32>, vector<2x8xf32>, vector<2x8xf32> -> vector<2x8xf32>
    %97 = vector.extract_strided_slice %78 {offsets = [0, 8], sizes = [2, 8], strides = [1, 1]} : vector<2x32xf32> to vector<2x8xf32>
    %98 = vector.extract_strided_slice %79 {offsets = [0, 8], sizes = [2, 8], strides = [1, 1]} : vector<2x32xf32> to vector<2x8xf32>
    %cst_30 = arith.constant dense<0.000000e+00> : vector<2x2xf32>
    %99 = tpu.matmul %97, %98, %cst_30 {dimension_numbers = #tpu.dot_dimension_numbers<[1], [1], [0], [0], [0, 0, 1, 0], [], []>} : vector<2x8xf32>, vector<2x8xf32>, vector<2x2xf32> -> vector<2x2xf32>
    %cst_31 = arith.constant 0.353553385 : f32
    %100 = vector.broadcast %cst_31 : f32 to vector<2x2xf32>
    %101 = arith.mulf %99, %100 : vector<2x2xf32>
    %cst_32 = arith.constant dense<0xFF800000> : vector<2xf32>
    %102 = vector.multi_reduction <maximumf>, %101, %cst_32 [1] : vector<2x2xf32> to vector<2xf32>
    %103 = vector.shape_cast %102 : vector<2xf32> to vector<2x1xf32>
    %104 = vector.broadcast %103 : vector<2x1xf32> to vector<2x2xf32>
    %105 = arith.subf %101, %104 : vector<2x2xf32>
    %106 = math.exp %105 : vector<2x2xf32>
    %cst_33 = arith.constant dense<0.000000e+00> : vector<2xf32>
    %107 = vector.multi_reduction <add>, %106, %cst_33 [1] : vector<2x2xf32> to vector<2xf32>
    %108 = vector.shape_cast %107 : vector<2xf32> to vector<2x1xf32>
    %109 = vector.broadcast %108 : vector<2x1xf32> to vector<2x2xf32>
    %110 = arith.divf %106, %109 : vector<2x2xf32>
    %111 = vector.extract_strided_slice %80 {offsets = [0, 8], sizes = [2, 8], strides = [1, 1]} : vector<2x32xf32> to vector<2x8xf32>
    %cst_34 = arith.constant dense<0.000000e+00> : vector<2x8xf32>
    %112 = tpu.matmul %110, %111, %cst_34 {dimension_numbers = #tpu.dot_dimension_numbers<[1], [0], [0], [1], [0, 0, 1, 1], [], []>} : vector<2x2xf32>, vector<2x8xf32>, vector<2x8xf32> -> vector<2x8xf32>
    %113 = vector.extract_strided_slice %78 {offsets = [0, 16], sizes = [2, 8], strides = [1, 1]} : vector<2x32xf32> to vector<2x8xf32>
    %114 = vector.extract_strided_slice %79 {offsets = [0, 16], sizes = [2, 8], strides = [1, 1]} : vector<2x32xf32> to vector<2x8xf32>
    %cst_35 = arith.constant dense<0.000000e+00> : vector<2x2xf32>
    %115 = tpu.matmul %113, %114, %cst_35 {dimension_numbers = #tpu.dot_dimension_numbers<[1], [1], [0], [0], [0, 0, 1, 0], [], []>} : vector<2x8xf32>, vector<2x8xf32>, vector<2x2xf32> -> vector<2x2xf32>
    %cst_36 = arith.constant 0.353553385 : f32
    %116 = vector.broadcast %cst_36 : f32 to vector<2x2xf32>
    %117 = arith.mulf %115, %116 : vector<2x2xf32>
    %cst_37 = arith.constant dense<0xFF800000> : vector<2xf32>
    %118 = vector.multi_reduction <maximumf>, %117, %cst_37 [1] : vector<2x2xf32> to vector<2xf32>
    %119 = vector.shape_cast %118 : vector<2xf32> to vector<2x1xf32>
    %120 = vector.broadcast %119 : vector<2x1xf32> to vector<2x2xf32>
    %121 = arith.subf %117, %120 : vector<2x2xf32>
    %122 = math.exp %121 : vector<2x2xf32>
    %cst_38 = arith.constant dense<0.000000e+00> : vector<2xf32>
    %123 = vector.multi_reduction <add>, %122, %cst_38 [1] : vector<2x2xf32> to vector<2xf32>
    %124 = vector.shape_cast %123 : vector<2xf32> to vector<2x1xf32>
    %125 = vector.broadcast %124 : vector<2x1xf32> to vector<2x2xf32>
    %126 = arith.divf %122, %125 : vector<2x2xf32>
    %127 = vector.extract_strided_slice %80 {offsets = [0, 16], sizes = [2, 8], strides = [1, 1]} : vector<2x32xf32> to vector<2x8xf32>
    %cst_39 = arith.constant dense<0.000000e+00> : vector<2x8xf32>
    %128 = tpu.matmul %126, %127, %cst_39 {dimension_numbers = #tpu.dot_dimension_numbers<[1], [0], [0], [1], [0, 0, 1, 1], [], []>} : vector<2x2xf32>, vector<2x8xf32>, vector<2x8xf32> -> vector<2x8xf32>
    %129 = vector.extract_strided_slice %78 {offsets = [0, 24], sizes = [2, 8], strides = [1, 1]} : vector<2x32xf32> to vector<2x8xf32>
    %130 = vector.extract_strided_slice %79 {offsets = [0, 24], sizes = [2, 8], strides = [1, 1]} : vector<2x32xf32> to vector<2x8xf32>
    %cst_40 = arith.constant dense<0.000000e+00> : vector<2x2xf32>
    %131 = tpu.matmul %129, %130, %cst_40 {dimension_numbers = #tpu.dot_dimension_numbers<[1], [1], [0], [0], [0, 0, 1, 0], [], []>} : vector<2x8xf32>, vector<2x8xf32>, vector<2x2xf32> -> vector<2x2xf32>
    %cst_41 = arith.constant 0.353553385 : f32
    %132 = vector.broadcast %cst_41 : f32 to vector<2x2xf32>
    %133 = arith.mulf %131, %132 : vector<2x2xf32>
    %cst_42 = arith.constant dense<0xFF800000> : vector<2xf32>
    %134 = vector.multi_reduction <maximumf>, %133, %cst_42 [1] : vector<2x2xf32> to vector<2xf32>
    %135 = vector.shape_cast %134 : vector<2xf32> to vector<2x1xf32>
    %136 = vector.broadcast %135 : vector<2x1xf32> to vector<2x2xf32>
    %137 = arith.subf %133, %136 : vector<2x2xf32>
    %138 = math.exp %137 : vector<2x2xf32>
    %cst_43 = arith.constant dense<0.000000e+00> : vector<2xf32>
    %139 = vector.multi_reduction <add>, %138, %cst_43 [1] : vector<2x2xf32> to vector<2xf32>
    %140 = vector.shape_cast %139 : vector<2xf32> to vector<2x1xf32>
    %141 = vector.broadcast %140 : vector<2x1xf32> to vector<2x2xf32>
    %142 = arith.divf %138, %141 : vector<2x2xf32>
    %143 = vector.extract_strided_slice %80 {offsets = [0, 24], sizes = [2, 8], strides = [1, 1]} : vector<2x32xf32> to vector<2x8xf32>
    %cst_44 = arith.constant dense<0.000000e+00> : vector<2x8xf32>
    %144 = tpu.matmul %142, %143, %cst_44 {dimension_numbers = #tpu.dot_dimension_numbers<[1], [0], [0], [1], [0, 0, 1, 1], [], []>} : vector<2x2xf32>, vector<2x8xf32>, vector<2x8xf32> -> vector<2x8xf32>
    %145 = tpu.concatenate %96, %112, %128, %144 in 1 : vector<2x8xf32>, vector<2x8xf32>, vector<2x8xf32>, vector<2x8xf32> -> vector<2x32xf32>
    %146 = vector.extract_strided_slice %7 {offsets = [4, 0], sizes = [2, 32], strides = [1, 1]} : vector<8x32xf32> to vector<2x32xf32>
    %147 = vector.extract_strided_slice %8 {offsets = [4, 0], sizes = [2, 32], strides = [1, 1]} : vector<8x32xf32> to vector<2x32xf32>
    %148 = vector.extract_strided_slice %9 {offsets = [4, 0], sizes = [2, 32], strides = [1, 1]} : vector<8x32xf32> to vector<2x32xf32>
    %149 = vector.extract_strided_slice %146 {offsets = [0, 0], sizes = [2, 8], strides = [1, 1]} : vector<2x32xf32> to vector<2x8xf32>
    %150 = vector.extract_strided_slice %147 {offsets = [0, 0], sizes = [2, 8], strides = [1, 1]} : vector<2x32xf32> to vector<2x8xf32>
    %cst_45 = arith.constant dense<0.000000e+00> : vector<2x2xf32>
    %151 = tpu.matmul %149, %150, %cst_45 {dimension_numbers = #tpu.dot_dimension_numbers<[1], [1], [0], [0], [0, 0, 1, 0], [], []>} : vector<2x8xf32>, vector<2x8xf32>, vector<2x2xf32> -> vector<2x2xf32>
    %cst_46 = arith.constant 0.353553385 : f32
    %152 = vector.broadcast %cst_46 : f32 to vector<2x2xf32>
    %153 = arith.mulf %151, %152 : vector<2x2xf32>
    %cst_47 = arith.constant dense<0xFF800000> : vector<2xf32>
    %154 = vector.multi_reduction <maximumf>, %153, %cst_47 [1] : vector<2x2xf32> to vector<2xf32>
    %155 = vector.shape_cast %154 : vector<2xf32> to vector<2x1xf32>
    %156 = vector.broadcast %155 : vector<2x1xf32> to vector<2x2xf32>
    %157 = arith.subf %153, %156 : vector<2x2xf32>
    %158 = math.exp %157 : vector<2x2xf32>
    %cst_48 = arith.constant dense<0.000000e+00> : vector<2xf32>
    %159 = vector.multi_reduction <add>, %158, %cst_48 [1] : vector<2x2xf32> to vector<2xf32>
    %160 = vector.shape_cast %159 : vector<2xf32> to vector<2x1xf32>
    %161 = vector.broadcast %160 : vector<2x1xf32> to vector<2x2xf32>
    %162 = arith.divf %158, %161 : vector<2x2xf32>
    %163 = vector.extract_strided_slice %148 {offsets = [0, 0], sizes = [2, 8], strides = [1, 1]} : vector<2x32xf32> to vector<2x8xf32>
    %cst_49 = arith.constant dense<0.000000e+00> : vector<2x8xf32>
    %164 = tpu.matmul %162, %163, %cst_49 {dimension_numbers = #tpu.dot_dimension_numbers<[1], [0], [0], [1], [0, 0, 1, 1], [], []>} : vector<2x2xf32>, vector<2x8xf32>, vector<2x8xf32> -> vector<2x8xf32>
    %165 = vector.extract_strided_slice %146 {offsets = [0, 8], sizes = [2, 8], strides = [1, 1]} : vector<2x32xf32> to vector<2x8xf32>
    %166 = vector.extract_strided_slice %147 {offsets = [0, 8], sizes = [2, 8], strides = [1, 1]} : vector<2x32xf32> to vector<2x8xf32>
    %cst_50 = arith.constant dense<0.000000e+00> : vector<2x2xf32>
    %167 = tpu.matmul %165, %166, %cst_50 {dimension_numbers = #tpu.dot_dimension_numbers<[1], [1], [0], [0], [0, 0, 1, 0], [], []>} : vector<2x8xf32>, vector<2x8xf32>, vector<2x2xf32> -> vector<2x2xf32>
    %cst_51 = arith.constant 0.353553385 : f32
    %168 = vector.broadcast %cst_51 : f32 to vector<2x2xf32>
    %169 = arith.mulf %167, %168 : vector<2x2xf32>
    %cst_52 = arith.constant dense<0xFF800000> : vector<2xf32>
    %170 = vector.multi_reduction <maximumf>, %169, %cst_52 [1] : vector<2x2xf32> to vector<2xf32>
    %171 = vector.shape_cast %170 : vector<2xf32> to vector<2x1xf32>
    %172 = vector.broadcast %171 : vector<2x1xf32> to vector<2x2xf32>
    %173 = arith.subf %169, %172 : vector<2x2xf32>
    %174 = math.exp %173 : vector<2x2xf32>
    %cst_53 = arith.constant dense<0.000000e+00> : vector<2xf32>
    %175 = vector.multi_reduction <add>, %174, %cst_53 [1] : vector<2x2xf32> to vector<2xf32>
    %176 = vector.shape_cast %175 : vector<2xf32> to vector<2x1xf32>
    %177 = vector.broadcast %176 : vector<2x1xf32> to vector<2x2xf32>
    %178 = arith.divf %174, %177 : vector<2x2xf32>
    %179 = vector.extract_strided_slice %148 {offsets = [0, 8], sizes = [2, 8], strides = [1, 1]} : vector<2x32xf32> to vector<2x8xf32>
    %cst_54 = arith.constant dense<0.000000e+00> : vector<2x8xf32>
    %180 = tpu.matmul %178, %179, %cst_54 {dimension_numbers = #tpu.dot_dimension_numbers<[1], [0], [0], [1], [0, 0, 1, 1], [], []>} : vector<2x2xf32>, vector<2x8xf32>, vector<2x8xf32> -> vector<2x8xf32>
    %181 = vector.extract_strided_slice %146 {offsets = [0, 16], sizes = [2, 8], strides = [1, 1]} : vector<2x32xf32> to vector<2x8xf32>
    %182 = vector.extract_strided_slice %147 {offsets = [0, 16], sizes = [2, 8], strides = [1, 1]} : vector<2x32xf32> to vector<2x8xf32>
    %cst_55 = arith.constant dense<0.000000e+00> : vector<2x2xf32>
    %183 = tpu.matmul %181, %182, %cst_55 {dimension_numbers = #tpu.dot_dimension_numbers<[1], [1], [0], [0], [0, 0, 1, 0], [], []>} : vector<2x8xf32>, vector<2x8xf32>, vector<2x2xf32> -> vector<2x2xf32>
    %cst_56 = arith.constant 0.353553385 : f32
    %184 = vector.broadcast %cst_56 : f32 to vector<2x2xf32>
    %185 = arith.mulf %183, %184 : vector<2x2xf32>
    %cst_57 = arith.constant dense<0xFF800000> : vector<2xf32>
    %186 = vector.multi_reduction <maximumf>, %185, %cst_57 [1] : vector<2x2xf32> to vector<2xf32>
    %187 = vector.shape_cast %186 : vector<2xf32> to vector<2x1xf32>
    %188 = vector.broadcast %187 : vector<2x1xf32> to vector<2x2xf32>
    %189 = arith.subf %185, %188 : vector<2x2xf32>
    %190 = math.exp %189 : vector<2x2xf32>
    %cst_58 = arith.constant dense<0.000000e+00> : vector<2xf32>
    %191 = vector.multi_reduction <add>, %190, %cst_58 [1] : vector<2x2xf32> to vector<2xf32>
    %192 = vector.shape_cast %191 : vector<2xf32> to vector<2x1xf32>
    %193 = vector.broadcast %192 : vector<2x1xf32> to vector<2x2xf32>
    %194 = arith.divf %190, %193 : vector<2x2xf32>
    %195 = vector.extract_strided_slice %148 {offsets = [0, 16], sizes = [2, 8], strides = [1, 1]} : vector<2x32xf32> to vector<2x8xf32>
    %cst_59 = arith.constant dense<0.000000e+00> : vector<2x8xf32>
    %196 = tpu.matmul %194, %195, %cst_59 {dimension_numbers = #tpu.dot_dimension_numbers<[1], [0], [0], [1], [0, 0, 1, 1], [], []>} : vector<2x2xf32>, vector<2x8xf32>, vector<2x8xf32> -> vector<2x8xf32>
    %197 = vector.extract_strided_slice %146 {offsets = [0, 24], sizes = [2, 8], strides = [1, 1]} : vector<2x32xf32> to vector<2x8xf32>
    %198 = vector.extract_strided_slice %147 {offsets = [0, 24], sizes = [2, 8], strides = [1, 1]} : vector<2x32xf32> to vector<2x8xf32>
    %cst_60 = arith.constant dense<0.000000e+00> : vector<2x2xf32>
    %199 = tpu.matmul %197, %198, %cst_60 {dimension_numbers = #tpu.dot_dimension_numbers<[1], [1], [0], [0], [0, 0, 1, 0], [], []>} : vector<2x8xf32>, vector<2x8xf32>, vector<2x2xf32> -> vector<2x2xf32>
    %cst_61 = arith.constant 0.353553385 : f32
    %200 = vector.broadcast %cst_61 : f32 to vector<2x2xf32>
    %201 = arith.mulf %199, %200 : vector<2x2xf32>
    %cst_62 = arith.constant dense<0xFF800000> : vector<2xf32>
    %202 = vector.multi_reduction <maximumf>, %201, %cst_62 [1] : vector<2x2xf32> to vector<2xf32>
    %203 = vector.shape_cast %202 : vector<2xf32> to vector<2x1xf32>
    %204 = vector.broadcast %203 : vector<2x1xf32> to vector<2x2xf32>
    %205 = arith.subf %201, %204 : vector<2x2xf32>
    %206 = math.exp %205 : vector<2x2xf32>
    %cst_63 = arith.constant dense<0.000000e+00> : vector<2xf32>
    %207 = vector.multi_reduction <add>, %206, %cst_63 [1] : vector<2x2xf32> to vector<2xf32>
    %208 = vector.shape_cast %207 : vector<2xf32> to vector<2x1xf32>
    %209 = vector.broadcast %208 : vector<2x1xf32> to vector<2x2xf32>
    %210 = arith.divf %206, %209 : vector<2x2xf32>
    %211 = vector.extract_strided_slice %148 {offsets = [0, 24], sizes = [2, 8], strides = [1, 1]} : vector<2x32xf32> to vector<2x8xf32>
    %cst_64 = arith.constant dense<0.000000e+00> : vector<2x8xf32>
    %212 = tpu.matmul %210, %211, %cst_64 {dimension_numbers = #tpu.dot_dimension_numbers<[1], [0], [0], [1], [0, 0, 1, 1], [], []>} : vector<2x2xf32>, vector<2x8xf32>, vector<2x8xf32> -> vector<2x8xf32>
    %213 = tpu.concatenate %164, %180, %196, %212 in 1 : vector<2x8xf32>, vector<2x8xf32>, vector<2x8xf32>, vector<2x8xf32> -> vector<2x32xf32>
    %214 = vector.extract_strided_slice %7 {offsets = [6, 0], sizes = [2, 32], strides = [1, 1]} : vector<8x32xf32> to vector<2x32xf32>
    %215 = vector.extract_strided_slice %8 {offsets = [6, 0], sizes = [2, 32], strides = [1, 1]} : vector<8x32xf32> to vector<2x32xf32>
    %216 = vector.extract_strided_slice %9 {offsets = [6, 0], sizes = [2, 32], strides = [1, 1]} : vector<8x32xf32> to vector<2x32xf32>
    %217 = vector.extract_strided_slice %214 {offsets = [0, 0], sizes = [2, 8], strides = [1, 1]} : vector<2x32xf32> to vector<2x8xf32>
    %218 = vector.extract_strided_slice %215 {offsets = [0, 0], sizes = [2, 8], strides = [1, 1]} : vector<2x32xf32> to vector<2x8xf32>
    %cst_65 = arith.constant dense<0.000000e+00> : vector<2x2xf32>
    %219 = tpu.matmul %217, %218, %cst_65 {dimension_numbers = #tpu.dot_dimension_numbers<[1], [1], [0], [0], [0, 0, 1, 0], [], []>} : vector<2x8xf32>, vector<2x8xf32>, vector<2x2xf32> -> vector<2x2xf32>
    %cst_66 = arith.constant 0.353553385 : f32
    %220 = vector.broadcast %cst_66 : f32 to vector<2x2xf32>
    %221 = arith.mulf %219, %220 : vector<2x2xf32>
    %cst_67 = arith.constant dense<0xFF800000> : vector<2xf32>
    %222 = vector.multi_reduction <maximumf>, %221, %cst_67 [1] : vector<2x2xf32> to vector<2xf32>
    %223 = vector.shape_cast %222 : vector<2xf32> to vector<2x1xf32>
    %224 = vector.broadcast %223 : vector<2x1xf32> to vector<2x2xf32>
    %225 = arith.subf %221, %224 : vector<2x2xf32>
    %226 = math.exp %225 : vector<2x2xf32>
    %cst_68 = arith.constant dense<0.000000e+00> : vector<2xf32>
    %227 = vector.multi_reduction <add>, %226, %cst_68 [1] : vector<2x2xf32> to vector<2xf32>
    %228 = vector.shape_cast %227 : vector<2xf32> to vector<2x1xf32>
    %229 = vector.broadcast %228 : vector<2x1xf32> to vector<2x2xf32>
    %230 = arith.divf %226, %229 : vector<2x2xf32>
    %231 = vector.extract_strided_slice %216 {offsets = [0, 0], sizes = [2, 8], strides = [1, 1]} : vector<2x32xf32> to vector<2x8xf32>
    %cst_69 = arith.constant dense<0.000000e+00> : vector<2x8xf32>
    %232 = tpu.matmul %230, %231, %cst_69 {dimension_numbers = #tpu.dot_dimension_numbers<[1], [0], [0], [1], [0, 0, 1, 1], [], []>} : vector<2x2xf32>, vector<2x8xf32>, vector<2x8xf32> -> vector<2x8xf32>
    %233 = vector.extract_strided_slice %214 {offsets = [0, 8], sizes = [2, 8], strides = [1, 1]} : vector<2x32xf32> to vector<2x8xf32>
    %234 = vector.extract_strided_slice %215 {offsets = [0, 8], sizes = [2, 8], strides = [1, 1]} : vector<2x32xf32> to vector<2x8xf32>
    %cst_70 = arith.constant dense<0.000000e+00> : vector<2x2xf32>
    %235 = tpu.matmul %233, %234, %cst_70 {dimension_numbers = #tpu.dot_dimension_numbers<[1], [1], [0], [0], [0, 0, 1, 0], [], []>} : vector<2x8xf32>, vector<2x8xf32>, vector<2x2xf32> -> vector<2x2xf32>
    %cst_71 = arith.constant 0.353553385 : f32
    %236 = vector.broadcast %cst_71 : f32 to vector<2x2xf32>
    %237 = arith.mulf %235, %236 : vector<2x2xf32>
    %cst_72 = arith.constant dense<0xFF800000> : vector<2xf32>
    %238 = vector.multi_reduction <maximumf>, %237, %cst_72 [1] : vector<2x2xf32> to vector<2xf32>
    %239 = vector.shape_cast %238 : vector<2xf32> to vector<2x1xf32>
    %240 = vector.broadcast %239 : vector<2x1xf32> to vector<2x2xf32>
    %241 = arith.subf %237, %240 : vector<2x2xf32>
    %242 = math.exp %241 : vector<2x2xf32>
    %cst_73 = arith.constant dense<0.000000e+00> : vector<2xf32>
    %243 = vector.multi_reduction <add>, %242, %cst_73 [1] : vector<2x2xf32> to vector<2xf32>
    %244 = vector.shape_cast %243 : vector<2xf32> to vector<2x1xf32>
    %245 = vector.broadcast %244 : vector<2x1xf32> to vector<2x2xf32>
    %246 = arith.divf %242, %245 : vector<2x2xf32>
    %247 = vector.extract_strided_slice %216 {offsets = [0, 8], sizes = [2, 8], strides = [1, 1]} : vector<2x32xf32> to vector<2x8xf32>
    %cst_74 = arith.constant dense<0.000000e+00> : vector<2x8xf32>
    %248 = tpu.matmul %246, %247, %cst_74 {dimension_numbers = #tpu.dot_dimension_numbers<[1], [0], [0], [1], [0, 0, 1, 1], [], []>} : vector<2x2xf32>, vector<2x8xf32>, vector<2x8xf32> -> vector<2x8xf32>
    %249 = vector.extract_strided_slice %214 {offsets = [0, 16], sizes = [2, 8], strides = [1, 1]} : vector<2x32xf32> to vector<2x8xf32>
    %250 = vector.extract_strided_slice %215 {offsets = [0, 16], sizes = [2, 8], strides = [1, 1]} : vector<2x32xf32> to vector<2x8xf32>
    %cst_75 = arith.constant dense<0.000000e+00> : vector<2x2xf32>
    %251 = tpu.matmul %249, %250, %cst_75 {dimension_numbers = #tpu.dot_dimension_numbers<[1], [1], [0], [0], [0, 0, 1, 0], [], []>} : vector<2x8xf32>, vector<2x8xf32>, vector<2x2xf32> -> vector<2x2xf32>
    %cst_76 = arith.constant 0.353553385 : f32
    %252 = vector.broadcast %cst_76 : f32 to vector<2x2xf32>
    %253 = arith.mulf %251, %252 : vector<2x2xf32>
    %cst_77 = arith.constant dense<0xFF800000> : vector<2xf32>
    %254 = vector.multi_reduction <maximumf>, %253, %cst_77 [1] : vector<2x2xf32> to vector<2xf32>
    %255 = vector.shape_cast %254 : vector<2xf32> to vector<2x1xf32>
    %256 = vector.broadcast %255 : vector<2x1xf32> to vector<2x2xf32>
    %257 = arith.subf %253, %256 : vector<2x2xf32>
    %258 = math.exp %257 : vector<2x2xf32>
    %cst_78 = arith.constant dense<0.000000e+00> : vector<2xf32>
    %259 = vector.multi_reduction <add>, %258, %cst_78 [1] : vector<2x2xf32> to vector<2xf32>
    %260 = vector.shape_cast %259 : vector<2xf32> to vector<2x1xf32>
    %261 = vector.broadcast %260 : vector<2x1xf32> to vector<2x2xf32>
    %262 = arith.divf %258, %261 : vector<2x2xf32>
    %263 = vector.extract_strided_slice %216 {offsets = [0, 16], sizes = [2, 8], strides = [1, 1]} : vector<2x32xf32> to vector<2x8xf32>
    %cst_79 = arith.constant dense<0.000000e+00> : vector<2x8xf32>
    %264 = tpu.matmul %262, %263, %cst_79 {dimension_numbers = #tpu.dot_dimension_numbers<[1], [0], [0], [1], [0, 0, 1, 1], [], []>} : vector<2x2xf32>, vector<2x8xf32>, vector<2x8xf32> -> vector<2x8xf32>
    %265 = vector.extract_strided_slice %214 {offsets = [0, 24], sizes = [2, 8], strides = [1, 1]} : vector<2x32xf32> to vector<2x8xf32>
    %266 = vector.extract_strided_slice %215 {offsets = [0, 24], sizes = [2, 8], strides = [1, 1]} : vector<2x32xf32> to vector<2x8xf32>
    %cst_80 = arith.constant dense<0.000000e+00> : vector<2x2xf32>
    %267 = tpu.matmul %265, %266, %cst_80 {dimension_numbers = #tpu.dot_dimension_numbers<[1], [1], [0], [0], [0, 0, 1, 0], [], []>} : vector<2x8xf32>, vector<2x8xf32>, vector<2x2xf32> -> vector<2x2xf32>
    %cst_81 = arith.constant 0.353553385 : f32
    %268 = vector.broadcast %cst_81 : f32 to vector<2x2xf32>
    %269 = arith.mulf %267, %268 : vector<2x2xf32>
    %cst_82 = arith.constant dense<0xFF800000> : vector<2xf32>
    %270 = vector.multi_reduction <maximumf>, %269, %cst_82 [1] : vector<2x2xf32> to vector<2xf32>
    %271 = vector.shape_cast %270 : vector<2xf32> to vector<2x1xf32>
    %272 = vector.broadcast %271 : vector<2x1xf32> to vector<2x2xf32>
    %273 = arith.subf %269, %272 : vector<2x2xf32>
    %274 = math.exp %273 : vector<2x2xf32>
    %cst_83 = arith.constant dense<0.000000e+00> : vector<2xf32>
    %275 = vector.multi_reduction <add>, %274, %cst_83 [1] : vector<2x2xf32> to vector<2xf32>
    %276 = vector.shape_cast %275 : vector<2xf32> to vector<2x1xf32>
    %277 = vector.broadcast %276 : vector<2x1xf32> to vector<2x2xf32>
    %278 = arith.divf %274, %277 : vector<2x2xf32>
    %279 = vector.extract_strided_slice %216 {offsets = [0, 24], sizes = [2, 8], strides = [1, 1]} : vector<2x32xf32> to vector<2x8xf32>
    %cst_84 = arith.constant dense<0.000000e+00> : vector<2x8xf32>
    %280 = tpu.matmul %278, %279, %cst_84 {dimension_numbers = #tpu.dot_dimension_numbers<[1], [0], [0], [1], [0, 0, 1, 1], [], []>} : vector<2x2xf32>, vector<2x8xf32>, vector<2x8xf32> -> vector<2x8xf32>
    %281 = tpu.concatenate %232, %248, %264, %280 in 1 : vector<2x8xf32>, vector<2x8xf32>, vector<2x8xf32>, vector<2x8xf32> -> vector<2x32xf32>
    %282 = tpu.concatenate %77, %145, %213, %281 in 0 : vector<2x32xf32>, vector<2x32xf32>, vector<2x32xf32>, vector<2x32xf32> -> vector<8x32xf32>
    %283 = arith.truncf %282 : vector<8x32xf32> to vector<8x32xbf16>
    %c0_85 = arith.constant 0 : index
    %c0_86 = arith.constant 0 : index
    %284 = vector.load %arg4[%c0_85, %c0_86] : memref<32x32xbf16, #tpu.memory_space<vmem>>, vector<32x32xbf16>
    %cst_87 = arith.constant dense<0.000000e+00> : vector<8x32xf32>
    %285 = tpu.matmul %283, %284, %cst_87 {dimension_numbers = #tpu.dot_dimension_numbers<[1], [0], [0], [1], [0, 0, 1, 1], [], []>} : vector<8x32xbf16>, vector<32x32xbf16>, vector<8x32xf32> -> vector<8x32xf32>
    %c0_88 = arith.constant 0 : index
    %c0_89 = arith.constant 0 : index
    %286 = vector.load %arg5[%c0_88, %c0_89] : memref<1x32xf32, #tpu.memory_space<vmem>>, vector<1x32xf32>
    %287 = vector.broadcast %286 : vector<1x32xf32> to vector<8x32xf32>
    %288 = arith.addf %285, %287 : vector<8x32xf32>
    %289 = arith.addf %0, %288 : vector<8x32xf32>
    %c0_90 = arith.constant 0 : index
    %c0_91 = arith.constant 0 : index
    %290 = vector.load %arg6[%c0_90, %c0_91] : memref<1x32xf32, #tpu.memory_space<vmem>>, vector<1x32xf32>
    %c0_92 = arith.constant 0 : index
    %c0_93 = arith.constant 0 : index
    %291 = vector.load %arg7[%c0_92, %c0_93] : memref<1x32xf32, #tpu.memory_space<vmem>>, vector<1x32xf32>
    %cst_94 = arith.constant dense<0.000000e+00> : vector<8xf32>
    %292 = vector.multi_reduction <add>, %289, %cst_94 [1] : vector<8x32xf32> to vector<8xf32>
    %293 = vector.shape_cast %292 : vector<8xf32> to vector<8x1xf32>
    %cst_95 = arith.constant 3.200000e+01 : f32
    %294 = vector.broadcast %cst_95 : f32 to vector<8x1xf32>
    %295 = arith.divf %293, %294 : vector<8x1xf32>
    %296 = vector.broadcast %295 : vector<8x1xf32> to vector<8x32xf32>
    %297 = arith.subf %289, %296 : vector<8x32xf32>
    %298 = arith.mulf %297, %297 : vector<8x32xf32>
    %cst_96 = arith.constant dense<0.000000e+00> : vector<8xf32>
    %299 = vector.multi_reduction <add>, %298, %cst_96 [1] : vector<8x32xf32> to vector<8xf32>
    %300 = vector.shape_cast %299 : vector<8xf32> to vector<8x1xf32>
    %cst_97 = arith.constant 3.200000e+01 : f32
    %301 = vector.broadcast %cst_97 : f32 to vector<8x1xf32>
    %302 = arith.divf %300, %301 : vector<8x1xf32>
    %303 = vector.broadcast %295 : vector<8x1xf32> to vector<8x32xf32>
    %304 = arith.subf %289, %303 : vector<8x32xf32>
    %cst_98 = arith.constant 9.99999974E-6 : f32
    %305 = vector.broadcast %cst_98 : f32 to vector<8x1xf32>
    %306 = arith.addf %302, %305 : vector<8x1xf32>
    %307 = math.rsqrt %306 : vector<8x1xf32>
    %308 = vector.broadcast %307 : vector<8x1xf32> to vector<8x32xf32>
    %309 = arith.mulf %304, %308 : vector<8x32xf32>
    %310 = vector.broadcast %290 : vector<1x32xf32> to vector<8x32xf32>
    %311 = arith.mulf %309, %310 : vector<8x32xf32>
    %312 = vector.broadcast %291 : vector<1x32xf32> to vector<8x32xf32>
    %313 = arith.addf %311, %312 : vector<8x32xf32>
    %314 = arith.truncf %313 : vector<8x32xf32> to vector<8x32xbf16>
    %c0_99 = arith.constant 0 : index
    %c0_100 = arith.constant 0 : index
    %315 = vector.load %arg8[%c0_99, %c0_100] : memref<32x128xbf16, #tpu.memory_space<vmem>>, vector<32x128xbf16>
    %cst_101 = arith.constant dense<0.000000e+00> : vector<8x128xf32>
    %316 = tpu.matmul %314, %315, %cst_101 {dimension_numbers = #tpu.dot_dimension_numbers<[1], [0], [0], [1], [0, 0, 1, 1], [], []>} : vector<8x32xbf16>, vector<32x128xbf16>, vector<8x128xf32> -> vector<8x128xf32>
    %c0_102 = arith.constant 0 : index
    %c0_103 = arith.constant 0 : index
    %317 = vector.load %arg9[%c0_102, %c0_103] : memref<1x128xf32, #tpu.memory_space<vmem>>, vector<1x128xf32>
    %318 = vector.broadcast %317 : vector<1x128xf32> to vector<8x128xf32>
    %319 = arith.addf %316, %318 : vector<8x128xf32>
    %cst_104 = arith.constant 0.000000e+00 : f32
    %320 = vector.broadcast %cst_104 : f32 to vector<8x128xf32>
    %321 = arith.maximumf %319, %320 : vector<8x128xf32>
    %322 = arith.truncf %321 : vector<8x128xf32> to vector<8x128xbf16>
    %c0_105 = arith.constant 0 : index
    %c0_106 = arith.constant 0 : index
    %323 = vector.load %arg10[%c0_105, %c0_106] : memref<128x32xbf16, #tpu.memory_space<vmem>>, vector<128x32xbf16>
    %cst_107 = arith.constant dense<0.000000e+00> : vector<8x32xf32>
    %324 = tpu.matmul %322, %323, %cst_107 {dimension_numbers = #tpu.dot_dimension_numbers<[1], [0], [0], [1], [0, 0, 1, 1], [], []>} : vector<8x128xbf16>, vector<128x32xbf16>, vector<8x32xf32> -> vector<8x32xf32>
    %c0_108 = arith.constant 0 : index
    %c0_109 = arith.constant 0 : index
    %325 = vector.load %arg11[%c0_108, %c0_109] : memref<1x32xf32, #tpu.memory_space<vmem>>, vector<1x32xf32>
    %326 = vector.broadcast %325 : vector<1x32xf32> to vector<8x32xf32>
    %327 = arith.addf %324, %326 : vector<8x32xf32>
    %328 = arith.addf %313, %327 : vector<8x32xf32>
    %c0_110 = arith.constant 0 : index
    %c0_111 = arith.constant 0 : index
    %329 = vector.load %arg12[%c0_110, %c0_111] : memref<1x32xf32, #tpu.memory_space<vmem>>, vector<1x32xf32>
    %c0_112 = arith.constant 0 : index
    %c0_113 = arith.constant 0 : index
    %330 = vector.load %arg13[%c0_112, %c0_113] : memref<1x32xf32, #tpu.memory_space<vmem>>, vector<1x32xf32>
    %cst_114 = arith.constant dense<0.000000e+00> : vector<8xf32>
    %331 = vector.multi_reduction <add>, %328, %cst_114 [1] : vector<8x32xf32> to vector<8xf32>
    %332 = vector.shape_cast %331 : vector<8xf32> to vector<8x1xf32>
    %cst_115 = arith.constant 3.200000e+01 : f32
    %333 = vector.broadcast %cst_115 : f32 to vector<8x1xf32>
    %334 = arith.divf %332, %333 : vector<8x1xf32>
    %335 = vector.broadcast %334 : vector<8x1xf32> to vector<8x32xf32>
    %336 = arith.subf %328, %335 : vector<8x32xf32>
    %337 = arith.mulf %336, %336 : vector<8x32xf32>
    %cst_116 = arith.constant dense<0.000000e+00> : vector<8xf32>
    %338 = vector.multi_reduction <add>, %337, %cst_116 [1] : vector<8x32xf32> to vector<8xf32>
    %339 = vector.shape_cast %338 : vector<8xf32> to vector<8x1xf32>
    %cst_117 = arith.constant 3.200000e+01 : f32
    %340 = vector.broadcast %cst_117 : f32 to vector<8x1xf32>
    %341 = arith.divf %339, %340 : vector<8x1xf32>
    %342 = vector.broadcast %334 : vector<8x1xf32> to vector<8x32xf32>
    %343 = arith.subf %328, %342 : vector<8x32xf32>
    %cst_118 = arith.constant 9.99999974E-6 : f32
    %344 = vector.broadcast %cst_118 : f32 to vector<8x1xf32>
    %345 = arith.addf %341, %344 : vector<8x1xf32>
    %346 = math.rsqrt %345 : vector<8x1xf32>
    %347 = vector.broadcast %346 : vector<8x1xf32> to vector<8x32xf32>
    %348 = arith.mulf %343, %347 : vector<8x32xf32>
    %349 = vector.broadcast %329 : vector<1x32xf32> to vector<8x32xf32>
    %350 = arith.mulf %348, %349 : vector<8x32xf32>
    %351 = vector.broadcast %330 : vector<1x32xf32> to vector<8x32xf32>
    %352 = arith.addf %350, %351 : vector<8x32xf32>
    %353 = vector.extract_strided_slice %352 {offsets = [0, 0], sizes = [2, 32], strides = [1, 1]} : vector<8x32xf32> to vector<2x32xf32>
    %354 = vector.extract_strided_slice %352 {offsets = [2, 0], sizes = [2, 32], strides = [1, 1]} : vector<8x32xf32> to vector<2x32xf32>
    %355 = arith.addf %353, %354 : vector<2x32xf32>
    %356 = vector.extract_strided_slice %352 {offsets = [4, 0], sizes = [2, 32], strides = [1, 1]} : vector<8x32xf32> to vector<2x32xf32>
    %357 = arith.addf %355, %356 : vector<2x32xf32>
    %358 = vector.extract_strided_slice %352 {offsets = [6, 0], sizes = [2, 32], strides = [1, 1]} : vector<8x32xf32> to vector<2x32xf32>
    %359 = arith.addf %357, %358 : vector<2x32xf32>
    %cst_119 = arith.constant 2.500000e-01 : f32
    %360 = vector.broadcast %cst_119 : f32 to vector<2x32xf32>
    %361 = arith.mulf %359, %360 : vector<2x32xf32>
    %362 = arith.truncf %361 : vector<2x32xf32> to vector<2x32xbf16>
    %c0_120 = arith.constant 0 : index
    %c0_121 = arith.constant 0 : index
    %363 = vector.load %arg14[%c0_120, %c0_121] : memref<32x64xbf16, #tpu.memory_space<vmem>>, vector<32x64xbf16>
    %cst_122 = arith.constant dense<0.000000e+00> : vector<2x64xf32>
    %364 = tpu.matmul %362, %363, %cst_122 {dimension_numbers = #tpu.dot_dimension_numbers<[1], [0], [0], [1], [0, 0, 1, 1], [], []>} : vector<2x32xbf16>, vector<32x64xbf16>, vector<2x64xf32> -> vector<2x64xf32>
    %c0_123 = arith.constant 0 : index
    %c0_124 = arith.constant 0 : index
    %365 = vector.load %arg15[%c0_123, %c0_124] : memref<1x64xf32, #tpu.memory_space<vmem>>, vector<1x64xf32>
    %366 = vector.broadcast %365 : vector<1x64xf32> to vector<2x64xf32>
    %367 = arith.addf %364, %366 : vector<2x64xf32>
    %cst_125 = arith.constant 0.000000e+00 : f32
    %368 = vector.broadcast %cst_125 : f32 to vector<2x64xf32>
    %369 = arith.maximumf %367, %368 : vector<2x64xf32>
    %370 = arith.truncf %369 : vector<2x64xf32> to vector<2x64xbf16>
    %c0_126 = arith.constant 0 : index
    %c0_127 = arith.constant 0 : index
    %371 = vector.load %arg16[%c0_126, %c0_127] : memref<64x128xbf16, #tpu.memory_space<vmem>>, vector<64x128xbf16>
    %cst_128 = arith.constant dense<0.000000e+00> : vector<2x128xf32>
    %372 = tpu.matmul %370, %371, %cst_128 {dimension_numbers = #tpu.dot_dimension_numbers<[1], [0], [0], [1], [0, 0, 1, 1], [], []>} : vector<2x64xbf16>, vector<64x128xbf16>, vector<2x128xf32> -> vector<2x128xf32>
    %c0_129 = arith.constant 0 : index
    %c0_130 = arith.constant 0 : index
    %373 = vector.load %arg17[%c0_129, %c0_130] : memref<1x128xf32, #tpu.memory_space<vmem>>, vector<1x128xf32>
    %374 = vector.broadcast %373 : vector<1x128xf32> to vector<2x128xf32>
    %375 = arith.addf %372, %374 : vector<2x128xf32>
    %c0_131 = arith.constant 0 : index
    %c0_132 = arith.constant 0 : index
    %376 = vector.load %arg18[%c0_131, %c0_132] : memref<2x128xf32, #tpu.memory_space<vmem>>, vector<2x128xf32>
    tpu.vector_store %arg18[%c0_131, %c0_132], %375 {strides = array<i32>} : memref<2x128xf32, #tpu.memory_space<vmem>>, vector<2x128xf32>,
    return
  }
  func.func @transform_0(%arg0: i32) -> (i32, i32) {
    %c0_i32 = arith.constant 0 : i32
    %c0_i32_0 = arith.constant 0 : i32
    %c0_i32_1 = arith.constant 0 : i32
    return %c0_i32, %c0_i32_0 : i32, i32
  }
  func.func @transform_1(%arg0: i32) -> (i32, i32) {
    %c0_i32 = arith.constant 0 : i32
    %c0_i32_0 = arith.constant 0 : i32
    %c0_i32_1 = arith.constant 0 : i32
    return %c0_i32, %c0_i32_0 : i32, i32
  }
  func.func @transform_2(%arg0: i32) -> (i32, i32) {
    %c0_i32 = arith.constant 0 : i32
    %c0_i32_0 = arith.constant 0 : i32
    %c0_i32_1 = arith.constant 0 : i32
    return %c0_i32, %c0_i32_0 : i32, i32
  }
  func.func @transform_3(%arg0: i32) -> (i32, i32) {
    %c0_i32 = arith.constant 0 : i32
    %c0_i32_0 = arith.constant 0 : i32
    %c0_i32_1 = arith.constant 0 : i32
    return %c0_i32, %c0_i32_0 : i32, i32
  }
  func.func @transform_4(%arg0: i32) -> (i32, i32) {
    %c0_i32 = arith.constant 0 : i32
    %c0_i32_0 = arith.constant 0 : i32
    %c0_i32_1 = arith.constant 0 : i32
    return %c0_i32, %c0_i32_0 : i32, i32
  }
  func.func @transform_5(%arg0: i32) -> (i32, i32) {
    %c0_i32 = arith.constant 0 : i32
    %c0_i32_0 = arith.constant 0 : i32
    %c0_i32_1 = arith.constant 0 : i32
    return %c0_i32, %c0_i32_0 : i32, i32
  }
  func.func @transform_6(%arg0: i32) -> (i32, i32) {
    %c0_i32 = arith.constant 0 : i32
    %c0_i32_0 = arith.constant 0 : i32
    %c0_i32_1 = arith.constant 0 : i32
    return %c0_i32, %c0_i32_0 : i32, i32
  }
  func.func @transform_7(%arg0: i32) -> (i32, i32) {
    %c0_i32 = arith.constant 0 : i32
    %c0_i32_0 = arith.constant 0 : i32
    %c0_i32_1 = arith.constant 0 : i32
    return %c0_i32, %c0_i32_0 : i32, i32
  }
  func.func @transform_8(%arg0: i32) -> (i32, i32) {
    %c0_i32 = arith.constant 0 : i32
    %c0_i32_0 = arith.constant 0 : i32
    %c0_i32_1 = arith.constant 0 : i32
    return %c0_i32, %c0_i32_0 : i32, i32
  }
  func.func @transform_9(%arg0: i32) -> (i32, i32) {
    %c0_i32 = arith.constant 0 : i32
    %c0_i32_0 = arith.constant 0 : i32
    %c0_i32_1 = arith.constant 0 : i32
    return %c0_i32, %c0_i32_0 : i32, i32
  }
  func.func @transform_10(%arg0: i32) -> (i32, i32) {
    %c0_i32 = arith.constant 0 : i32
    %c0_i32_0 = arith.constant 0 : i32
    %c0_i32_1 = arith.constant 0 : i32
    return %c0_i32, %c0_i32_0 : i32, i32
  }
  func.func @transform_11(%arg0: i32) -> (i32, i32) {
    %c0_i32 = arith.constant 0 : i32
    %c0_i32_0 = arith.constant 0 : i32
    %c0_i32_1 = arith.constant 0 : i32
    return %c0_i32, %c0_i32_0 : i32, i32
  }
  func.func @transform_12(%arg0: i32) -> (i32, i32) {
    %c0_i32 = arith.constant 0 : i32
    %c0_i32_0 = arith.constant 0 : i32
    %c0_i32_1 = arith.constant 0 : i32
    return %c0_i32, %c0_i32_0 : i32, i32
  }
  func.func @transform_13(%arg0: i32) -> (i32, i32) {
    %c0_i32 = arith.constant 0 : i32
    %c0_i32_0 = arith.constant 0 : i32
    %c0_i32_1 = arith.constant 0 : i32
    return %c0_i32, %c0_i32_0 : i32, i32
  }
  func.func @transform_14(%arg0: i32) -> (i32, i32) {
    %c0_i32 = arith.constant 0 : i32
    %c0_i32_0 = arith.constant 0 : i32
    %c0_i32_1 = arith.constant 0 : i32
    return %c0_i32, %c0_i32_0 : i32, i32
  }
  func.func @transform_15(%arg0: i32) -> (i32, i32) {
    %c0_i32 = arith.constant 0 : i32
    %c0_i32_0 = arith.constant 0 : i32
    %c0_i32_1 = arith.constant 0 : i32
    return %c0_i32, %c0_i32_0 : i32, i32
  }
  func.func @transform_16(%arg0: i32) -> (i32, i32) {
    %c0_i32 = arith.constant 0 : i32
    %c0_i32_0 = arith.constant 0 : i32
    %c0_i32_1 = arith.constant 0 : i32
    return %c0_i32, %c0_i32_0 : i32, i32
  }
  func.func @transform_17(%arg0: i32) -> (i32, i32) {
    %c0_i32 = arith.constant 0 : i32
    %c0_i32_0 = arith.constant 0 : i32
    %c0_i32_1 = arith.constant 0 : i32
    return %c0_i32, %c0_i32_0 : i32, i32
  }
}

</mosaic_0001>

<llo_original>
// kernel: roi_encoder_forward.2
$region0: #{roi_encoder_forward.2}
  #allocation0 [shape = 'u32[]', space=smem, size = 0x4, offset = 0x4, fixed_abs, tag = 'smem constant byte address 0x4 - core index']
  #allocation1 [shape = 'u32[144,128]{1,0:T(1,128)}', space=vmem, size = 0x12000, scoped, tag = 'internal scratch']
  %s0 = inlined_call_operand.vmem [shape: f32[8,8,32], index: 0, kind: input, shape index: {}]
  %s1 = inlined_call_operand.vmem [shape: bf16[3,32,64], index: 1, kind: input, shape index: {}]
  %s2 = inlined_call_operand.vmem [shape: f32[1,64], index: 2, kind: input, shape index: {}]
  %s3 = inlined_call_operand.vmem [shape: bf16[8,64,32], index: 3, kind: input, shape index: {}]
  %s4 = inlined_call_operand.vmem [shape: f32[1,32], index: 4, kind: input, shape index: {}]
  %s5 = inlined_call_operand.vmem [shape: f32[8,32], index: 5, kind: output, shape index: {}]
  %s6 = sld [smem:[#allocation0]]
  $region30: #{roi_encoder_forward.2} parent=0
    _
  %s8 = ssub.s32 1, %s6
  %s9 = scalar_select 0, %s8, %s6
  // Predicated region
  $region2: #{roi_encoder_forward.2} parent=0 // pred_check
    _
  $region3: #{roi_encoder_forward.2} parent=0 // pred_check_branch
    %11 = sbr.rel (0) target = $region5
  $region4: #{roi_encoder_forward.2} parent=0 // pred_region
    _
  $region5: #{roi_encoder_forward.2} parent=0 // pred_fallthru
    _
  // Predicated region
  $region6: #{roi_encoder_forward.2} parent=0 // pred_check
    _
  $region7: #{roi_encoder_forward.2} parent=0 // pred_check_branch
    %13 = sbr.rel (0) target = $region9
  $region8: #{roi_encoder_forward.2} parent=0 // pred_region
    _
  $region9: #{roi_encoder_forward.2} parent=0 // pred_fallthru
    _
  // Predicated region
  $region10: #{roi_encoder_forward.2} parent=0 // pred_check
    _
  $region11: #{roi_encoder_forward.2} parent=0 // pred_check_branch
    %15 = sbr.rel (0) target = $region13
  $region12: #{roi_encoder_forward.2} parent=0 // pred_region
    _
  $region13: #{roi_encoder_forward.2} parent=0 // pred_fallthru
    _
  // Predicated region
  $region14: #{roi_encoder_forward.2} parent=0 // pred_check
    _
  $region15: #{roi_encoder_forward.2} parent=0 // pred_check_branch
    %17 = sbr.rel (0) target = $region17
  $region16: #{roi_encoder_forward.2} parent=0 // pred_region
    _
  $region17: #{roi_encoder_forward.2} parent=0 // pred_fallthru
    _
  // Predicated region
  $region18: #{roi_encoder_forward.2} parent=0 // pred_check
    _
  $region19: #{roi_encoder_forward.2} parent=0 // pred_check_branch
    %19 = sbr.rel (0) target = $region21
  $region20: #{roi_encoder_forward.2} parent=0 // pred_region
    _
  $region21: #{roi_encoder_forward.2} parent=0 // pred_fallthru
    _
  %v21 = vld [vmem:[%s0] sm:$0xff]
  %v22 = vld [vmem:[%s0 + $0x8] sm:$0xff]
  %v23 = vld [vmem:[%s0 + $0x10] sm:$0xff]
  %v24 = vld [vmem:[%s0 + $0x18] sm:$0xff]
  %v25 = vld [vmem:[%s0 + $0x20] sm:$0xff]
  %v26 = vld [vmem:[%s0 + $0x28] sm:$0xff]
  %v27 = vld [vmem:[%s0 + $0x30] sm:$0xff]
  %v28 = vld [vmem:[%s0 + $0x38] sm:$0xff]
  %v29 = vpack.c.bf16 %v21, %v21
  %v30 = vpack.c.bf16 %v22, %v22
  %v31 = vpack.c.bf16 %v23, %v23
  %v32 = vpack.c.bf16 %v24, %v24
  %v33 = vpack.c.bf16 %v25, %v25
  %v34 = vpack.c.bf16 %v26, %v26
  %v35 = vpack.c.bf16 %v27, %v27
  %v36 = vpack.c.bf16 %v28, %v28
  %v37 = vld [vmem:[%s1] sm:$0xf]
  %v38 = vld [vmem:[%s1 + $0x4] sm:$0xf]
  %v39 = vld [vmem:[%s1 + $0x8] sm:$0xf]
  %v40 = vld [vmem:[%s1 + $0xc] sm:$0xf]
  %s41 = scalar_lea.vmem %s1, 16
  %v42 = vld [vmem:[%s41] sm:$0xf]
  %v43 = vld [vmem:[%s41 + $0x4] sm:$0xf]
  %v44 = vld [vmem:[%s41 + $0x8] sm:$0xf]
  %v45 = vld [vmem:[%s41 + $0xc] sm:$0xf]
  %v54 = vunpack.c.l.b16 %v29
  %v55 = vunpack.c.l.b16 %v30
  %v56 = vunpack.c.l.b16 %v31
  %v57 = vunpack.c.l.b16 %v32
  %v58 = vunpack.c.l.b16 %v33
  %v59 = vunpack.c.l.b16 %v34
  %v60 = vunpack.c.l.b16 %v35
  %v61 = vunpack.c.l.b16 %v36
  %v62 = vpack.c.b16 %v55, %v54
  %v63 = vpack.c.b16 %v57, %v56
  %v64 = vpack.c.b16 %v59, %v58
  %v65 = vpack.c.b16 %v61, %v60
  %v70 = vunpack.c.l.b16 %v42
  %v71 = vunpack.c.l.b16 %v43
  %v72 = vunpack.c.l.b16 %v44
  %v73 = vunpack.c.l.b16 %v45
  %v74 = vpack.c.b16 %v71, %v70
  %v75 = vpack.c.b16 %v73, %v72
  %vm78 = vcmask 261120
  %v80 = vsel %vm78, %v62, 0
  %v83 = vsel %vm78, %v63, 0
  %v86 = vsel %vm78, %v64, 0
  %v89 = vsel %vm78, %v65, 0
  %91 = vmatprep.subr.bf16.mxu0 0
  %92 = vmatpush1.bf16.msra.mxu0 0
  %93 = vmatprep.subr.bf16.mxu0 0
  %94 = vmatpush1.bf16.msra.mxu0 0
  %95 = vmatprep.subr.bf16.mxu0 0
  %96 = vmatpush1.bf16.msra.mxu0 0
  %97 = vmatprep.subr.bf16.mxu0 0
  %98 = vmatpush1.bf16.msra.mxu0 0
  %99 = vmatprep.subr.bf16.mxu0 0
  %100 = vmatpush1.bf16.msra.mxu0 0
  %101 = vmatprep.subr.bf16.mxu0 0
  %102 = vmatpush1.bf16.msra.mxu0 0
  %103 = vmatprep.subr.bf16.mxu0 0
  %104 = vmatpush1.bf16.msra.mxu0 %v75
  %105 = vmatprep.subr.bf16.mxu0 0
  %106 = vmatpush1.bf16.msra.mxu0 %v74
  %107 = vmatprep.subr.bf16.mxu0 0
  %108 = vmatpush2.bf16.msra.mxu0 0
  %109 = vmatprep.subr.bf16.mxu0 0
  %110 = vmatpush2.bf16.msra.mxu0 0
  %111 = vmatprep.subr.bf16.mxu0 0
  %112 = vmatpush2.bf16.msra.mxu0 0
  %113 = vmatprep.subr.bf16.mxu0 0
  %114 = vmatpush2.bf16.msra.mxu0 0
  %115 = vmatprep.subr.bf16.mxu0 0
  %116 = vmatpush2.bf16.msra.mxu0 0
  %117 = vmatprep.subr.bf16.mxu0 0
  %118 = vmatpush2.bf16.msra.mxu0 0
  %119 = vmatprep.subr.bf16.mxu0 0
  %120 = vmatpush2.bf16.msra.mxu0 0
  %121 = vmatprep.subr.bf16.mxu0 0
  %122 = vmatpush2.bf16.msra.mxu0 0
  %123 = vmatprep.mubr.bf16.mxu0 0
  %124 = vmatmul.mubr.bf16.gmra.mxu0 %v80
  %v125 = vpop.f32.mrf.mxu0
  %v126 = vadd.f32 0.0, %v125
  %v127 = vpop.f32.mrf.mxu0
  %v128 = vpop.f32.mrf.mxu0
  %v129 = vadd.f32 0.0, %v128
  %v130 = vpop.f32.mrf.mxu0
  %131 = vmatprep.mubr.bf16.mxu0 0
  %132 = vmatmul.mubr.bf16.gmra.mxu0 %v83
  %v133 = vpop.f32.mrf.mxu0
  %v134 = vadd.f32 0.0, %v133
  %v135 = vpop.f32.mrf.mxu0
  %v136 = vpop.f32.mrf.mxu0
  %v137 = vadd.f32 0.0, %v136
  %v138 = vpop.f32.mrf.mxu0
  %139 = vmatprep.mubr.bf16.mxu0 0
  %140 = vmatmul.mubr.bf16.gmra.mxu0 %v86
  %v141 = vpop.f32.mrf.mxu0
  %v142 = vadd.f32 0.0, %v141
  %v143 = vpop.f32.mrf.mxu0
  %v144 = vpop.f32.mrf.mxu0
  %v145 = vadd.f32 0.0, %v144
  %v146 = vpop.f32.mrf.mxu0
  %147 = vmatprep.mubr.bf16.mxu0 0
  %148 = vmatmul.mubr.bf16.gmra.mxu0 %v89
  %v149 = vpop.f32.mrf.mxu0
  %v150 = vadd.f32 0.0, %v149
  %v151 = vpop.f32.mrf.mxu0
  %v152 = vpop.f32.mrf.mxu0
  %v153 = vadd.f32 0.0, %v152
  %v154 = vpop.f32.mrf.mxu0
  %155 = vdwg.mxu0
  %v157 = vunpack.c.l.b16 0
  %v158 = vpack.c.b16 %v54, %v157
  %v159 = vpack.c.b16 %v56, %v55
  %v160 = vpack.c.b16 %v58, %v57
  %v161 = vpack.c.b16 %v60, %v59
  %v166 = vunpack.c.l.b16 %v37
  %v167 = vunpack.c.l.b16 %v38
  %v168 = vunpack.c.l.b16 %v39
  %v169 = vunpack.c.l.b16 %v40
  %v170 = vpack.c.b16 %v167, %v166
  %v171 = vpack.c.b16 %v169, %v168
  %v175 = vsel %vm78, %v158, 0
  %v178 = vsel %vm78, %v159, 0
  %v181 = vsel %vm78, %v160, 0
  %v184 = vsel %vm78, %v161, 0
  %186 = vmatprep.subr.bf16.mxu0 0
  %187 = vmatpush1.bf16.msra.mxu0 0
  %188 = vmatprep.subr.bf16.mxu0 0
  %189 = vmatpush1.bf16.msra.mxu0 0
  %190 = vmatprep.subr.bf16.mxu0 0
  %191 = vmatpush1.bf16.msra.mxu0 0
  %192 = vmatprep.subr.bf16.mxu0 0
  %193 = vmatpush1.bf16.msra.mxu0 0
  %194 = vmatprep.subr.bf16.mxu0 0
  %195 = vmatpush1.bf16.msra.mxu0 0
  %196 = vmatprep.subr.bf16.mxu0 0
  %197 = vmatpush1.bf16.msra.mxu0 0
  %198 = vmatprep.subr.bf16.mxu0 0
  %199 = vmatpush1.bf16.msra.mxu0 %v171
  %200 = vmatprep.subr.bf16.mxu0 0
  %201 = vmatpush1.bf16.msra.mxu0 %v170
  %202 = vmatprep.subr.bf16.mxu0 0
  %203 = vmatpush2.bf16.msra.mxu0 0
  %204 = vmatprep.subr.bf16.mxu0 0
  %205 = vmatpush2.bf16.msra.mxu0 0
  %206 = vmatprep.subr.bf16.mxu0 0
  %207 = vmatpush2.bf16.msra.mxu0 0
  %208 = vmatprep.subr.bf16.mxu0 0
  %209 = vmatpush2.bf16.msra.mxu0 0
  %210 = vmatprep.subr.bf16.mxu0 0
  %211 = vmatpush2.bf16.msra.mxu0 0
  %212 = vmatprep.subr.bf16.mxu0 0
  %213 = vmatpush2.bf16.msra.mxu0 0
  %214 = vmatprep.subr.bf16.mxu0 0
  %215 = vmatpush2.bf16.msra.mxu0 0
  %216 = vmatprep.subr.bf16.mxu0 0
  %217 = vmatpush2.bf16.msra.mxu0 0
  %218 = vmatprep.mubr.bf16.mxu0 0
  %219 = vmatmul.mubr.bf16.gmra.mxu0 %v175
  %v220 = vpop.f32.mrf.mxu0
  %v221 = vadd.f32 %v126, %v220
  %v222 = vpop.f32.mrf.mxu0
  %v223 = vpop.f32.mrf.mxu0
  %v224 = vadd.f32 %v129, %v223
  %v225 = vpop.f32.mrf.mxu0
  %226 = vmatprep.mubr.bf16.mxu0 0
  %227 = vmatmul.mubr.bf16.gmra.mxu0 %v178
  %v228 = vpop.f32.mrf.mxu0
  %v229 = vadd.f32 %v134, %v228
  %v230 = vpop.f32.mrf.mxu0
  %v231 = vpop.f32.mrf.mxu0
  %v232 = vadd.f32 %v137, %v231
  %v233 = vpop.f32.mrf.mxu0
  %234 = vmatprep.mubr.bf16.mxu0 0
  %235 = vmatmul.mubr.bf16.gmra.mxu0 %v181
  %v236 = vpop.f32.mrf.mxu0
  %v237 = vadd.f32 %v142, %v236
  %v238 = vpop.f32.mrf.mxu0
  %v239 = vpop.f32.mrf.mxu0
  %v240 = vadd.f32 %v145, %v239
  %v241 = vpop.f32.mrf.mxu0
  %242 = vmatprep.mubr.bf16.mxu0 0
  %243 = vmatmul.mubr.bf16.gmra.mxu0 %v184
  %v244 = vpop.f32.mrf.mxu0
  %v245 = vadd.f32 %v150, %v244
  %v246 = vpop.f32.mrf.mxu0
  %v247 = vpop.f32.mrf.mxu0
  %v248 = vadd.f32 %v153, %v247
  %v249 = vpop.f32.mrf.mxu0
  %250 = vdwg.mxu0
  %s251 = scalar_lea.vmem %s1, 32
  %v252 = vld [vmem:[%s251] sm:$0xf]
  %v253 = vld [vmem:[%s251 + $0x4] sm:$0xf]
  %v254 = vld [vmem:[%s251 + $0x8] sm:$0xf]
  %v255 = vld [vmem:[%s251 + $0xc] sm:$0xf]
  %v256 = vpack.c.b16 %v157, %v61
  %v261 = vunpack.c.l.b16 %v252
  %v262 = vunpack.c.l.b16 %v253
  %v263 = vunpack.c.l.b16 %v254
  %v264 = vunpack.c.l.b16 %v255
  %v265 = vpack.c.b16 %v262, %v261
  %v266 = vpack.c.b16 %v264, %v263
  %v270 = vsel %vm78, %v256, 0
  %272 = vmatprep.subr.bf16.mxu0 0
  %273 = vmatpush1.bf16.msra.mxu0 0
  %274 = vmatprep.subr.bf16.mxu0 0
  %275 = vmatpush1.bf16.msra.mxu0 0
  %276 = vmatprep.subr.bf16.mxu0 0
  %277 = vmatpush1.bf16.msra.mxu0 0
  %278 = vmatprep.subr.bf16.mxu0 0
  %279 = vmatpush1.bf16.msra.mxu0 0
  %280 = vmatprep.subr.bf16.mxu0 0
  %281 = vmatpush1.bf16.msra.mxu0 0
  %282 = vmatprep.subr.bf16.mxu0 0
  %283 = vmatpush1.bf16.msra.mxu0 0
  %284 = vmatprep.subr.bf16.mxu0 0
  %285 = vmatpush1.bf16.msra.mxu0 %v266
  %286 = vmatprep.subr.bf16.mxu0 0
  %287 = vmatpush1.bf16.msra.mxu0 %v265
  %288 = vmatprep.subr.bf16.mxu0 0
  %289 = vmatpush2.bf16.msra.mxu0 0
  %290 = vmatprep.subr.bf16.mxu0 0
  %291 = vmatpush2.bf16.msra.mxu0 0
  %292 = vmatprep.subr.bf16.mxu0 0
  %293 = vmatpush2.bf16.msra.mxu0 0
  %294 = vmatprep.subr.bf16.mxu0 0
  %295 = vmatpush2.bf16.msra.mxu0 0
  %296 = vmatprep.subr.bf16.mxu0 0
  %297 = vmatpush2.bf16.msra.mxu0 0
  %298 = vmatprep.subr.bf16.mxu0 0
  %299 = vmatpush2.bf16.msra.mxu0 0
  %300 = vmatprep.subr.bf16.mxu0 0
  %301 = vmatpush2.bf16.msra.mxu0 0
  %302 = vmatprep.subr.bf16.mxu0 0
  %303 = vmatpush2.bf16.msra.mxu0 0
  %304 = vmatprep.mubr.bf16.mxu0 0
  %305 = vmatmul.mubr.bf16.gmra.mxu0 %v178
  %v306 = vpop.f32.mrf.mxu0
  %v307 = vadd.f32 0.0, %v306
  %v308 = vpop.f32.mrf.mxu0
  %v309 = vpop.f32.mrf.mxu0
  %v310 = vadd.f32 0.0, %v309
  %v311 = vpop.f32.mrf.mxu0
  %312 = vmatprep.mubr.bf16.mxu0 0
  %313 = vmatmul.mubr.bf16.gmra.mxu0 %v181
  %v314 = vpop.f32.mrf.mxu0
  %v315 = vadd.f32 0.0, %v314
  %v316 = vpop.f32.mrf.mxu0
  %v317 = vpop.f32.mrf.mxu0
  %v318 = vadd.f32 0.0, %v317
  %v319 = vpop.f32.mrf.mxu0
  %320 = vmatprep.mubr.bf16.mxu0 0
  %321 = vmatmul.mubr.bf16.gmra.mxu0 %v184
  %v322 = vpop.f32.mrf.mxu0
  %v323 = vadd.f32 0.0, %v322
  %v324 = vpop.f32.mrf.mxu0
  %v325 = vpop.f32.mrf.mxu0
  %v326 = vadd.f32 0.0, %v325
  %v327 = vpop.f32.mrf.mxu0
  %328 = vmatprep.mubr.bf16.mxu0 0
  %329 = vmatmul.mubr.bf16.gmra.mxu0 %v270
  %v330 = vpop.f32.mrf.mxu0
  %v331 = vadd.f32 0.0, %v330
  %v332 = vpop.f32.mrf.mxu0
  %v333 = vpop.f32.mrf.mxu0
  %v334 = vadd.f32 0.0, %v333
  %v335 = vpop.f32.mrf.mxu0
  %336 = vdwg.mxu0
  %v337 = vadd.f32 %v221, %v307
  %v338 = vadd.f32 %v224, %v310
  %v339 = vadd.f32 %v229, %v315
  %v340 = vadd.f32 %v232, %v318
  %v341 = vadd.f32 %v237, %v323
  %v342 = vadd.f32 %v240, %v326
  %v343 = vadd.f32 %v245, %v331
  %v344 = vadd.f32 %v248, %v334
  %v345 = vld [vmem:[%s2] sm:$0x1]
  %v347 = vlaneseq
  %v348 = vshrl.u32 %v347, 7
  %v349 = vsub.s32 0, %v348
  %v350 = vrot.slane %v345, %v349
  %v352 = vadd.f32 %v337, %v350
  %v353 = vadd.f32 %v338, %v350
  %v354 = vadd.f32 %v339, %v350
  %v355 = vadd.f32 %v340, %v350
  %v356 = vadd.f32 %v341, %v350
  %v357 = vadd.f32 %v342, %v350
  %v358 = vadd.f32 %v343, %v350
  %v359 = vadd.f32 %v344, %v350
  %v360 = vmax.f32 %v352, 0.0
  %v361 = vmax.f32 %v353, 0.0
  %v362 = vmax.f32 %v354, 0.0
  %v363 = vmax.f32 %v355, 0.0
  %v364 = vmax.f32 %v356, 0.0
  %v365 = vmax.f32 %v357, 0.0
  %v366 = vmax.f32 %v358, 0.0
  %v367 = vmax.f32 %v359, 0.0
  %v368 = vpack.c.bf16 %v361, %v360
  %v369 = vpack.c.bf16 %v363, %v362
  %v370 = vpack.c.bf16 %v365, %v364
  %v371 = vpack.c.bf16 %v367, %v366
  %v372 = vld [vmem:[%s3] sm:$0xf]
  %v373 = vld [vmem:[%s3 + $0x4] sm:$0xf]
  %v374 = vld [vmem:[%s3 + $0x8] sm:$0xf]
  %v375 = vld [vmem:[%s3 + $0xc] sm:$0xf]
  %v376 = vld [vmem:[%s3 + $0x10] sm:$0xf]
  %v377 = vld [vmem:[%s3 + $0x14] sm:$0xf]
  %v378 = vld [vmem:[%s3 + $0x18] sm:$0xf]
  %v379 = vld [vmem:[%s3 + $0x1c] sm:$0xf]
  %s380 = scalar_lea.vmem %s3, 32
  %v381 = vld [vmem:[%s380] sm:$0xf]
  %v382 = vld [vmem:[%s380 + $0x4] sm:$0xf]
  %v383 = vld [vmem:[%s380 + $0x8] sm:$0xf]
  %v384 = vld [vmem:[%s380 + $0xc] sm:$0xf]
  %v385 = vld [vmem:[%s380 + $0x10] sm:$0xf]
  %v386 = vld [vmem:[%s380 + $0x14] sm:$0xf]
  %v387 = vld [vmem:[%s380 + $0x18] sm:$0xf]
  %v388 = vld [vmem:[%s380 + $0x1c] sm:$0xf]
  %v390 = vrot.slane %v368, 4
  %v399 = vunpack.c.l.b16 %v381
  %v400 = vunpack.c.l.b16 %v382
  %v401 = vunpack.c.l.b16 %v383
  %v402 = vunpack.c.l.b16 %v384
  %v403 = vunpack.c.l.b16 %v385
  %v404 = vunpack.c.l.b16 %v386
  %v405 = vunpack.c.l.b16 %v387
  %v406 = vunpack.c.l.b16 %v388
  %v407 = vpack.c.b16 %v400, %v399
  %v408 = vpack.c.b16 %v402, %v401
  %v409 = vpack.c.b16 %v404, %v403
  %v410 = vpack.c.b16 %v406, %v405
  %vm415 = vcmask 523264
  %v417 = vsel %vm415, %v390, 0
  %419 = vmatprep.subr.bf16.mxu0 0
  %420 = vmatpush1.bf16.msra.mxu0 0
  %421 = vmatprep.subr.bf16.mxu0 0
  %422 = vmatpush1.bf16.msra.mxu0 0
  %423 = vmatprep.subr.bf16.mxu0 0
  %424 = vmatpush1.bf16.msra.mxu0 0
  %425 = vmatprep.subr.bf16.mxu0 0
  %426 = vmatpush1.bf16.msra.mxu0 0
  %427 = vmatprep.subr.bf16.mxu0 0
  %428 = vmatpush1.bf16.msra.mxu0 %v410
  %429 = vmatprep.subr.bf16.mxu0 0
  %430 = vmatpush1.bf16.msra.mxu0 %v409
  %431 = vmatprep.subr.bf16.mxu0 0
  %432 = vmatpush1.bf16.msra.mxu0 %v408
  %433 = vmatprep.subr.bf16.mxu0 0
  %434 = vmatpush1.bf16.msra.mxu0 %v407
  %435 = vmatprep.subr.bf16.mxu0 0
  %436 = vmatpush2.bf16.msra.mxu0 0
  %437 = vmatprep.subr.bf16.mxu0 0
  %438 = vmatpush2.bf16.msra.mxu0 0
  %439 = vmatprep.subr.bf16.mxu0 0
  %440 = vmatpush2.bf16.msra.mxu0 0
  %441 = vmatprep.subr.bf16.mxu0 0
  %442 = vmatpush2.bf16.msra.mxu0 0
  %443 = vmatprep.subr.bf16.mxu0 0
  %444 = vmatpush2.bf16.msra.mxu0 0
  %445 = vmatprep.subr.bf16.mxu0 0
  %446 = vmatpush2.bf16.msra.mxu0 0
  %447 = vmatprep.subr.bf16.mxu0 0
  %448 = vmatpush2.bf16.msra.mxu0 0
  %449 = vmatprep.subr.bf16.mxu0 0
  %450 = vmatpush2.bf16.msra.mxu0 0
  %451 = vmatprep.mubr.bf16.mxu0 0
  %452 = vmatmul.mubr.bf16.gmra.mxu0 %v417
  %v453 = vpop.f32.mrf.mxu0
  %v454 = vadd.f32 0.0, %v453
  %v455 = vpop.f32.mrf.mxu0
  %v456 = vpop.f32.mrf.mxu0
  %v457 = vpop.f32.mrf.mxu0
  %458 = vdwg.mxu0
  %v467 = vunpack.c.l.b16 %v372
  %v468 = vunpack.c.l.b16 %v373
  %v469 = vunpack.c.l.b16 %v374
  %v470 = vunpack.c.l.b16 %v375
  %v471 = vunpack.c.l.b16 %v376
  %v472 = vunpack.c.l.b16 %v377
  %v473 = vunpack.c.l.b16 %v378
  %v474 = vunpack.c.l.b16 %v379
  %v475 = vpack.c.b16 %v468, %v467
  %v476 = vpack.c.b16 %v470, %v469
  %v477 = vpack.c.b16 %v472, %v471
  %v478 = vpack.c.b16 %v474, %v473
  %v484 = vsel %vm415, %v368, 0
  %486 = vmatprep.subr.bf16.mxu0 0
  %487 = vmatpush1.bf16.msra.mxu0 0
  %488 = vmatprep.subr.bf16.mxu0 0
  %489 = vmatpush1.bf16.msra.mxu0 0
  %490 = vmatprep.subr.bf16.mxu0 0
  %491 = vmatpush1.bf16.msra.mxu0 0
  %492 = vmatprep.subr.bf16.mxu0 0
  %493 = vmatpush1.bf16.msra.mxu0 0
  %494 = vmatprep.subr.bf16.mxu0 0
  %495 = vmatpush1.bf16.msra.mxu0 %v478
  %496 = vmatprep.subr.bf16.mxu0 0
  %497 = vmatpush1.bf16.msra.mxu0 %v477
  %498 = vmatprep.subr.bf16.mxu0 0
  %499 = vmatpush1.bf16.msra.mxu0 %v476
  %500 = vmatprep.subr.bf16.mxu0 0
  %501 = vmatpush1.bf16.msra.mxu0 %v475
  %502 = vmatprep.subr.bf16.mxu0 0
  %503 = vmatpush2.bf16.msra.mxu0 0
  %504 = vmatprep.subr.bf16.mxu0 0
  %505 = vmatpush2.bf16.msra.mxu0 0
  %506 = vmatprep.subr.bf16.mxu0 0
  %507 = vmatpush2.bf16.msra.mxu0 0
  %508 = vmatprep.subr.bf16.mxu0 0
  %509 = vmatpush2.bf16.msra.mxu0 0
  %510 = vmatprep.subr.bf16.mxu0 0
  %511 = vmatpush2.bf16.msra.mxu0 0
  %512 = vmatprep.subr.bf16.mxu0 0
  %513 = vmatpush2.bf16.msra.mxu0 0
  %514 = vmatprep.subr.bf16.mxu0 0
  %515 = vmatpush2.bf16.msra.mxu0 0
  %516 = vmatprep.subr.bf16.mxu0 0
  %517 = vmatpush2.bf16.msra.mxu0 0
  %518 = vmatprep.mubr.bf16.mxu0 0
  %519 = vmatmul.mubr.bf16.gmra.mxu0 %v484
  %v520 = vpop.f32.mrf.mxu0
  %v521 = vadd.f32 %v454, %v520
  %v522 = vpop.f32.mrf.mxu0
  %v523 = vpop.f32.mrf.mxu0
  %v524 = vpop.f32.mrf.mxu0
  %525 = vdwg.mxu0
  %s526 = scalar_lea.vmem %s3, 64
  %v527 = vld [vmem:[%s526] sm:$0xf]
  %v528 = vld [vmem:[%s526 + $0x4] sm:$0xf]
  %v529 = vld [vmem:[%s526 + $0x8] sm:$0xf]
  %v530 = vld [vmem:[%s526 + $0xc] sm:$0xf]
  %v531 = vld [vmem:[%s526 + $0x10] sm:$0xf]
  %v532 = vld [vmem:[%s526 + $0x14] sm:$0xf]
  %v533 = vld [vmem:[%s526 + $0x18] sm:$0xf]
  %v534 = vld [vmem:[%s526 + $0x1c] sm:$0xf]
  %v543 = vunpack.c.l.b16 %v527
  %v544 = vunpack.c.l.b16 %v528
  %v545 = vunpack.c.l.b16 %v529
  %v546 = vunpack.c.l.b16 %v530
  %v547 = vunpack.c.l.b16 %v531
  %v548 = vunpack.c.l.b16 %v532
  %v549 = vunpack.c.l.b16 %v533
  %v550 = vunpack.c.l.b16 %v534
  %v551 = vpack.c.b16 %v544, %v543
  %v552 = vpack.c.b16 %v546, %v545
  %v553 = vpack.c.b16 %v548, %v547
  %v554 = vpack.c.b16 %v550, %v549
  %v560 = vsel %vm415, %v369, 0
  %562 = vmatprep.subr.bf16.mxu0 0
  %563 = vmatpush1.bf16.msra.mxu0 0
  %564 = vmatprep.subr.bf16.mxu0 0
  %565 = vmatpush1.bf16.msra.mxu0 0
  %566 = vmatprep.subr.bf16.mxu0 0
  %567 = vmatpush1.bf16.msra.mxu0 0
  %568 = vmatprep.subr.bf16.mxu0 0
  %569 = vmatpush1.bf16.msra.mxu0 0
  %570 = vmatprep.subr.bf16.mxu0 0
  %571 = vmatpush1.bf16.msra.mxu0 %v554
  %572 = vmatprep.subr.bf16.mxu0 0
  %573 = vmatpush1.bf16.msra.mxu0 %v553
  %574 = vmatprep.subr.bf16.mxu0 0
  %575 = vmatpush1.bf16.msra.mxu0 %v552
  %576 = vmatprep.subr.bf16.mxu0 0
  %577 = vmatpush1.bf16.msra.mxu0 %v551
  %578 = vmatprep.subr.bf16.mxu0 0
  %579 = vmatpush2.bf16.msra.mxu0 0
  %580 = vmatprep.subr.bf16.mxu0 0
  %581 = vmatpush2.bf16.msra.mxu0 0
  %582 = vmatprep.subr.bf16.mxu0 0
  %583 = vmatpush2.bf16.msra.mxu0 0
  %584 = vmatprep.subr.bf16.mxu0 0
  %585 = vmatpush2.bf16.msra.mxu0 0
  %586 = vmatprep.subr.bf16.mxu0 0
  %587 = vmatpush2.bf16.msra.mxu0 0
  %588 = vmatprep.subr.bf16.mxu0 0
  %589 = vmatpush2.bf16.msra.mxu0 0
  %590 = vmatprep.subr.bf16.mxu0 0
  %591 = vmatpush2.bf16.msra.mxu0 0
  %592 = vmatprep.subr.bf16.mxu0 0
  %593 = vmatpush2.bf16.msra.mxu0 0
  %594 = vmatprep.mubr.bf16.mxu0 0
  %595 = vmatmul.mubr.bf16.gmra.mxu0 %v560
  %v596 = vpop.f32.mrf.mxu0
  %v597 = vadd.f32 0.0, %v596
  %v598 = vpop.f32.mrf.mxu0
  %v599 = vpop.f32.mrf.mxu0
  %v600 = vpop.f32.mrf.mxu0
  %601 = vdwg.mxu0
  %v602 = vadd.f32 %v521, %v597
  %s603 = scalar_lea.vmem %s3, 96
  %v604 = vld [vmem:[%s603] sm:$0xf]
  %v605 = vld [vmem:[%s603 + $0x4] sm:$0xf]
  %v606 = vld [vmem:[%s603 + $0x8] sm:$0xf]
  %v607 = vld [vmem:[%s603 + $0xc] sm:$0xf]
  %v608 = vld [vmem:[%s603 + $0x10] sm:$0xf]
  %v609 = vld [vmem:[%s603 + $0x14] sm:$0xf]
  %v610 = vld [vmem:[%s603 + $0x18] sm:$0xf]
  %v611 = vld [vmem:[%s603 + $0x1c] sm:$0xf]
  %v613 = vrot.slane %v369, 4
  %v622 = vunpack.c.l.b16 %v604
  %v623 = vunpack.c.l.b16 %v605
  %v624 = vunpack.c.l.b16 %v606
  %v625 = vunpack.c.l.b16 %v607
  %v626 = vunpack.c.l.b16 %v608
  %v627 = vunpack.c.l.b16 %v609
  %v628 = vunpack.c.l.b16 %v610
  %v629 = vunpack.c.l.b16 %v611
  %v630 = vpack.c.b16 %v623, %v622
  %v631 = vpack.c.b16 %v625, %v624
  %v632 = vpack.c.b16 %v627, %v626
  %v633 = vpack.c.b16 %v629, %v628
  %v639 = vsel %vm415, %v613, 0
  %641 = vmatprep.subr.bf16.mxu0 0
  %642 = vmatpush1.bf16.msra.mxu0 0
  %643 = vmatprep.subr.bf16.mxu0 0
  %644 = vmatpush1.bf16.msra.mxu0 0
  %645 = vmatprep.subr.bf16.mxu0 0
  %646 = vmatpush1.bf16.msra.mxu0 0
  %647 = vmatprep.subr.bf16.mxu0 0
  %648 = vmatpush1.bf16.msra.mxu0 0
  %649 = vmatprep.subr.bf16.mxu0 0
  %650 = vmatpush1.bf16.msra.mxu0 %v633
  %651 = vmatprep.subr.bf16.mxu0 0
  %652 = vmatpush1.bf16.msra.mxu0 %v632
  %653 = vmatprep.subr.bf16.mxu0 0
  %654 = vmatpush1.bf16.msra.mxu0 %v631
  %655 = vmatprep.subr.bf16.mxu0 0
  %656 = vmatpush1.bf16.msra.mxu0 %v630
  %657 = vmatprep.subr.bf16.mxu0 0
  %658 = vmatpush2.bf16.msra.mxu0 0
  %659 = vmatprep.subr.bf16.mxu0 0
  %660 = vmatpush2.bf16.msra.mxu0 0
  %661 = vmatprep.subr.bf16.mxu0 0
  %662 = vmatpush2.bf16.msra.mxu0 0
  %663 = vmatprep.subr.bf16.mxu0 0
  %664 = vmatpush2.bf16.msra.mxu0 0
  %665 = vmatprep.subr.bf16.mxu0 0
  %666 = vmatpush2.bf16.msra.mxu0 0
  %667 = vmatprep.subr.bf16.mxu0 0
  %668 = vmatpush2.bf16.msra.mxu0 0
  %669 = vmatprep.subr.bf16.mxu0 0
  %670 = vmatpush2.bf16.msra.mxu0 0
  %671 = vmatprep.subr.bf16.mxu0 0
  %672 = vmatpush2.bf16.msra.mxu0 0
  %673 = vmatprep.mubr.bf16.mxu0 0
  %674 = vmatmul.mubr.bf16.gmra.mxu0 %v639
  %v675 = vpop.f32.mrf.mxu0
  %v676 = vadd.f32 0.0, %v675
  %v677 = vpop.f32.mrf.mxu0
  %v678 = vpop.f32.mrf.mxu0
  %v679 = vpop.f32.mrf.mxu0
  %680 = vdwg.mxu0
  %v681 = vadd.f32 %v602, %v676
  %s682 = scalar_lea.vmem %s3, 128
  %v683 = vld [vmem:[%s682] sm:$0xf]
  %v684 = vld [vmem:[%s682 + $0x4] sm:$0xf]
  %v685 = vld [vmem:[%s682 + $0x8] sm:$0xf]
  %v686 = vld [vmem:[%s682 + $0xc] sm:$0xf]
  %v687 = vld [vmem:[%s682 + $0x10] sm:$0xf]
  %v688 = vld [vmem:[%s682 + $0x14] sm:$0xf]
  %v689 = vld [vmem:[%s682 + $0x18] sm:$0xf]
  %v690 = vld [vmem:[%s682 + $0x1c] sm:$0xf]
  %v699 = vunpack.c.l.b16 %v683
  %v700 = vunpack.c.l.b16 %v684
  %v701 = vunpack.c.l.b16 %v685
  %v702 = vunpack.c.l.b16 %v686
  %v703 = vunpack.c.l.b16 %v687
  %v704 = vunpack.c.l.b16 %v688
  %v705 = vunpack.c.l.b16 %v689
  %v706 = vunpack.c.l.b16 %v690
  %v707 = vpack.c.b16 %v700, %v699
  %v708 = vpack.c.b16 %v702, %v701
  %v709 = vpack.c.b16 %v704, %v703
  %v710 = vpack.c.b16 %v706, %v705
  %v716 = vsel %vm415, %v370, 0
  %718 = vmatprep.subr.bf16.mxu0 0
  %719 = vmatpush1.bf16.msra.mxu0 0
  %720 = vmatprep.subr.bf16.mxu0 0
  %721 = vmatpush1.bf16.msra.mxu0 0
  %722 = vmatprep.subr.bf16.mxu0 0
  %723 = vmatpush1.bf16.msra.mxu0 0
  %724 = vmatprep.subr.bf16.mxu0 0
  %725 = vmatpush1.bf16.msra.mxu0 0
  %726 = vmatprep.subr.bf16.mxu0 0
  %727 = vmatpush1.bf16.msra.mxu0 %v710
  %728 = vmatprep.subr.bf16.mxu0 0
  %729 = vmatpush1.bf16.msra.mxu0 %v709
  %730 = vmatprep.subr.bf16.mxu0 0
  %731 = vmatpush1.bf16.msra.mxu0 %v708
  %732 = vmatprep.subr.bf16.mxu0 0
  %733 = vmatpush1.bf16.msra.mxu0 %v707
  %734 = vmatprep.subr.bf16.mxu0 0
  %735 = vmatpush2.bf16.msra.mxu0 0
  %736 = vmatprep.subr.bf16.mxu0 0
  %737 = vmatpush2.bf16.msra.mxu0 0
  %738 = vmatprep.subr.bf16.mxu0 0
  %739 = vmatpush2.bf16.msra.mxu0 0
  %740 = vmatprep.subr.bf16.mxu0 0
  %741 = vmatpush2.bf16.msra.mxu0 0
  %742 = vmatprep.subr.bf16.mxu0 0
  %743 = vmatpush2.bf16.msra.mxu0 0
  %744 = vmatprep.subr.bf16.mxu0 0
  %745 = vmatpush2.bf16.msra.mxu0 0
  %746 = vmatprep.subr.bf16.mxu0 0
  %747 = vmatpush2.bf16.msra.mxu0 0
  %748 = vmatprep.subr.bf16.mxu0 0
  %749 = vmatpush2.bf16.msra.mxu0 0
  %750 = vmatprep.mubr.bf16.mxu0 0
  %751 = vmatmul.mubr.bf16.gmra.mxu0 %v716
  %v752 = vpop.f32.mrf.mxu0
  %v753 = vadd.f32 0.0, %v752
  %v754 = vpop.f32.mrf.mxu0
  %v755 = vpop.f32.mrf.mxu0
  %v756 = vpop.f32.mrf.mxu0
  %757 = vdwg.mxu0
  %v758 = vadd.f32 %v681, %v753
  %s759 = scalar_lea.vmem %s3, 160
  %v760 = vld [vmem:[%s759] sm:$0xf]
  %v761 = vld [vmem:[%s759 + $0x4] sm:$0xf]
  %v762 = vld [vmem:[%s759 + $0x8] sm:$0xf]
  %v763 = vld [vmem:[%s759 + $0xc] sm:$0xf]
  %v764 = vld [vmem:[%s759 + $0x10] sm:$0xf]
  %v765 = vld [vmem:[%s759 + $0x14] sm:$0xf]
  %v766 = vld [vmem:[%s759 + $0x18] sm:$0xf]
  %v767 = vld [vmem:[%s759 + $0x1c] sm:$0xf]
  %v769 = vrot.slane %v370, 4
  %v778 = vunpack.c.l.b16 %v760
  %v779 = vunpack.c.l.b16 %v761
  %v780 = vunpack.c.l.b16 %v762
  %v781 = vunpack.c.l.b16 %v763
  %v782 = vunpack.c.l.b16 %v764
  %v783 = vunpack.c.l.b16 %v765
  %v784 = vunpack.c.l.b16 %v766
  %v785 = vunpack.c.l.b16 %v767
  %v786 = vpack.c.b16 %v779, %v778
  %v787 = vpack.c.b16 %v781, %v780
  %v788 = vpack.c.b16 %v783, %v782
  %v789 = vpack.c.b16 %v785, %v784
  %v795 = vsel %vm415, %v769, 0
  %797 = vmatprep.subr.bf16.mxu0 0
  %798 = vmatpush1.bf16.msra.mxu0 0
  %799 = vmatprep.subr.bf16.mxu0 0
  %800 = vmatpush1.bf16.msra.mxu0 0
  %801 = vmatprep.subr.bf16.mxu0 0
  %802 = vmatpush1.bf16.msra.mxu0 0
  %803 = vmatprep.subr.bf16.mxu0 0
  %804 = vmatpush1.bf16.msra.mxu0 0
  %805 = vmatprep.subr.bf16.mxu0 0
  %806 = vmatpush1.bf16.msra.mxu0 %v789
  %807 = vmatprep.subr.bf16.mxu0 0
  %808 = vmatpush1.bf16.msra.mxu0 %v788
  %809 = vmatprep.subr.bf16.mxu0 0
  %810 = vmatpush1.bf16.msra.mxu0 %v787
  %811 = vmatprep.subr.bf16.mxu0 0
  %812 = vmatpush1.bf16.msra.mxu0 %v786
  %813 = vmatprep.subr.bf16.mxu0 0
  %814 = vmatpush2.bf16.msra.mxu0 0
  %815 = vmatprep.subr.bf16.mxu0 0
  %816 = vmatpush2.bf16.msra.mxu0 0
  %817 = vmatprep.subr.bf16.mxu0 0
  %818 = vmatpush2.bf16.msra.mxu0 0
  %819 = vmatprep.subr.bf16.mxu0 0
  %820 = vmatpush2.bf16.msra.mxu0 0
  %821 = vmatprep.subr.bf16.mxu0 0
  %822 = vmatpush2.bf16.msra.mxu0 0
  %823 = vmatprep.subr.bf16.mxu0 0
  %824 = vmatpush2.bf16.msra.mxu0 0
  %825 = vmatprep.subr.bf16.mxu0 0
  %826 = vmatpush2.bf16.msra.mxu0 0
  %827 = vmatprep.subr.bf16.mxu0 0
  %828 = vmatpush2.bf16.msra.mxu0 0
  %829 = vmatprep.mubr.bf16.mxu0 0
  %830 = vmatmul.mubr.bf16.gmra.mxu0 %v795
  %v831 = vpop.f32.mrf.mxu0
  %v832 = vadd.f32 0.0, %v831
  %v833 = vpop.f32.mrf.mxu0
  %v834 = vpop.f32.mrf.mxu0
  %v835 = vpop.f32.mrf.mxu0
  %836 = vdwg.mxu0
  %v837 = vadd.f32 %v758, %v832
  %s838 = scalar_lea.vmem %s3, 192
  %v839 = vld [vmem:[%s838] sm:$0xf]
  %v840 = vld [vmem:[%s838 + $0x4] sm:$0xf]
  %v841 = vld [vmem:[%s838 + $0x8] sm:$0xf]
  %v842 = vld [vmem:[%s838 + $0xc] sm:$0xf]
  %v843 = vld [vmem:[%s838 + $0x10] sm:$0xf]
  %v844 = vld [vmem:[%s838 + $0x14] sm:$0xf]
  %v845 = vld [vmem:[%s838 + $0x18] sm:$0xf]
  %v846 = vld [vmem:[%s838 + $0x1c] sm:$0xf]
  %v855 = vunpack.c.l.b16 %v839
  %v856 = vunpack.c.l.b16 %v840
  %v857 = vunpack.c.l.b16 %v841
  %v858 = vunpack.c.l.b16 %v842
  %v859 = vunpack.c.l.b16 %v843
  %v860 = vunpack.c.l.b16 %v844
  %v861 = vunpack.c.l.b16 %v845
  %v862 = vunpack.c.l.b16 %v846
  %v863 = vpack.c.b16 %v856, %v855
  %v864 = vpack.c.b16 %v858, %v857
  %v865 = vpack.c.b16 %v860, %v859
  %v866 = vpack.c.b16 %v862, %v861
  %v872 = vsel %vm415, %v371, 0
  %874 = vmatprep.subr.bf16.mxu0 0
  %875 = vmatpush1.bf16.msra.mxu0 0
  %876 = vmatprep.subr.bf16.mxu0 0
  %877 = vmatpush1.bf16.msra.mxu0 0
  %878 = vmatprep.subr.bf16.mxu0 0
  %879 = vmatpush1.bf16.msra.mxu0 0
  %880 = vmatprep.subr.bf16.mxu0 0
  %881 = vmatpush1.bf16.msra.mxu0 0
  %882 = vmatprep.subr.bf16.mxu0 0
  %883 = vmatpush1.bf16.msra.mxu0 %v866
  %884 = vmatprep.subr.bf16.mxu0 0
  %885 = vmatpush1.bf16.msra.mxu0 %v865
  %886 = vmatprep.subr.bf16.mxu0 0
  %887 = vmatpush1.bf16.msra.mxu0 %v864
  %888 = vmatprep.subr.bf16.mxu0 0
  %889 = vmatpush1.bf16.msra.mxu0 %v863
  %890 = vmatprep.subr.bf16.mxu0 0
  %891 = vmatpush2.bf16.msra.mxu0 0
  %892 = vmatprep.subr.bf16.mxu0 0
  %893 = vmatpush2.bf16.msra.mxu0 0
  %894 = vmatprep.subr.bf16.mxu0 0
  %895 = vmatpush2.bf16.msra.mxu0 0
  %896 = vmatprep.subr.bf16.mxu0 0
  %897 = vmatpush2.bf16.msra.mxu0 0
  %898 = vmatprep.subr.bf16.mxu0 0
  %899 = vmatpush2.bf16.msra.mxu0 0
  %900 = vmatprep.subr.bf16.mxu0 0
  %901 = vmatpush2.bf16.msra.mxu0 0
  %902 = vmatprep.subr.bf16.mxu0 0
  %903 = vmatpush2.bf16.msra.mxu0 0
  %904 = vmatprep.subr.bf16.mxu0 0
  %905 = vmatpush2.bf16.msra.mxu0 0
  %906 = vmatprep.mubr.bf16.mxu0 0
  %907 = vmatmul.mubr.bf16.gmra.mxu0 %v872
  %v908 = vpop.f32.mrf.mxu0
  %v909 = vadd.f32 0.0, %v908
  %v910 = vpop.f32.mrf.mxu0
  %v911 = vpop.f32.mrf.mxu0
  %v912 = vpop.f32.mrf.mxu0
  %913 = vdwg.mxu0
  %v914 = vadd.f32 %v837, %v909
  %s915 = scalar_lea.vmem %s3, 224
  %v916 = vld [vmem:[%s915] sm:$0xf]
  %v917 = vld [vmem:[%s915 + $0x4] sm:$0xf]
  %v918 = vld [vmem:[%s915 + $0x8] sm:$0xf]
  %v919 = vld [vmem:[%s915 + $0xc] sm:$0xf]
  %v920 = vld [vmem:[%s915 + $0x10] sm:$0xf]
  %v921 = vld [vmem:[%s915 + $0x14] sm:$0xf]
  %v922 = vld [vmem:[%s915 + $0x18] sm:$0xf]
  %v923 = vld [vmem:[%s915 + $0x1c] sm:$0xf]
  %v925 = vrot.slane %v371, 4
  %v934 = vunpack.c.l.b16 %v916
  %v935 = vunpack.c.l.b16 %v917
  %v936 = vunpack.c.l.b16 %v918
  %v937 = vunpack.c.l.b16 %v919
  %v938 = vunpack.c.l.b16 %v920
  %v939 = vunpack.c.l.b16 %v921
  %v940 = vunpack.c.l.b16 %v922
  %v941 = vunpack.c.l.b16 %v923
  %v942 = vpack.c.b16 %v935, %v934
  %v943 = vpack.c.b16 %v937, %v936
  %v944 = vpack.c.b16 %v939, %v938
  %v945 = vpack.c.b16 %v941, %v940
  %v951 = vsel %vm415, %v925, 0
  %953 = vmatprep.subr.bf16.mxu0 0
  %954 = vmatpush1.bf16.msra.mxu0 0
  %955 = vmatprep.subr.bf16.mxu0 0
  %956 = vmatpush1.bf16.msra.mxu0 0
  %957 = vmatprep.subr.bf16.mxu0 0
  %958 = vmatpush1.bf16.msra.mxu0 0
  %959 = vmatprep.subr.bf16.mxu0 0
  %960 = vmatpush1.bf16.msra.mxu0 0
  %961 = vmatprep.subr.bf16.mxu0 0
  %962 = vmatpush1.bf16.msra.mxu0 %v945
  %963 = vmatprep.subr.bf16.mxu0 0
  %964 = vmatpush1.bf16.msra.mxu0 %v944
  %965 = vmatprep.subr.bf16.mxu0 0
  %966 = vmatpush1.bf16.msra.mxu0 %v943
  %967 = vmatprep.subr.bf16.mxu0 0
  %968 = vmatpush1.bf16.msra.mxu0 %v942
  %969 = vmatprep.subr.bf16.mxu0 0
  %970 = vmatpush2.bf16.msra.mxu0 0
  %971 = vmatprep.subr.bf16.mxu0 0
  %972 = vmatpush2.bf16.msra.mxu0 0
  %973 = vmatprep.subr.bf16.mxu0 0
  %974 = vmatpush2.bf16.msra.mxu0 0
  %975 = vmatprep.subr.bf16.mxu0 0
  %976 = vmatpush2.bf16.msra.mxu0 0
  %977 = vmatprep.subr.bf16.mxu0 0
  %978 = vmatpush2.bf16.msra.mxu0 0
  %979 = vmatprep.subr.bf16.mxu0 0
  %980 = vmatpush2.bf16.msra.mxu0 0
  %981 = vmatprep.subr.bf16.mxu0 0
  %982 = vmatpush2.bf16.msra.mxu0 0
  %983 = vmatprep.subr.bf16.mxu0 0
  %984 = vmatpush2.bf16.msra.mxu0 0
  %985 = vmatprep.mubr.bf16.mxu0 0
  %986 = vmatmul.mubr.bf16.gmra.mxu0 %v951
  %v987 = vpop.f32.mrf.mxu0
  %v988 = vadd.f32 0.0, %v987
  %v989 = vpop.f32.mrf.mxu0
  %v990 = vpop.f32.mrf.mxu0
  %v991 = vpop.f32.mrf.mxu0
  %992 = vdwg.mxu0
  %v993 = vadd.f32 %v914, %v988
  %v994 = vld [vmem:[%s4] sm:$0x1]
  %v996 = vlaneseq
  %v997 = vshrl.u32 %v996, 7
  %v998 = vsub.s32 0, %v997
  %v999 = vrot.slane %v994, %v998
  %v1001 = vadd.f32 %v993, %v999
  %v1002 = vmax.f32 %v1001, 0.0
  %1003 = vst.msk [vmem:[%s5] sm:$0xff] %vm78, %v1002
  // Predicated region
  $region22: #{roi_encoder_forward.2} parent=0 // pred_check
    _
  $region23: #{roi_encoder_forward.2} parent=0 // pred_check_branch
    %1005 = sbr.rel (0) target = $region25
  $region24: #{roi_encoder_forward.2} parent=0 // pred_region
    _
  $region25: #{roi_encoder_forward.2} parent=0 // pred_fallthru
    _
  // Predicated region
  $region26: #{roi_encoder_forward.2} parent=0 // pred_check
    _
  $region27: #{roi_encoder_forward.2} parent=0 // pred_check_branch
    %1007 = sbr.rel (0) target = $region29
  $region28: #{roi_encoder_forward.2} parent=0 // pred_region
    _
  $region29: #{roi_encoder_forward.2} parent=0 // pred_fallthru
    _

// kernel: roi_encoder_forward.3
$region0: #{roi_encoder_forward.3}
  #allocation0 [shape = 'u32[]', space=smem, size = 0x4, offset = 0x4, fixed_abs, tag = 'smem constant byte address 0x4 - core index']
  #allocation1 [shape = 'u32[144,128]{1,0:T(1,128)}', space=vmem, size = 0x12000, scoped, tag = 'internal scratch']
  %s0 = inlined_call_operand.vmem [shape: f32[8,32], index: 0, kind: input, shape index: {}]
  %s1 = inlined_call_operand.vmem [shape: bf16[32,96], index: 1, kind: input, shape index: {}]
  %s2 = inlined_call_operand.vmem [shape: f32[1,96], index: 2, kind: input, shape index: {}]
  %s3 = inlined_call_operand.vmem [shape: bf16[32,32], index: 3, kind: input, shape index: {}]
  %s4 = inlined_call_operand.vmem [shape: f32[1,32], index: 4, kind: input, shape index: {}]
  %s5 = inlined_call_operand.vmem [shape: f32[1,32], index: 5, kind: input, shape index: {}]
  %s6 = inlined_call_operand.vmem [shape: f32[1,32], index: 6, kind: input, shape index: {}]
  %s7 = inlined_call_operand.vmem [shape: bf16[32,128], index: 7, kind: input, shape index: {}]
  %s8 = inlined_call_operand.vmem [shape: f32[1,128], index: 8, kind: input, shape index: {}]
  %s9 = inlined_call_operand.vmem [shape: bf16[128,32], index: 9, kind: input, shape index: {}]
  %s10 = inlined_call_operand.vmem [shape: f32[1,32], index: 10, kind: input, shape index: {}]
  %s11 = inlined_call_operand.vmem [shape: f32[1,32], index: 11, kind: input, shape index: {}]
  %s12 = inlined_call_operand.vmem [shape: f32[1,32], index: 12, kind: input, shape index: {}]
  %s13 = inlined_call_operand.vmem [shape: bf16[32,64], index: 13, kind: input, shape index: {}]
  %s14 = inlined_call_operand.vmem [shape: f32[1,64], index: 14, kind: input, shape index: {}]
  %s15 = inlined_call_operand.vmem [shape: bf16[64,128], index: 15, kind: input, shape index: {}]
  %s16 = inlined_call_operand.vmem [shape: f32[1,128], index: 16, kind: input, shape index: {}]
  %s17 = inlined_call_operand.vmem [shape: f32[2,128], index: 17, kind: output, shape index: {}]
  %s18 = sld [smem:[#allocation0]]
  $region78: #{roi_encoder_forward.3} parent=0
    _
  %s20 = ssub.s32 1, %s18
  %s21 = scalar_select 0, %s20, %s18
  // Predicated region
  $region2: #{roi_encoder_forward.3} parent=0 // pred_check
    _
  $region3: #{roi_encoder_forward.3} parent=0 // pred_check_branch
    %23 = sbr.rel (0) target = $region5
  $region4: #{roi_encoder_forward.3} parent=0 // pred_region
    _
  $region5: #{roi_encoder_forward.3} parent=0 // pred_fallthru
    _
  // Predicated region
  $region6: #{roi_encoder_forward.3} parent=0 // pred_check
    _
  $region7: #{roi_encoder_forward.3} parent=0 // pred_check_branch
    %25 = sbr.rel (0) target = $region9
  $region8: #{roi_encoder_forward.3} parent=0 // pred_region
    _
  $region9: #{roi_encoder_forward.3} parent=0 // pred_fallthru
    _
  // Predicated region
  $region10: #{roi_encoder_forward.3} parent=0 // pred_check
    _
  $region11: #{roi_encoder_forward.3} parent=0 // pred_check_branch
    %27 = sbr.rel (0) target = $region13
  $region12: #{roi_encoder_forward.3} parent=0 // pred_region
    _
  $region13: #{roi_encoder_forward.3} parent=0 // pred_fallthru
    _
  // Predicated region
  $region14: #{roi_encoder_forward.3} parent=0 // pred_check
    _
  $region15: #{roi_encoder_forward.3} parent=0 // pred_check_branch
    %29 = sbr.rel (0) target = $region17
  $region16: #{roi_encoder_forward.3} parent=0 // pred_region
    _
  $region17: #{roi_encoder_forward.3} parent=0 // pred_fallthru
    _
  // Predicated region
  $region18: #{roi_encoder_forward.3} parent=0 // pred_check
    _
  $region19: #{roi_encoder_forward.3} parent=0 // pred_check_branch
    %31 = sbr.rel (0) target = $region21
  $region20: #{roi_encoder_forward.3} parent=0 // pred_region
    _
  $region21: #{roi_encoder_forward.3} parent=0 // pred_fallthru
    _
  // Predicated region
  $region22: #{roi_encoder_forward.3} parent=0 // pred_check
    _
  $region23: #{roi_encoder_forward.3} parent=0 // pred_check_branch
    %33 = sbr.rel (0) target = $region25
  $region24: #{roi_encoder_forward.3} parent=0 // pred_region
    _
  $region25: #{roi_encoder_forward.3} parent=0 // pred_fallthru
    _
  // Predicated region
  $region26: #{roi_encoder_forward.3} parent=0 // pred_check
    _
  $region27: #{roi_encoder_forward.3} parent=0 // pred_check_branch
    %35 = sbr.rel (0) target = $region29
  $region28: #{roi_encoder_forward.3} parent=0 // pred_region
    _
  $region29: #{roi_encoder_forward.3} parent=0 // pred_fallthru
    _
  // Predicated region
  $region30: #{roi_encoder_forward.3} parent=0 // pred_check
    _
  $region31: #{roi_encoder_forward.3} parent=0 // pred_check_branch
    %37 = sbr.rel (0) target = $region33
  $region32: #{roi_encoder_forward.3} parent=0 // pred_region
    _
  $region33: #{roi_encoder_forward.3} parent=0 // pred_fallthru
    _
  // Predicated region
  $region34: #{roi_encoder_forward.3} parent=0 // pred_check
    _
  $region35: #{roi_encoder_forward.3} parent=0 // pred_check_branch
    %39 = sbr.rel (0) target = $region37
  $region36: #{roi_encoder_forward.3} parent=0 // pred_region
    _
  $region37: #{roi_encoder_forward.3} parent=0 // pred_fallthru
    _
  // Predicated region
  $region38: #{roi_encoder_forward.3} parent=0 // pred_check
    _
  $region39: #{roi_encoder_forward.3} parent=0 // pred_check_branch
    %41 = sbr.rel (0) target = $region41
  $region40: #{roi_encoder_forward.3} parent=0 // pred_region
    _
  $region41: #{roi_encoder_forward.3} parent=0 // pred_fallthru
    _
  // Predicated region
  $region42: #{roi_encoder_forward.3} parent=0 // pred_check
    _
  $region43: #{roi_encoder_forward.3} parent=0 // pred_check_branch
    %43 = sbr.rel (0) target = $region45
  $region44: #{roi_encoder_forward.3} parent=0 // pred_region
    _
  $region45: #{roi_encoder_forward.3} parent=0 // pred_fallthru
    _
  // Predicated region
  $region46: #{roi_encoder_forward.3} parent=0 // pred_check
    _
  $region47: #{roi_encoder_forward.3} parent=0 // pred_check_branch
    %45 = sbr.rel (0) target = $region49
  $region48: #{roi_encoder_forward.3} parent=0 // pred_region
    _
  $region49: #{roi_encoder_forward.3} parent=0 // pred_fallthru
    _
  // Predicated region
  $region50: #{roi_encoder_forward.3} parent=0 // pred_check
    _
  $region51: #{roi_encoder_forward.3} parent=0 // pred_check_branch
    %47 = sbr.rel (0) target = $region53
  $region52: #{roi_encoder_forward.3} parent=0 // pred_region
    _
  $region53: #{roi_encoder_forward.3} parent=0 // pred_fallthru
    _
  // Predicated region
  $region54: #{roi_encoder_forward.3} parent=0 // pred_check
    _
  $region55: #{roi_encoder_forward.3} parent=0 // pred_check_branch
    %49 = sbr.rel (0) target = $region57
  $region56: #{roi_encoder_forward.3} parent=0 // pred_region
    _
  $region57: #{roi_encoder_forward.3} parent=0 // pred_fallthru
    _
  // Predicated region
  $region58: #{roi_encoder_forward.3} parent=0 // pred_check
    _
  $region59: #{roi_encoder_forward.3} parent=0 // pred_check_branch
    %51 = sbr.rel (0) target = $region61
  $region60: #{roi_encoder_forward.3} parent=0 // pred_region
    _
  $region61: #{roi_encoder_forward.3} parent=0 // pred_fallthru
    _
  // Predicated region
  $region62: #{roi_encoder_forward.3} parent=0 // pred_check
    _
  $region63: #{roi_encoder_forward.3} parent=0 // pred_check_branch
    %53 = sbr.rel (0) target = $region65
  $region64: #{roi_encoder_forward.3} parent=0 // pred_region
    _
  $region65: #{roi_encoder_forward.3} parent=0 // pred_fallthru
    _
  // Predicated region
  $region66: #{roi_encoder_forward.3} parent=0 // pred_check
    _
  $region67: #{roi_encoder_forward.3} parent=0 // pred_check_branch
    %55 = sbr.rel (0) target = $region69
  $region68: #{roi_encoder_forward.3} parent=0 // pred_region
    _
  $region69: #{roi_encoder_forward.3} parent=0 // pred_fallthru
    _
  %v57 = vld [vmem:[%s0] sm:$0xff]
  %v58 = vpack.c.bf16 %v57, %v57
  %v59 = vld [vmem:[%s1] sm:$0xf]
  %v60 = vld [vmem:[%s1 + $0x4] sm:$0xf]
  %v61 = vld [vmem:[%s1 + $0x8] sm:$0xf]
  %v62 = vld [vmem:[%s1 + $0xc] sm:$0xf]
  %v63 = vld [vmem:[%s2] sm:$0x1]
  %v65 = vlaneseq
  %v66 = vshrl.u32 %v65, 7
  %v67 = vsub.s32 0, %v66
  %v68 = vrot.slane %v63, %v67
  %v74 = vunpack.c.l.b16 %v59
  %v75 = vunpack.c.l.b16 %v60
  %v76 = vunpack.c.l.b16 %v61
  %v77 = vunpack.c.l.b16 %v62
  %v78 = vpack.c.b16 %v75, %v74
  %v79 = vpack.c.b16 %v77, %v76
  %vm82 = vcmask 261120
  %v84 = vsel %vm82, %v58, 0
  %86 = vmatprep.subr.bf16.mxu0 0
  %87 = vmatpush1.bf16.msra.mxu0 0
  %88 = vmatprep.subr.bf16.mxu0 0
  %89 = vmatpush1.bf16.msra.mxu0 0
  %90 = vmatprep.subr.bf16.mxu0 0
  %91 = vmatpush1.bf16.msra.mxu0 0
  %92 = vmatprep.subr.bf16.mxu0 0
  %93 = vmatpush1.bf16.msra.mxu0 0
  %94 = vmatprep.subr.bf16.mxu0 0
  %95 = vmatpush1.bf16.msra.mxu0 0
  %96 = vmatprep.subr.bf16.mxu0 0
  %97 = vmatpush1.bf16.msra.mxu0 0
  %98 = vmatprep.subr.bf16.mxu0 0
  %99 = vmatpush1.bf16.msra.mxu0 %v79
  %100 = vmatprep.subr.bf16.mxu0 0
  %101 = vmatpush1.bf16.msra.mxu0 %v78
  %102 = vmatprep.subr.bf16.mxu0 0
  %103 = vmatpush2.bf16.msra.mxu0 0
  %104 = vmatprep.subr.bf16.mxu0 0
  %105 = vmatpush2.bf16.msra.mxu0 0
  %106 = vmatprep.subr.bf16.mxu0 0
  %107 = vmatpush2.bf16.msra.mxu0 0
  %108 = vmatprep.subr.bf16.mxu0 0
  %109 = vmatpush2.bf16.msra.mxu0 0
  %110 = vmatprep.subr.bf16.mxu0 0
  %111 = vmatpush2.bf16.msra.mxu0 0
  %112 = vmatprep.subr.bf16.mxu0 0
  %113 = vmatpush2.bf16.msra.mxu0 0
  %114 = vmatprep.subr.bf16.mxu0 0
  %115 = vmatpush2.bf16.msra.mxu0 0
  %116 = vmatprep.subr.bf16.mxu0 0
  %117 = vmatpush2.bf16.msra.mxu0 0
  %118 = vmatprep.mubr.bf16.mxu0 0
  %119 = vmatmul.mubr.bf16.gmra.mxu0 %v84
  %v120 = vpop.f32.mrf.mxu0
  %v121 = vadd.f32 %v68, %v120
  %v122 = vpop.f32.mrf.mxu0
  %v123 = vpop.f32.mrf.mxu0
  %v124 = vpop.f32.mrf.mxu0
  %125 = vdwg.mxu0
  %127 = vrot.lane.b32.xlu0 %v121, 96
  %v128 = vpop.permute.xlu0 %127
  %vm129 = vcmask 64512
  %v130 = vsel %vm129, %v121, 0
  %v132 = vsel %vm129, %v128, 0
  %134 = vmatprep.subr.mxu0 0.0
  %135 = vmatpush1.xpose.msra.mxu0 0.0
  %136 = vmatprep.subr.mxu0 0.0
  %137 = vmatpush1.xpose.msra.mxu0 0.0
  %138 = vmatprep.subr.mxu0 0.0
  %139 = vmatpush1.xpose.msra.mxu0 0.0
  %140 = vmatprep.subr.mxu0 0.0
  %141 = vmatpush1.xpose.msra.mxu0 0.0
  %142 = vmatprep.subr.mxu0 0.0
  %143 = vmatpush1.xpose.msra.mxu0 0.0
  %144 = vmatprep.subr.mxu0 0.0
  %145 = vmatpush1.xpose.msra.mxu0 0.0
  %146 = vmatprep.subr.mxu0 0.0
  %147 = vmatpush1.xpose.msra.mxu0 0.0
  %148 = vmatprep.subr.mxu0 0.0
  %149 = vmatpush1.xpose.msra.mxu0 0.0
  %150 = vmatprep.subr.mxu0 0.0
  %151 = vmatpush1.xpose.msra.mxu0 0.0
  %152 = vmatprep.subr.mxu0 0.0
  %153 = vmatpush1.xpose.msra.mxu0 0.0
  %154 = vmatprep.subr.mxu0 0.0
  %155 = vmatpush1.xpose.msra.mxu0 0.0
  %156 = vmatprep.subr.mxu0 0.0
  %157 = vmatpush1.xpose.msra.mxu0 0.0
  %158 = vmatprep.subr.mxu0 0.0
  %159 = vmatpush1.xpose.msra.mxu0 0.0
  %160 = vmatprep.subr.mxu0 0.0
  %161 = vmatpush1.xpose.msra.mxu0 0.0
  %162 = vmatprep.subr.mxu0 0.0
  %163 = vmatpush1.xpose.msra.mxu0 0.0
  %164 = vmatprep.subr.mxu0 0.0
  %165 = vmatpush1.xpose.msra.mxu0 %v132
  %166 = vmatprep.subr.mxu0 0.0
  %167 = vmatpush2.xpose.msra.mxu0 0.0
  %168 = vmatprep.subr.mxu0 0.0
  %169 = vmatpush2.xpose.msra.mxu0 0.0
  %170 = vmatprep.subr.mxu0 0.0
  %171 = vmatpush2.xpose.msra.mxu0 0.0
  %172 = vmatprep.subr.mxu0 0.0
  %173 = vmatpush2.xpose.msra.mxu0 0.0
  %174 = vmatprep.subr.mxu0 0.0
  %175 = vmatpush2.xpose.msra.mxu0 0.0
  %176 = vmatprep.subr.mxu0 0.0
  %177 = vmatpush2.xpose.msra.mxu0 0.0
  %178 = vmatprep.subr.mxu0 0.0
  %179 = vmatpush2.xpose.msra.mxu0 0.0
  %180 = vmatprep.subr.mxu0 0.0
  %181 = vmatpush2.xpose.msra.mxu0 0.0
  %182 = vmatprep.subr.mxu0 0.0
  %183 = vmatpush2.xpose.msra.mxu0 0.0
  %184 = vmatprep.subr.mxu0 0.0
  %185 = vmatpush2.xpose.msra.mxu0 0.0
  %186 = vmatprep.subr.mxu0 0.0
  %187 = vmatpush2.xpose.msra.mxu0 0.0
  %188 = vmatprep.subr.mxu0 0.0
  %189 = vmatpush2.xpose.msra.mxu0 0.0
  %190 = vmatprep.subr.mxu0 0.0
  %191 = vmatpush2.xpose.msra.mxu0 0.0
  %192 = vmatprep.subr.mxu0 0.0
  %193 = vmatpush2.xpose.msra.mxu0 0.0
  %194 = vmatprep.subr.mxu0 0.0
  %195 = vmatpush2.xpose.msra.mxu0 0.0
  %196 = vmatprep.subr.mxu0 0.0
  %197 = vmatpush2.xpose.msra.mxu0 0.0
  %198 = vmatprep.mubr.f32.mxu0 0.0
  %199 = vmatmul.mubr.f32.gmra.mxu0 %v130
  %v200 = vpop.f32.mrf.mxu0
  %v201 = vadd.f32 0.0, %v200
  %v202 = vpop.f32.mrf.mxu0
  %203 = vdwg.mxu0
  %v204 = vmul.f32 %v201, 0.35355338
  %vm205 = vcmask 9216
  %v206 = vsel %vm205, %v204, -inf
  %207 = vmax.xlane.f32.xlu0 %v206
  %v208 = vpop.xlane.xlu0 %207
  %v209 = vsub.f32 %v204, %v208
  %v210 = vmul.f32 %v209, 1.442695
  %v211 = vpow.pop %v210
  %v212 = vsel %vm205, %v211, 0.0
  %213 = vadd.xlane.f32.xlu0 %v212
  %v214 = vpop.xlane.xlu0 %213
  %v215 = vrcp.pop %v214
  %v216 = vmul.f32 %v211, %v215
  %217 = vrot.lane.b32.xlu0 %v121, 64
  %v218 = vpop.permute.xlu0 %217
  %vm219 = vcmask 15360
  %v221 = vsel %vm219, %v216, 0
  %vm223 = vcmask 1041408
  %v224 = vsel %vm223, %v218, 0
  %226 = vmatprep.subr.mxu0 0.0
  %227 = vmatpush1.msra.mxu0 0.0
  %228 = vmatprep.subr.mxu0 0.0
  %229 = vmatpush1.msra.mxu0 0.0
  %230 = vmatprep.subr.mxu0 0.0
  %231 = vmatpush1.msra.mxu0 0.0
  %232 = vmatprep.subr.mxu0 0.0
  %233 = vmatpush1.msra.mxu0 0.0
  %234 = vmatprep.subr.mxu0 0.0
  %235 = vmatpush1.msra.mxu0 0.0
  %236 = vmatprep.subr.mxu0 0.0
  %237 = vmatpush1.msra.mxu0 0.0
  %238 = vmatprep.subr.mxu0 0.0
  %239 = vmatpush1.msra.mxu0 0.0
  %240 = vmatprep.subr.mxu0 0.0
  %241 = vmatpush1.msra.mxu0 0.0
  %242 = vmatprep.subr.mxu0 0.0
  %243 = vmatpush1.msra.mxu0 0.0
  %244 = vmatprep.subr.mxu0 0.0
  %245 = vmatpush1.msra.mxu0 0.0
  %246 = vmatprep.subr.mxu0 0.0
  %247 = vmatpush1.msra.mxu0 0.0
  %248 = vmatprep.subr.mxu0 0.0
  %249 = vmatpush1.msra.mxu0 0.0
  %250 = vmatprep.subr.mxu0 0.0
  %251 = vmatpush1.msra.mxu0 0.0
  %252 = vmatprep.subr.mxu0 0.0
  %253 = vmatpush1.msra.mxu0 0.0
  %254 = vmatprep.subr.mxu0 0.0
  %255 = vmatpush1.msra.mxu0 0.0
  %256 = vmatprep.subr.mxu0 0.0
  %257 = vmatpush1.msra.mxu0 %v224
  %258 = vmatprep.subr.mxu0 0.0
  %259 = vmatpush2.msra.mxu0 0.0
  %260 = vmatprep.subr.mxu0 0.0
  %261 = vmatpush2.msra.mxu0 0.0
  %262 = vmatprep.subr.mxu0 0.0
  %263 = vmatpush2.msra.mxu0 0.0
  %264 = vmatprep.subr.mxu0 0.0
  %265 = vmatpush2.msra.mxu0 0.0
  %266 = vmatprep.subr.mxu0 0.0
  %267 = vmatpush2.msra.mxu0 0.0
  %268 = vmatprep.subr.mxu0 0.0
  %269 = vmatpush2.msra.mxu0 0.0
  %270 = vmatprep.subr.mxu0 0.0
  %271 = vmatpush2.msra.mxu0 0.0
  %272 = vmatprep.subr.mxu0 0.0
  %273 = vmatpush2.msra.mxu0 0.0
  %274 = vmatprep.subr.mxu0 0.0
  %275 = vmatpush2.msra.mxu0 0.0
  %276 = vmatprep.subr.mxu0 0.0
  %277 = vmatpush2.msra.mxu0 0.0
  %278 = vmatprep.subr.mxu0 0.0
  %279 = vmatpush2.msra.mxu0 0.0
  %280 = vmatprep.subr.mxu0 0.0
  %281 = vmatpush2.msra.mxu0 0.0
  %282 = vmatprep.subr.mxu0 0.0
  %283 = vmatpush2.msra.mxu0 0.0
  %284 = vmatprep.subr.mxu0 0.0
  %285 = vmatpush2.msra.mxu0 0.0
  %286 = vmatprep.subr.mxu0 0.0
  %287 = vmatpush2.msra.mxu0 0.0
  %288 = vmatprep.subr.mxu0 0.0
  %289 = vmatpush2.msra.mxu0 0.0
  %290 = vmatprep.mubr.f32.mxu0 0.0
  %291 = vmatmul.mubr.f32.gmra.mxu0 %v221
  %v292 = vpop.f32.mrf.mxu0
  %v293 = vadd.f32 0.0, %v292
  %v294 = vpop.f32.mrf.mxu0
  %295 = vdwg.mxu0
  %296 = vrot.lane.b32.xlu0 %v121, 120
  %v297 = vpop.permute.xlu0 %296
  %298 = vrot.lane.b32.xlu0 %v121, 88
  %v299 = vpop.permute.xlu0 %298
  %v300 = vsel %vm129, %v297, 0
  %v302 = vsel %vm129, %v299, 0
  %304 = vmatprep.subr.mxu0 0.0
  %305 = vmatpush1.xpose.msra.mxu0 0.0
  %306 = vmatprep.subr.mxu0 0.0
  %307 = vmatpush1.xpose.msra.mxu0 0.0
  %308 = vmatprep.subr.mxu0 0.0
  %309 = vmatpush1.xpose.msra.mxu0 0.0
  %310 = vmatprep.subr.mxu0 0.0
  %311 = vmatpush1.xpose.msra.mxu0 0.0
  %312 = vmatprep.subr.mxu0 0.0
  %313 = vmatpush1.xpose.msra.mxu0 0.0
  %314 = vmatprep.subr.mxu0 0.0
  %315 = vmatpush1.xpose.msra.mxu0 0.0
  %316 = vmatprep.subr.mxu0 0.0
  %317 = vmatpush1.xpose.msra.mxu0 0.0
  %318 = vmatprep.subr.mxu0 0.0
  %319 = vmatpush1.xpose.msra.mxu0 0.0
  %320 = vmatprep.subr.mxu0 0.0
  %321 = vmatpush1.xpose.msra.mxu0 0.0
  %322 = vmatprep.subr.mxu0 0.0
  %323 = vmatpush1.xpose.msra.mxu0 0.0
  %324 = vmatprep.subr.mxu0 0.0
  %325 = vmatpush1.xpose.msra.mxu0 0.0
  %326 = vmatprep.subr.mxu0 0.0
  %327 = vmatpush1.xpose.msra.mxu0 0.0
  %328 = vmatprep.subr.mxu0 0.0
  %329 = vmatpush1.xpose.msra.mxu0 0.0
  %330 = vmatprep.subr.mxu0 0.0
  %331 = vmatpush1.xpose.msra.mxu0 0.0
  %332 = vmatprep.subr.mxu0 0.0
  %333 = vmatpush1.xpose.msra.mxu0 0.0
  %334 = vmatprep.subr.mxu0 0.0
  %335 = vmatpush1.xpose.msra.mxu0 %v302
  %336 = vmatprep.subr.mxu0 0.0
  %337 = vmatpush2.xpose.msra.mxu0 0.0
  %338 = vmatprep.subr.mxu0 0.0
  %339 = vmatpush2.xpose.msra.mxu0 0.0
  %340 = vmatprep.subr.mxu0 0.0
  %341 = vmatpush2.xpose.msra.mxu0 0.0
  %342 = vmatprep.subr.mxu0 0.0
  %343 = vmatpush2.xpose.msra.mxu0 0.0
  %344 = vmatprep.subr.mxu0 0.0
  %345 = vmatpush2.xpose.msra.mxu0 0.0
  %346 = vmatprep.subr.mxu0 0.0
  %347 = vmatpush2.xpose.msra.mxu0 0.0
  %348 = vmatprep.subr.mxu0 0.0
  %349 = vmatpush2.xpose.msra.mxu0 0.0
  %350 = vmatprep.subr.mxu0 0.0
  %351 = vmatpush2.xpose.msra.mxu0 0.0
  %352 = vmatprep.subr.mxu0 0.0
  %353 = vmatpush2.xpose.msra.mxu0 0.0
  %354 = vmatprep.subr.mxu0 0.0
  %355 = vmatpush2.xpose.msra.mxu0 0.0
  %356 = vmatprep.subr.mxu0 0.0
  %357 = vmatpush2.xpose.msra.mxu0 0.0
  %358 = vmatprep.subr.mxu0 0.0
  %359 = vmatpush2.xpose.msra.mxu0 0.0
  %360 = vmatprep.subr.mxu0 0.0
  %361 = vmatpush2.xpose.msra.mxu0 0.0
  %362 = vmatprep.subr.mxu0 0.0
  %363 = vmatpush2.xpose.msra.mxu0 0.0
  %364 = vmatprep.subr.mxu0 0.0
  %365 = vmatpush2.xpose.msra.mxu0 0.0
  %366 = vmatprep.subr.mxu0 0.0
  %367 = vmatpush2.xpose.msra.mxu0 0.0
  %368 = vmatprep.mubr.f32.mxu0 0.0
  %369 = vmatmul.mubr.f32.gmra.mxu0 %v300
  %v370 = vpop.f32.mrf.mxu0
  %v371 = vadd.f32 0.0, %v370
  %v372 = vpop.f32.mrf.mxu0
  %373 = vdwg.mxu0
  %v374 = vmul.f32 %v371, 0.35355338
  %v375 = vsel %vm205, %v374, -inf
  %376 = vmax.xlane.f32.xlu0 %v375
  %v377 = vpop.xlane.xlu0 %376
  %v378 = vsub.f32 %v374, %v377
  %v379 = vmul.f32 %v378, 1.442695
  %v380 = vpow.pop %v379
  %v381 = vsel %vm205, %v380, 0.0
  %382 = vadd.xlane.f32.xlu0 %v381
  %v383 = vpop.xlane.xlu0 %382
  %v384 = vrcp.pop %v383
  %v385 = vmul.f32 %v380, %v384
  %386 = vrot.lane.b32.xlu0 %v121, 56
  %v387 = vpop.permute.xlu0 %386
  %v389 = vsel %vm219, %v385, 0
  %v391 = vsel %vm223, %v387, 0
  %393 = vmatprep.subr.mxu0 0.0
  %394 = vmatpush1.msra.mxu0 0.0
  %395 = vmatprep.subr.mxu0 0.0
  %396 = vmatpush1.msra.mxu0 0.0
  %397 = vmatprep.subr.mxu0 0.0
  %398 = vmatpush1.msra.mxu0 0.0
  %399 = vmatprep.subr.mxu0 0.0
  %400 = vmatpush1.msra.mxu0 0.0
  %401 = vmatprep.subr.mxu0 0.0
  %402 = vmatpush1.msra.mxu0 0.0
  %403 = vmatprep.subr.mxu0 0.0
  %404 = vmatpush1.msra.mxu0 0.0
  %405 = vmatprep.subr.mxu0 0.0
  %406 = vmatpush1.msra.mxu0 0.0
  %407 = vmatprep.subr.mxu0 0.0
  %408 = vmatpush1.msra.mxu0 0.0
  %409 = vmatprep.subr.mxu0 0.0
  %410 = vmatpush1.msra.mxu0 0.0
  %411 = vmatprep.subr.mxu0 0.0
  %412 = vmatpush1.msra.mxu0 0.0
  %413 = vmatprep.subr.mxu0 0.0
  %414 = vmatpush1.msra.mxu0 0.0
  %415 = vmatprep.subr.mxu0 0.0
  %416 = vmatpush1.msra.mxu0 0.0
  %417 = vmatprep.subr.mxu0 0.0
  %418 = vmatpush1.msra.mxu0 0.0
  %419 = vmatprep.subr.mxu0 0.0
  %420 = vmatpush1.msra.mxu0 0.0
  %421 = vmatprep.subr.mxu0 0.0
  %422 = vmatpush1.msra.mxu0 0.0
  %423 = vmatprep.subr.mxu0 0.0
  %424 = vmatpush1.msra.mxu0 %v391
  %425 = vmatprep.subr.mxu0 0.0
  %426 = vmatpush2.msra.mxu0 0.0
  %427 = vmatprep.subr.mxu0 0.0
  %428 = vmatpush2.msra.mxu0 0.0
  %429 = vmatprep.subr.mxu0 0.0
  %430 = vmatpush2.msra.mxu0 0.0
  %431 = vmatprep.subr.mxu0 0.0
  %432 = vmatpush2.msra.mxu0 0.0
  %433 = vmatprep.subr.mxu0 0.0
  %434 = vmatpush2.msra.mxu0 0.0
  %435 = vmatprep.subr.mxu0 0.0
  %436 = vmatpush2.msra.mxu0 0.0
  %437 = vmatprep.subr.mxu0 0.0
  %438 = vmatpush2.msra.mxu0 0.0
  %439 = vmatprep.subr.mxu0 0.0
  %440 = vmatpush2.msra.mxu0 0.0
  %441 = vmatprep.subr.mxu0 0.0
  %442 = vmatpush2.msra.mxu0 0.0
  %443 = vmatprep.subr.mxu0 0.0
  %444 = vmatpush2.msra.mxu0 0.0
  %445 = vmatprep.subr.mxu0 0.0
  %446 = vmatpush2.msra.mxu0 0.0
  %447 = vmatprep.subr.mxu0 0.0
  %448 = vmatpush2.msra.mxu0 0.0
  %449 = vmatprep.subr.mxu0 0.0
  %450 = vmatpush2.msra.mxu0 0.0
  %451 = vmatprep.subr.mxu0 0.0
  %452 = vmatpush2.msra.mxu0 0.0
  %453 = vmatprep.subr.mxu0 0.0
  %454 = vmatpush2.msra.mxu0 0.0
  %455 = vmatprep.subr.mxu0 0.0
  %456 = vmatpush2.msra.mxu0 0.0
  %457 = vmatprep.mubr.f32.mxu0 0.0
  %458 = vmatmul.mubr.f32.gmra.mxu0 %v389
  %v459 = vpop.f32.mrf.mxu0
  %v460 = vadd.f32 0.0, %v459
  %v461 = vpop.f32.mrf.mxu0
  %462 = vdwg.mxu0
  %463 = vrot.lane.b32.xlu0 %v121, 112
  %v464 = vpop.permute.xlu0 %463
  %465 = vrot.lane.b32.xlu0 %v121, 80
  %v466 = vpop.permute.xlu0 %465
  %v467 = vsel %vm129, %v464, 0
  %v469 = vsel %vm129, %v466, 0
  %471 = vmatprep.subr.mxu0 0.0
  %472 = vmatpush1.xpose.msra.mxu0 0.0
  %473 = vmatprep.subr.mxu0 0.0
  %474 = vmatpush1.xpose.msra.mxu0 0.0
  %475 = vmatprep.subr.mxu0 0.0
  %476 = vmatpush1.xpose.msra.mxu0 0.0
  %477 = vmatprep.subr.mxu0 0.0
  %478 = vmatpush1.xpose.msra.mxu0 0.0
  %479 = vmatprep.subr.mxu0 0.0
  %480 = vmatpush1.xpose.msra.mxu0 0.0
  %481 = vmatprep.subr.mxu0 0.0
  %482 = vmatpush1.xpose.msra.mxu0 0.0
  %483 = vmatprep.subr.mxu0 0.0
  %484 = vmatpush1.xpose.msra.mxu0 0.0
  %485 = vmatprep.subr.mxu0 0.0
  %486 = vmatpush1.xpose.msra.mxu0 0.0
  %487 = vmatprep.subr.mxu0 0.0
  %488 = vmatpush1.xpose.msra.mxu0 0.0
  %489 = vmatprep.subr.mxu0 0.0
  %490 = vmatpush1.xpose.msra.mxu0 0.0
  %491 = vmatprep.subr.mxu0 0.0
  %492 = vmatpush1.xpose.msra.mxu0 0.0
  %493 = vmatprep.subr.mxu0 0.0
  %494 = vmatpush1.xpose.msra.mxu0 0.0
  %495 = vmatprep.subr.mxu0 0.0
  %496 = vmatpush1.xpose.msra.mxu0 0.0
  %497 = vmatprep.subr.mxu0 0.0
  %498 = vmatpush1.xpose.msra.mxu0 0.0
  %499 = vmatprep.subr.mxu0 0.0
  %500 = vmatpush1.xpose.msra.mxu0 0.0
  %501 = vmatprep.subr.mxu0 0.0
  %502 = vmatpush1.xpose.msra.mxu0 %v469
  %503 = vmatprep.subr.mxu0 0.0
  %504 = vmatpush2.xpose.msra.mxu0 0.0
  %505 = vmatprep.subr.mxu0 0.0
  %506 = vmatpush2.xpose.msra.mxu0 0.0
  %507 = vmatprep.subr.mxu0 0.0
  %508 = vmatpush2.xpose.msra.mxu0 0.0
  %509 = vmatprep.subr.mxu0 0.0
  %510 = vmatpush2.xpose.msra.mxu0 0.0
  %511 = vmatprep.subr.mxu0 0.0
  %512 = vmatpush2.xpose.msra.mxu0 0.0
  %513 = vmatprep.subr.mxu0 0.0
  %514 = vmatpush2.xpose.msra.mxu0 0.0
  %515 = vmatprep.subr.mxu0 0.0
  %516 = vmatpush2.xpose.msra.mxu0 0.0
  %517 = vmatprep.subr.mxu0 0.0
  %518 = vmatpush2.xpose.msra.mxu0 0.0
  %519 = vmatprep.subr.mxu0 0.0
  %520 = vmatpush2.xpose.msra.mxu0 0.0
  %521 = vmatprep.subr.mxu0 0.0
  %522 = vmatpush2.xpose.msra.mxu0 0.0
  %523 = vmatprep.subr.mxu0 0.0
  %524 = vmatpush2.xpose.msra.mxu0 0.0
  %525 = vmatprep.subr.mxu0 0.0
  %526 = vmatpush2.xpose.msra.mxu0 0.0
  %527 = vmatprep.subr.mxu0 0.0
  %528 = vmatpush2.xpose.msra.mxu0 0.0
  %529 = vmatprep.subr.mxu0 0.0
  %530 = vmatpush2.xpose.msra.mxu0 0.0
  %531 = vmatprep.subr.mxu0 0.0
  %532 = vmatpush2.xpose.msra.mxu0 0.0
  %533 = vmatprep.subr.mxu0 0.0
  %534 = vmatpush2.xpose.msra.mxu0 0.0
  %535 = vmatprep.mubr.f32.mxu0 0.0
  %536 = vmatmul.mubr.f32.gmra.mxu0 %v467
  %v537 = vpop.f32.mrf.mxu0
  %v538 = vadd.f32 0.0, %v537
  %v539 = vpop.f32.mrf.mxu0
  %540 = vdwg.mxu0
  %v541 = vmul.f32 %v538, 0.35355338
  %v542 = vsel %vm205, %v541, -inf
  %543 = vmax.xlane.f32.xlu0 %v542
  %v544 = vpop.xlane.xlu0 %543
  %v545 = vsub.f32 %v541, %v544
  %v546 = vmul.f32 %v545, 1.442695
  %v547 = vpow.pop %v546
  %v548 = vsel %vm205, %v547, 0.0
  %549 = vadd.xlane.f32.xlu0 %v548
  %v550 = vpop.xlane.xlu0 %549
  %v551 = vrcp.pop %v550
  %v552 = vmul.f32 %v547, %v551
  %553 = vrot.lane.b32.xlu0 %v121, 48
  %v554 = vpop.permute.xlu0 %553
  %v556 = vsel %vm219, %v552, 0
  %v558 = vsel %vm223, %v554, 0
  %560 = vmatprep.subr.mxu0 0.0
  %561 = vmatpush1.msra.mxu0 0.0
  %562 = vmatprep.subr.mxu0 0.0
  %563 = vmatpush1.msra.mxu0 0.0
  %564 = vmatprep.subr.mxu0 0.0
  %565 = vmatpush1.msra.mxu0 0.0
  %566 = vmatprep.subr.mxu0 0.0
  %567 = vmatpush1.msra.mxu0 0.0
  %568 = vmatprep.subr.mxu0 0.0
  %569 = vmatpush1.msra.mxu0 0.0
  %570 = vmatprep.subr.mxu0 0.0
  %571 = vmatpush1.msra.mxu0 0.0
  %572 = vmatprep.subr.mxu0 0.0
  %573 = vmatpush1.msra.mxu0 0.0
  %574 = vmatprep.subr.mxu0 0.0
  %575 = vmatpush1.msra.mxu0 0.0
  %576 = vmatprep.subr.mxu0 0.0
  %577 = vmatpush1.msra.mxu0 0.0
  %578 = vmatprep.subr.mxu0 0.0
  %579 = vmatpush1.msra.mxu0 0.0
  %580 = vmatprep.subr.mxu0 0.0
  %581 = vmatpush1.msra.mxu0 0.0
  %582 = vmatprep.subr.mxu0 0.0
  %583 = vmatpush1.msra.mxu0 0.0
  %584 = vmatprep.subr.mxu0 0.0
  %585 = vmatpush1.msra.mxu0 0.0
  %586 = vmatprep.subr.mxu0 0.0
  %587 = vmatpush1.msra.mxu0 0.0
  %588 = vmatprep.subr.mxu0 0.0
  %589 = vmatpush1.msra.mxu0 0.0
  %590 = vmatprep.subr.mxu0 0.0
  %591 = vmatpush1.msra.mxu0 %v558
  %592 = vmatprep.subr.mxu0 0.0
  %593 = vmatpush2.msra.mxu0 0.0
  %594 = vmatprep.subr.mxu0 0.0
  %595 = vmatpush2.msra.mxu0 0.0
  %596 = vmatprep.subr.mxu0 0.0
  %597 = vmatpush2.msra.mxu0 0.0
  %598 = vmatprep.subr.mxu0 0.0
  %599 = vmatpush2.msra.mxu0 0.0
  %600 = vmatprep.subr.mxu0 0.0
  %601 = vmatpush2.msra.mxu0 0.0
  %602 = vmatprep.subr.mxu0 0.0
  %603 = vmatpush2.msra.mxu0 0.0
  %604 = vmatprep.subr.mxu0 0.0
  %605 = vmatpush2.msra.mxu0 0.0
  %606 = vmatprep.subr.mxu0 0.0
  %607 = vmatpush2.msra.mxu0 0.0
  %608 = vmatprep.subr.mxu0 0.0
  %609 = vmatpush2.msra.mxu0 0.0
  %610 = vmatprep.subr.mxu0 0.0
  %611 = vmatpush2.msra.mxu0 0.0
  %612 = vmatprep.subr.mxu0 0.0
  %613 = vmatpush2.msra.mxu0 0.0
  %614 = vmatprep.subr.mxu0 0.0
  %615 = vmatpush2.msra.mxu0 0.0
  %616 = vmatprep.subr.mxu0 0.0
  %617 = vmatpush2.msra.mxu0 0.0
  %618 = vmatprep.subr.mxu0 0.0
  %619 = vmatpush2.msra.mxu0 0.0
  %620 = vmatprep.subr.mxu0 0.0
  %621 = vmatpush2.msra.mxu0 0.0
  %622 = vmatprep.subr.mxu0 0.0
  %623 = vmatpush2.msra.mxu0 0.0
  %624 = vmatprep.mubr.f32.mxu0 0.0
  %625 = vmatmul.mubr.f32.gmra.mxu0 %v556
  %v626 = vpop.f32.mrf.mxu0
  %v627 = vadd.f32 0.0, %v626
  %v628 = vpop.f32.mrf.mxu0
  %629 = vdwg.mxu0
  %630 = vrot.lane.b32.xlu0 %v121, 104
  %v631 = vpop.permute.xlu0 %630
  %632 = vrot.lane.b32.xlu0 %v121, 72
  %v633 = vpop.permute.xlu0 %632
  %v634 = vsel %vm129, %v631, 0
  %v636 = vsel %vm129, %v633, 0
  %638 = vmatprep.subr.mxu0 0.0
  %639 = vmatpush1.xpose.msra.mxu0 0.0
  %640 = vmatprep.subr.mxu0 0.0
  %641 = vmatpush1.xpose.msra.mxu0 0.0
  %642 = vmatprep.subr.mxu0 0.0
  %643 = vmatpush1.xpose.msra.mxu0 0.0
  %644 = vmatprep.subr.mxu0 0.0
  %645 = vmatpush1.xpose.msra.mxu0 0.0
  %646 = vmatprep.subr.mxu0 0.0
  %647 = vmatpush1.xpose.msra.mxu0 0.0
  %648 = vmatprep.subr.mxu0 0.0
  %649 = vmatpush1.xpose.msra.mxu0 0.0
  %650 = vmatprep.subr.mxu0 0.0
  %651 = vmatpush1.xpose.msra.mxu0 0.0
  %652 = vmatprep.subr.mxu0 0.0
  %653 = vmatpush1.xpose.msra.mxu0 0.0
  %654 = vmatprep.subr.mxu0 0.0
  %655 = vmatpush1.xpose.msra.mxu0 0.0
  %656 = vmatprep.subr.mxu0 0.0
  %657 = vmatpush1.xpose.msra.mxu0 0.0
  %658 = vmatprep.subr.mxu0 0.0
  %659 = vmatpush1.xpose.msra.mxu0 0.0
  %660 = vmatprep.subr.mxu0 0.0
  %661 = vmatpush1.xpose.msra.mxu0 0.0
  %662 = vmatprep.subr.mxu0 0.0
  %663 = vmatpush1.xpose.msra.mxu0 0.0
  %664 = vmatprep.subr.mxu0 0.0
  %665 = vmatpush1.xpose.msra.mxu0 0.0
  %666 = vmatprep.subr.mxu0 0.0
  %667 = vmatpush1.xpose.msra.mxu0 0.0
  %668 = vmatprep.subr.mxu0 0.0
  %669 = vmatpush1.xpose.msra.mxu0 %v636
  %670 = vmatprep.subr.mxu0 0.0
  %671 = vmatpush2.xpose.msra.mxu0 0.0
  %672 = vmatprep.subr.mxu0 0.0
  %673 = vmatpush2.xpose.msra.mxu0 0.0
  %674 = vmatprep.subr.mxu0 0.0
  %675 = vmatpush2.xpose.msra.mxu0 0.0
  %676 = vmatprep.subr.mxu0 0.0
  %677 = vmatpush2.xpose.msra.mxu0 0.0
  %678 = vmatprep.subr.mxu0 0.0
  %679 = vmatpush2.xpose.msra.mxu0 0.0
  %680 = vmatprep.subr.mxu0 0.0
  %681 = vmatpush2.xpose.msra.mxu0 0.0
  %682 = vmatprep.subr.mxu0 0.0
  %683 = vmatpush2.xpose.msra.mxu0 0.0
  %684 = vmatprep.subr.mxu0 0.0
  %685 = vmatpush2.xpose.msra.mxu0 0.0
  %686 = vmatprep.subr.mxu0 0.0
  %687 = vmatpush2.xpose.msra.mxu0 0.0
  %688 = vmatprep.subr.mxu0 0.0
  %689 = vmatpush2.xpose.msra.mxu0 0.0
  %690 = vmatprep.subr.mxu0 0.0
  %691 = vmatpush2.xpose.msra.mxu0 0.0
  %692 = vmatprep.subr.mxu0 0.0
  %693 = vmatpush2.xpose.msra.mxu0 0.0
  %694 = vmatprep.subr.mxu0 0.0
  %695 = vmatpush2.xpose.msra.mxu0 0.0
  %696 = vmatprep.subr.mxu0 0.0
  %697 = vmatpush2.xpose.msra.mxu0 0.0
  %698 = vmatprep.subr.mxu0 0.0
  %699 = vmatpush2.xpose.msra.mxu0 0.0
  %700 = vmatprep.subr.mxu0 0.0
  %701 = vmatpush2.xpose.msra.mxu0 0.0
  %702 = vmatprep.mubr.f32.mxu0 0.0
  %703 = vmatmul.mubr.f32.gmra.mxu0 %v634
  %v704 = vpop.f32.mrf.mxu0
  %v705 = vadd.f32 0.0, %v704
  %v706 = vpop.f32.mrf.mxu0
  %707 = vdwg.mxu0
  %v708 = vmul.f32 %v705, 0.35355338
  %v709 = vsel %vm205, %v708, -inf
  %710 = vmax.xlane.f32.xlu0 %v709
  %v711 = vpop.xlane.xlu0 %710
  %v712 = vsub.f32 %v708, %v711
  %v713 = vmul.f32 %v712, 1.442695
  %v714 = vpow.pop %v713
  %v715 = vsel %vm205, %v714, 0.0
  %716 = vadd.xlane.f32.xlu0 %v715
  %v717 = vpop.xlane.xlu0 %716
  %v718 = vrcp.pop %v717
  %v719 = vmul.f32 %v714, %v718
  %720 = vrot.lane.b32.xlu0 %v121, 40
  %v721 = vpop.permute.xlu0 %720
  %v723 = vsel %vm219, %v719, 0
  %v725 = vsel %vm223, %v721, 0
  %727 = vmatprep.subr.mxu0 0.0
  %728 = vmatpush1.msra.mxu0 0.0
  %729 = vmatprep.subr.mxu0 0.0
  %730 = vmatpush1.msra.mxu0 0.0
  %731 = vmatprep.subr.mxu0 0.0
  %732 = vmatpush1.msra.mxu0 0.0
  %733 = vmatprep.subr.mxu0 0.0
  %734 = vmatpush1.msra.mxu0 0.0
  %735 = vmatprep.subr.mxu0 0.0
  %736 = vmatpush1.msra.mxu0 0.0
  %737 = vmatprep.subr.mxu0 0.0
  %738 = vmatpush1.msra.mxu0 0.0
  %739 = vmatprep.subr.mxu0 0.0
  %740 = vmatpush1.msra.mxu0 0.0
  %741 = vmatprep.subr.mxu0 0.0
  %742 = vmatpush1.msra.mxu0 0.0
  %743 = vmatprep.subr.mxu0 0.0
  %744 = vmatpush1.msra.mxu0 0.0
  %745 = vmatprep.subr.mxu0 0.0
  %746 = vmatpush1.msra.mxu0 0.0
  %747 = vmatprep.subr.mxu0 0.0
  %748 = vmatpush1.msra.mxu0 0.0
  %749 = vmatprep.subr.mxu0 0.0
  %750 = vmatpush1.msra.mxu0 0.0
  %751 = vmatprep.subr.mxu0 0.0
  %752 = vmatpush1.msra.mxu0 0.0
  %753 = vmatprep.subr.mxu0 0.0
  %754 = vmatpush1.msra.mxu0 0.0
  %755 = vmatprep.subr.mxu0 0.0
  %756 = vmatpush1.msra.mxu0 0.0
  %757 = vmatprep.subr.mxu0 0.0
  %758 = vmatpush1.msra.mxu0 %v725
  %759 = vmatprep.subr.mxu0 0.0
  %760 = vmatpush2.msra.mxu0 0.0
  %761 = vmatprep.subr.mxu0 0.0
  %762 = vmatpush2.msra.mxu0 0.0
  %763 = vmatprep.subr.mxu0 0.0
  %764 = vmatpush2.msra.mxu0 0.0
  %765 = vmatprep.subr.mxu0 0.0
  %766 = vmatpush2.msra.mxu0 0.0
  %767 = vmatprep.subr.mxu0 0.0
  %768 = vmatpush2.msra.mxu0 0.0
  %769 = vmatprep.subr.mxu0 0.0
  %770 = vmatpush2.msra.mxu0 0.0
  %771 = vmatprep.subr.mxu0 0.0
  %772 = vmatpush2.msra.mxu0 0.0
  %773 = vmatprep.subr.mxu0 0.0
  %774 = vmatpush2.msra.mxu0 0.0
  %775 = vmatprep.subr.mxu0 0.0
  %776 = vmatpush2.msra.mxu0 0.0
  %777 = vmatprep.subr.mxu0 0.0
  %778 = vmatpush2.msra.mxu0 0.0
  %779 = vmatprep.subr.mxu0 0.0
  %780 = vmatpush2.msra.mxu0 0.0
  %781 = vmatprep.subr.mxu0 0.0
  %782 = vmatpush2.msra.mxu0 0.0
  %783 = vmatprep.subr.mxu0 0.0
  %784 = vmatpush2.msra.mxu0 0.0
  %785 = vmatprep.subr.mxu0 0.0
  %786 = vmatpush2.msra.mxu0 0.0
  %787 = vmatprep.subr.mxu0 0.0
  %788 = vmatpush2.msra.mxu0 0.0
  %789 = vmatprep.subr.mxu0 0.0
  %790 = vmatpush2.msra.mxu0 0.0
  %791 = vmatprep.mubr.f32.mxu0 0.0
  %792 = vmatmul.mubr.f32.gmra.mxu0 %v723
  %v793 = vpop.f32.mrf.mxu0
  %v794 = vadd.f32 0.0, %v793
  %v795 = vpop.f32.mrf.mxu0
  %796 = vdwg.mxu0
  %798 = vrot.lane.b32.xlu0 %v460, 8
  %v799 = vpop.permute.xlu0 %798
  %802 = vrot.lane.b32.xlu0 %v627, 16
  %v803 = vpop.permute.xlu0 %802
  %806 = vrot.lane.b32.xlu0 %v794, 24
  %v807 = vpop.permute.xlu0 %806
  %v809 = vsel %vm129, %v293, %v799
  %vm810 = vcmask 130048
  %v811 = vsel %vm810, %v809, %v803
  %vm812 = vcmask 195584
  %v813 = vsel %vm812, %v811, %v807
  %v814 = vrot.slane %v121, 2
  %815 = vrot.lane.b32.xlu0 %v814, 96
  %v816 = vpop.permute.xlu0 %815
  %v817 = vsel %vm129, %v814, 0
  %v819 = vsel %vm129, %v816, 0
  %821 = vmatprep.subr.mxu0 0.0
  %822 = vmatpush1.xpose.msra.mxu0 0.0
  %823 = vmatprep.subr.mxu0 0.0
  %824 = vmatpush1.xpose.msra.mxu0 0.0
  %825 = vmatprep.subr.mxu0 0.0
  %826 = vmatpush1.xpose.msra.mxu0 0.0
  %827 = vmatprep.subr.mxu0 0.0
  %828 = vmatpush1.xpose.msra.mxu0 0.0
  %829 = vmatprep.subr.mxu0 0.0
  %830 = vmatpush1.xpose.msra.mxu0 0.0
  %831 = vmatprep.subr.mxu0 0.0
  %832 = vmatpush1.xpose.msra.mxu0 0.0
  %833 = vmatprep.subr.mxu0 0.0
  %834 = vmatpush1.xpose.msra.mxu0 0.0
  %835 = vmatprep.subr.mxu0 0.0
  %836 = vmatpush1.xpose.msra.mxu0 0.0
  %837 = vmatprep.subr.mxu0 0.0
  %838 = vmatpush1.xpose.msra.mxu0 0.0
  %839 = vmatprep.subr.mxu0 0.0
  %840 = vmatpush1.xpose.msra.mxu0 0.0
  %841 = vmatprep.subr.mxu0 0.0
  %842 = vmatpush1.xpose.msra.mxu0 0.0
  %843 = vmatprep.subr.mxu0 0.0
  %844 = vmatpush1.xpose.msra.mxu0 0.0
  %845 = vmatprep.subr.mxu0 0.0
  %846 = vmatpush1.xpose.msra.mxu0 0.0
  %847 = vmatprep.subr.mxu0 0.0
  %848 = vmatpush1.xpose.msra.mxu0 0.0
  %849 = vmatprep.subr.mxu0 0.0
  %850 = vmatpush1.xpose.msra.mxu0 0.0
  %851 = vmatprep.subr.mxu0 0.0
  %852 = vmatpush1.xpose.msra.mxu0 %v819
  %853 = vmatprep.subr.mxu0 0.0
  %854 = vmatpush2.xpose.msra.mxu0 0.0
  %855 = vmatprep.subr.mxu0 0.0
  %856 = vmatpush2.xpose.msra.mxu0 0.0
  %857 = vmatprep.subr.mxu0 0.0
  %858 = vmatpush2.xpose.msra.mxu0 0.0
  %859 = vmatprep.subr.mxu0 0.0
  %860 = vmatpush2.xpose.msra.mxu0 0.0
  %861 = vmatprep.subr.mxu0 0.0
  %862 = vmatpush2.xpose.msra.mxu0 0.0
  %863 = vmatprep.subr.mxu0 0.0
  %864 = vmatpush2.xpose.msra.mxu0 0.0
  %865 = vmatprep.subr.mxu0 0.0
  %866 = vmatpush2.xpose.msra.mxu0 0.0
  %867 = vmatprep.subr.mxu0 0.0
  %868 = vmatpush2.xpose.msra.mxu0 0.0
  %869 = vmatprep.subr.mxu0 0.0
  %870 = vmatpush2.xpose.msra.mxu0 0.0
  %871 = vmatprep.subr.mxu0 0.0
  %872 = vmatpush2.xpose.msra.mxu0 0.0
  %873 = vmatprep.subr.mxu0 0.0
  %874 = vmatpush2.xpose.msra.mxu0 0.0
  %875 = vmatprep.subr.mxu0 0.0
  %876 = vmatpush2.xpose.msra.mxu0 0.0
  %877 = vmatprep.subr.mxu0 0.0
  %878 = vmatpush2.xpose.msra.mxu0 0.0
  %879 = vmatprep.subr.mxu0 0.0
  %880 = vmatpush2.xpose.msra.mxu0 0.0
  %881 = vmatprep.subr.mxu0 0.0
  %882 = vmatpush2.xpose.msra.mxu0 0.0
  %883 = vmatprep.subr.mxu0 0.0
  %884 = vmatpush2.xpose.msra.mxu0 0.0
  %885 = vmatprep.mubr.f32.mxu0 0.0
  %886 = vmatmul.mubr.f32.gmra.mxu0 %v817
  %v887 = vpop.f32.mrf.mxu0
  %v888 = vadd.f32 0.0, %v887
  %v889 = vpop.f32.mrf.mxu0
  %890 = vdwg.mxu0
  %v891 = vmul.f32 %v888, 0.35355338
  %v892 = vsel %vm205, %v891, -inf
  %893 = vmax.xlane.f32.xlu0 %v892
  %v894 = vpop.xlane.xlu0 %893
  %v895 = vsub.f32 %v891, %v894
  %v896 = vmul.f32 %v895, 1.442695
  %v897 = vpow.pop %v896
  %v898 = vsel %vm205, %v897, 0.0
  %899 = vadd.xlane.f32.xlu0 %v898
  %v900 = vpop.xlane.xlu0 %899
  %v901 = vrcp.pop %v900
  %v902 = vmul.f32 %v897, %v901
  %903 = vrot.lane.b32.xlu0 %v814, 64
  %v904 = vpop.permute.xlu0 %903
  %v906 = vsel %vm219, %v902, 0
  %v908 = vsel %vm223, %v904, 0
  %910 = vmatprep.subr.mxu0 0.0
  %911 = vmatpush1.msra.mxu0 0.0
  %912 = vmatprep.subr.mxu0 0.0
  %913 = vmatpush1.msra.mxu0 0.0
  %914 = vmatprep.subr.mxu0 0.0
  %915 = vmatpush1.msra.mxu0 0.0
  %916 = vmatprep.subr.mxu0 0.0
  %917 = vmatpush1.msra.mxu0 0.0
  %918 = vmatprep.subr.mxu0 0.0
  %919 = vmatpush1.msra.mxu0 0.0
  %920 = vmatprep.subr.mxu0 0.0
  %921 = vmatpush1.msra.mxu0 0.0
  %922 = vmatprep.subr.mxu0 0.0
  %923 = vmatpush1.msra.mxu0 0.0
  %924 = vmatprep.subr.mxu0 0.0
  %925 = vmatpush1.msra.mxu0 0.0
  %926 = vmatprep.subr.mxu0 0.0
  %927 = vmatpush1.msra.mxu0 0.0
  %928 = vmatprep.subr.mxu0 0.0
  %929 = vmatpush1.msra.mxu0 0.0
  %930 = vmatprep.subr.mxu0 0.0
  %931 = vmatpush1.msra.mxu0 0.0
  %932 = vmatprep.subr.mxu0 0.0
  %933 = vmatpush1.msra.mxu0 0.0
  %934 = vmatprep.subr.mxu0 0.0
  %935 = vmatpush1.msra.mxu0 0.0
  %936 = vmatprep.subr.mxu0 0.0
  %937 = vmatpush1.msra.mxu0 0.0
  %938 = vmatprep.subr.mxu0 0.0
  %939 = vmatpush1.msra.mxu0 0.0
  %940 = vmatprep.subr.mxu0 0.0
  %941 = vmatpush1.msra.mxu0 %v908
  %942 = vmatprep.subr.mxu0 0.0
  %943 = vmatpush2.msra.mxu0 0.0
  %944 = vmatprep.subr.mxu0 0.0
  %945 = vmatpush2.msra.mxu0 0.0
  %946 = vmatprep.subr.mxu0 0.0
  %947 = vmatpush2.msra.mxu0 0.0
  %948 = vmatprep.subr.mxu0 0.0
  %949 = vmatpush2.msra.mxu0 0.0
  %950 = vmatprep.subr.mxu0 0.0
  %951 = vmatpush2.msra.mxu0 0.0
  %952 = vmatprep.subr.mxu0 0.0
  %953 = vmatpush2.msra.mxu0 0.0
  %954 = vmatprep.subr.mxu0 0.0
  %955 = vmatpush2.msra.mxu0 0.0
  %956 = vmatprep.subr.mxu0 0.0
  %957 = vmatpush2.msra.mxu0 0.0
  %958 = vmatprep.subr.mxu0 0.0
  %959 = vmatpush2.msra.mxu0 0.0
  %960 = vmatprep.subr.mxu0 0.0
  %961 = vmatpush2.msra.mxu0 0.0
  %962 = vmatprep.subr.mxu0 0.0
  %963 = vmatpush2.msra.mxu0 0.0
  %964 = vmatprep.subr.mxu0 0.0
  %965 = vmatpush2.msra.mxu0 0.0
  %966 = vmatprep.subr.mxu0 0.0
  %967 = vmatpush2.msra.mxu0 0.0
  %968 = vmatprep.subr.mxu0 0.0
  %969 = vmatpush2.msra.mxu0 0.0
  %970 = vmatprep.subr.mxu0 0.0
  %971 = vmatpush2.msra.mxu0 0.0
  %972 = vmatprep.subr.mxu0 0.0
  %973 = vmatpush2.msra.mxu0 0.0
  %974 = vmatprep.mubr.f32.mxu0 0.0
  %975 = vmatmul.mubr.f32.gmra.mxu0 %v906
  %v976 = vpop.f32.mrf.mxu0
  %v977 = vadd.f32 0.0, %v976
  %v978 = vpop.f32.mrf.mxu0
  %979 = vdwg.mxu0
  %980 = vrot.lane.b32.xlu0 %v814, 120
  %v981 = vpop.permute.xlu0 %980
  %982 = vrot.lane.b32.xlu0 %v814, 88
  %v983 = vpop.permute.xlu0 %982
  %v984 = vsel %vm129, %v981, 0
  %v986 = vsel %vm129, %v983, 0
  %988 = vmatprep.subr.mxu0 0.0
  %989 = vmatpush1.xpose.msra.mxu0 0.0
  %990 = vmatprep.subr.mxu0 0.0
  %991 = vmatpush1.xpose.msra.mxu0 0.0
  %992 = vmatprep.subr.mxu0 0.0
  %993 = vmatpush1.xpose.msra.mxu0 0.0
  %994 = vmatprep.subr.mxu0 0.0
  %995 = vmatpush1.xpose.msra.mxu0 0.0
  %996 = vmatprep.subr.mxu0 0.0
  %997 = vmatpush1.xpose.msra.mxu0 0.0
  %998 = vmatprep.subr.mxu0 0.0
  %999 = vmatpush1.xpose.msra.mxu0 0.0
  %1000 = vmatprep.subr.mxu0 0.0
  %1001 = vmatpush1.xpose.msra.mxu0 0.0
  %1002 = vmatprep.subr.mxu0 0.0
  %1003 = vmatpush1.xpose.msra.mxu0 0.0
  %1004 = vmatprep.subr.mxu0 0.0
  %1005 = vmatpush1.xpose.msra.mxu0 0.0
  %1006 = vmatprep.subr.mxu0 0.0
  %1007 = vmatpush1.xpose.msra.mxu0 0.0
  %1008 = vmatprep.subr.mxu0 0.0
  %1009 = vmatpush1.xpose.msra.mxu0 0.0
  %1010 = vmatprep.subr.mxu0 0.0
  %1011 = vmatpush1.xpose.msra.mxu0 0.0
  %1012 = vmatprep.subr.mxu0 0.0
  %1013 = vmatpush1.xpose.msra.mxu0 0.0
  %1014 = vmatprep.subr.mxu0 0.0
  %1015 = vmatpush1.xpose.msra.mxu0 0.0
  %1016 = vmatprep.subr.mxu0 0.0
  %1017 = vmatpush1.xpose.msra.mxu0 0.0
  %1018 = vmatprep.subr.mxu0 0.0
  %1019 = vmatpush1.xpose.msra.mxu0 %v986
  %1020 = vmatprep.subr.mxu0 0.0
  %1021 = vmatpush2.xpose.msra.mxu0 0.0
  %1022 = vmatprep.subr.mxu0 0.0
  %1023 = vmatpush2.xpose.msra.mxu0 0.0
  %1024 = vmatprep.subr.mxu0 0.0
  %1025 = vmatpush2.xpose.msra.mxu0 0.0
  %1026 = vmatprep.subr.mxu0 0.0
  %1027 = vmatpush2.xpose.msra.mxu0 0.0
  %1028 = vmatprep.subr.mxu0 0.0
  %1029 = vmatpush2.xpose.msra.mxu0 0.0
  %1030 = vmatprep.subr.mxu0 0.0
  %1031 = vmatpush2.xpose.msra.mxu0 0.0
  %1032 = vmatprep.subr.mxu0 0.0
  %1033 = vmatpush2.xpose.msra.mxu0 0.0
  %1034 = vmatprep.subr.mxu0 0.0
  %1035 = vmatpush2.xpose.msra.mxu0 0.0
  %1036 = vmatprep.subr.mxu0 0.0
  %1037 = vmatpush2.xpose.msra.mxu0 0.0
  %1038 = vmatprep.subr.mxu0 0.0
  %1039 = vmatpush2.xpose.msra.mxu0 0.0
  %1040 = vmatprep.subr.mxu0 0.0
  %1041 = vmatpush2.xpose.msra.mxu0 0.0
  %1042 = vmatprep.subr.mxu0 0.0
  %1043 = vmatpush2.xpose.msra.mxu0 0.0
  %1044 = vmatprep.subr.mxu0 0.0
  %1045 = vmatpush2.xpose.msra.mxu0 0.0
  %1046 = vmatprep.subr.mxu0 0.0
  %1047 = vmatpush2.xpose.msra.mxu0 0.0
  %1048 = vmatprep.subr.mxu0 0.0
  %1049 = vmatpush2.xpose.msra.mxu0 0.0
  %1050 = vmatprep.subr.mxu0 0.0
  %1051 = vmatpush2.xpose.msra.mxu0 0.0
  %1052 = vmatprep.mubr.f32.mxu0 0.0
  %1053 = vmatmul.mubr.f32.gmra.mxu0 %v984
  %v1054 = vpop.f32.mrf.mxu0
  %v1055 = vadd.f32 0.0, %v1054
  %v1056 = vpop.f32.mrf.mxu0
  %1057 = vdwg.mxu0
  %v1058 = vmul.f32 %v1055, 0.35355338
  %v1059 = vsel %vm205, %v1058, -inf
  %1060 = vmax.xlane.f32.xlu0 %v1059
  %v1061 = vpop.xlane.xlu0 %1060
  %v1062 = vsub.f32 %v1058, %v1061
  %v1063 = vmul.f32 %v1062, 1.442695
  %v1064 = vpow.pop %v1063
  %v1065 = vsel %vm205, %v1064, 0.0
  %1066 = vadd.xlane.f32.xlu0 %v1065
  %v1067 = vpop.xlane.xlu0 %1066
  %v1068 = vrcp.pop %v1067
  %v1069 = vmul.f32 %v1064, %v1068
  %1070 = vrot.lane.b32.xlu0 %v814, 56
  %v1071 = vpop.permute.xlu0 %1070
  %v1073 = vsel %vm219, %v1069, 0
  %v1075 = vsel %vm223, %v1071, 0
  %1077 = vmatprep.subr.mxu0 0.0
  %1078 = vmatpush1.msra.mxu0 0.0
  %1079 = vmatprep.subr.mxu0 0.0
  %1080 = vmatpush1.msra.mxu0 0.0
  %1081 = vmatprep.subr.mxu0 0.0
  %1082 = vmatpush1.msra.mxu0 0.0
  %1083 = vmatprep.subr.mxu0 0.0
  %1084 = vmatpush1.msra.mxu0 0.0
  %1085 = vmatprep.subr.mxu0 0.0
  %1086 = vmatpush1.msra.mxu0 0.0
  %1087 = vmatprep.subr.mxu0 0.0
  %1088 = vmatpush1.msra.mxu0 0.0
  %1089 = vmatprep.subr.mxu0 0.0
  %1090 = vmatpush1.msra.mxu0 0.0
  %1091 = vmatprep.subr.mxu0 0.0
  %1092 = vmatpush1.msra.mxu0 0.0
  %1093 = vmatprep.subr.mxu0 0.0
  %1094 = vmatpush1.msra.mxu0 0.0
  %1095 = vmatprep.subr.mxu0 0.0
  %1096 = vmatpush1.msra.mxu0 0.0
  %1097 = vmatprep.subr.mxu0 0.0
  %1098 = vmatpush1.msra.mxu0 0.0
  %1099 = vmatprep.subr.mxu0 0.0
  %1100 = vmatpush1.msra.mxu0 0.0
  %1101 = vmatprep.subr.mxu0 0.0
  %1102 = vmatpush1.msra.mxu0 0.0
  %1103 = vmatprep.subr.mxu0 0.0
  %1104 = vmatpush1.msra.mxu0 0.0
  %1105 = vmatprep.subr.mxu0 0.0
  %1106 = vmatpush1.msra.mxu0 0.0
  %1107 = vmatprep.subr.mxu0 0.0
  %1108 = vmatpush1.msra.mxu0 %v1075
  %1109 = vmatprep.subr.mxu0 0.0
  %1110 = vmatpush2.msra.mxu0 0.0
  %1111 = vmatprep.subr.mxu0 0.0
  %1112 = vmatpush2.msra.mxu0 0.0
  %1113 = vmatprep.subr.mxu0 0.0
  %1114 = vmatpush2.msra.mxu0 0.0
  %1115 = vmatprep.subr.mxu0 0.0
  %1116 = vmatpush2.msra.mxu0 0.0
  %1117 = vmatprep.subr.mxu0 0.0
  %1118 = vmatpush2.msra.mxu0 0.0
  %1119 = vmatprep.subr.mxu0 0.0
  %1120 = vmatpush2.msra.mxu0 0.0
  %1121 = vmatprep.subr.mxu0 0.0
  %1122 = vmatpush2.msra.mxu0 0.0
  %1123 = vmatprep.subr.mxu0 0.0
  %1124 = vmatpush2.msra.mxu0 0.0
  %1125 = vmatprep.subr.mxu0 0.0
  %1126 = vmatpush2.msra.mxu0 0.0
  %1127 = vmatprep.subr.mxu0 0.0
  %1128 = vmatpush2.msra.mxu0 0.0
  %1129 = vmatprep.subr.mxu0 0.0
  %1130 = vmatpush2.msra.mxu0 0.0
  %1131 = vmatprep.subr.mxu0 0.0
  %1132 = vmatpush2.msra.mxu0 0.0
  %1133 = vmatprep.subr.mxu0 0.0
  %1134 = vmatpush2.msra.mxu0 0.0
  %1135 = vmatprep.subr.mxu0 0.0
  %1136 = vmatpush2.msra.mxu0 0.0
  %1137 = vmatprep.subr.mxu0 0.0
  %1138 = vmatpush2.msra.mxu0 0.0
  %1139 = vmatprep.subr.mxu0 0.0
  %1140 = vmatpush2.msra.mxu0 0.0
  %1141 = vmatprep.mubr.f32.mxu0 0.0
  %1142 = vmatmul.mubr.f32.gmra.mxu0 %v1073
  %v1143 = vpop.f32.mrf.mxu0
  %v1144 = vadd.f32 0.0, %v1143
  %v1145 = vpop.f32.mrf.mxu0
  %1146 = vdwg.mxu0
  %1147 = vrot.lane.b32.xlu0 %v814, 112
  %v1148 = vpop.permute.xlu0 %1147
  %1149 = vrot.lane.b32.xlu0 %v814, 80
  %v1150 = vpop.permute.xlu0 %1149
  %v1151 = vsel %vm129, %v1148, 0
  %v1153 = vsel %vm129, %v1150, 0
  %1155 = vmatprep.subr.mxu0 0.0
  %1156 = vmatpush1.xpose.msra.mxu0 0.0
  %1157 = vmatprep.subr.mxu0 0.0
  %1158 = vmatpush1.xpose.msra.mxu0 0.0
  %1159 = vmatprep.subr.mxu0 0.0
  %1160 = vmatpush1.xpose.msra.mxu0 0.0
  %1161 = vmatprep.subr.mxu0 0.0
  %1162 = vmatpush1.xpose.msra.mxu0 0.0
  %1163 = vmatprep.subr.mxu0 0.0
  %1164 = vmatpush1.xpose.msra.mxu0 0.0
  %1165 = vmatprep.subr.mxu0 0.0
  %1166 = vmatpush1.xpose.msra.mxu0 0.0
  %1167 = vmatprep.subr.mxu0 0.0
  %1168 = vmatpush1.xpose.msra.mxu0 0.0
  %1169 = vmatprep.subr.mxu0 0.0
  %1170 = vmatpush1.xpose.msra.mxu0 0.0
  %1171 = vmatprep.subr.mxu0 0.0
  %1172 = vmatpush1.xpose.msra.mxu0 0.0
  %1173 = vmatprep.subr.mxu0 0.0
  %1174 = vmatpush1.xpose.msra.mxu0 0.0
  %1175 = vmatprep.subr.mxu0 0.0
  %1176 = vmatpush1.xpose.msra.mxu0 0.0
  %1177 = vmatprep.subr.mxu0 0.0
  %1178 = vmatpush1.xpose.msra.mxu0 0.0
  %1179 = vmatprep.subr.mxu0 0.0
  %1180 = vmatpush1.xpose.msra.mxu0 0.0
  %1181 = vmatprep.subr.mxu0 0.0
  %1182 = vmatpush1.xpose.msra.mxu0 0.0
  %1183 = vmatprep.subr.mxu0 0.0
  %1184 = vmatpush1.xpose.msra.mxu0 0.0
  %1185 = vmatprep.subr.mxu0 0.0
  %1186 = vmatpush1.xpose.msra.mxu0 %v1153
  %1187 = vmatprep.subr.mxu0 0.0
  %1188 = vmatpush2.xpose.msra.mxu0 0.0
  %1189 = vmatprep.subr.mxu0 0.0
  %1190 = vmatpush2.xpose.msra.mxu0 0.0
  %1191 = vmatprep.subr.mxu0 0.0
  %1192 = vmatpush2.xpose.msra.mxu0 0.0
  %1193 = vmatprep.subr.mxu0 0.0
  %1194 = vmatpush2.xpose.msra.mxu0 0.0
  %1195 = vmatprep.subr.mxu0 0.0
  %1196 = vmatpush2.xpose.msra.mxu0 0.0
  %1197 = vmatprep.subr.mxu0 0.0
  %1198 = vmatpush2.xpose.msra.mxu0 0.0
  %1199 = vmatprep.subr.mxu0 0.0
  %1200 = vmatpush2.xpose.msra.mxu0 0.0
  %1201 = vmatprep.subr.mxu0 0.0
  %1202 = vmatpush2.xpose.msra.mxu0 0.0
  %1203 = vmatprep.subr.mxu0 0.0
  %1204 = vmatpush2.xpose.msra.mxu0 0.0
  %1205 = vmatprep.subr.mxu0 0.0
  %1206 = vmatpush2.xpose.msra.mxu0 0.0
  %1207 = vmatprep.subr.mxu0 0.0
  %1208 = vmatpush2.xpose.msra.mxu0 0.0
  %1209 = vmatprep.subr.mxu0 0.0
  %1210 = vmatpush2.xpose.msra.mxu0 0.0
  %1211 = vmatprep.subr.mxu0 0.0
  %1212 = vmatpush2.xpose.msra.mxu0 0.0
  %1213 = vmatprep.subr.mxu0 0.0
  %1214 = vmatpush2.xpose.msra.mxu0 0.0
  %1215 = vmatprep.subr.mxu0 0.0
  %1216 = vmatpush2.xpose.msra.mxu0 0.0
  %1217 = vmatprep.subr.mxu0 0.0
  %1218 = vmatpush2.xpose.msra.mxu0 0.0
  %1219 = vmatprep.mubr.f32.mxu0 0.0
  %1220 = vmatmul.mubr.f32.gmra.mxu0 %v1151
  %v1221 = vpop.f32.mrf.mxu0
  %v1222 = vadd.f32 0.0, %v1221
  %v1223 = vpop.f32.mrf.mxu0
  %1224 = vdwg.mxu0
  %v1225 = vmul.f32 %v1222, 0.35355338
  %v1226 = vsel %vm205, %v1225, -inf
  %1227 = vmax.xlane.f32.xlu0 %v1226
  %v1228 = vpop.xlane.xlu0 %1227
  %v1229 = vsub.f32 %v1225, %v1228
  %v1230 = vmul.f32 %v1229, 1.442695
  %v1231 = vpow.pop %v1230
  %v1232 = vsel %vm205, %v1231, 0.0
  %1233 = vadd.xlane.f32.xlu0 %v1232
  %v1234 = vpop.xlane.xlu0 %1233
  %v1235 = vrcp.pop %v1234
  %v1236 = vmul.f32 %v1231, %v1235
  %1237 = vrot.lane.b32.xlu0 %v814, 48
  %v1238 = vpop.permute.xlu0 %1237
  %v1240 = vsel %vm219, %v1236, 0
  %v1242 = vsel %vm223, %v1238, 0
  %1244 = vmatprep.subr.mxu0 0.0
  %1245 = vmatpush1.msra.mxu0 0.0
  %1246 = vmatprep.subr.mxu0 0.0
  %1247 = vmatpush1.msra.mxu0 0.0
  %1248 = vmatprep.subr.mxu0 0.0
  %1249 = vmatpush1.msra.mxu0 0.0
  %1250 = vmatprep.subr.mxu0 0.0
  %1251 = vmatpush1.msra.mxu0 0.0
  %1252 = vmatprep.subr.mxu0 0.0
  %1253 = vmatpush1.msra.mxu0 0.0
  %1254 = vmatprep.subr.mxu0 0.0
  %1255 = vmatpush1.msra.mxu0 0.0
  %1256 = vmatprep.subr.mxu0 0.0
  %1257 = vmatpush1.msra.mxu0 0.0
  %1258 = vmatprep.subr.mxu0 0.0
  %1259 = vmatpush1.msra.mxu0 0.0
  %1260 = vmatprep.subr.mxu0 0.0
  %1261 = vmatpush1.msra.mxu0 0.0
  %1262 = vmatprep.subr.mxu0 0.0
  %1263 = vmatpush1.msra.mxu0 0.0
  %1264 = vmatprep.subr.mxu0 0.0
  %1265 = vmatpush1.msra.mxu0 0.0
  %1266 = vmatprep.subr.mxu0 0.0
  %1267 = vmatpush1.msra.mxu0 0.0
  %1268 = vmatprep.subr.mxu0 0.0
  %1269 = vmatpush1.msra.mxu0 0.0
  %1270 = vmatprep.subr.mxu0 0.0
  %1271 = vmatpush1.msra.mxu0 0.0
  %1272 = vmatprep.subr.mxu0 0.0
  %1273 = vmatpush1.msra.mxu0 0.0
  %1274 = vmatprep.subr.mxu0 0.0
  %1275 = vmatpush1.msra.mxu0 %v1242
  %1276 = vmatprep.subr.mxu0 0.0
  %1277 = vmatpush2.msra.mxu0 0.0
  %1278 = vmatprep.subr.mxu0 0.0
  %1279 = vmatpush2.msra.mxu0 0.0
  %1280 = vmatprep.subr.mxu0 0.0
  %1281 = vmatpush2.msra.mxu0 0.0
  %1282 = vmatprep.subr.mxu0 0.0
  %1283 = vmatpush2.msra.mxu0 0.0
  %1284 = vmatprep.subr.mxu0 0.0
  %1285 = vmatpush2.msra.mxu0 0.0
  %1286 = vmatprep.subr.mxu0 0.0
  %1287 = vmatpush2.msra.mxu0 0.0
  %1288 = vmatprep.subr.mxu0 0.0
  %1289 = vmatpush2.msra.mxu0 0.0
  %1290 = vmatprep.subr.mxu0 0.0
  %1291 = vmatpush2.msra.mxu0 0.0
  %1292 = vmatprep.subr.mxu0 0.0
  %1293 = vmatpush2.msra.mxu0 0.0
  %1294 = vmatprep.subr.mxu0 0.0
  %1295 = vmatpush2.msra.mxu0 0.0
  %1296 = vmatprep.subr.mxu0 0.0
  %1297 = vmatpush2.msra.mxu0 0.0
  %1298 = vmatprep.subr.mxu0 0.0
  %1299 = vmatpush2.msra.mxu0 0.0
  %1300 = vmatprep.subr.mxu0 0.0
  %1301 = vmatpush2.msra.mxu0 0.0
  %1302 = vmatprep.subr.mxu0 0.0
  %1303 = vmatpush2.msra.mxu0 0.0
  %1304 = vmatprep.subr.mxu0 0.0
  %1305 = vmatpush2.msra.mxu0 0.0
  %1306 = vmatprep.subr.mxu0 0.0
  %1307 = vmatpush2.msra.mxu0 0.0
  %1308 = vmatprep.mubr.f32.mxu0 0.0
  %1309 = vmatmul.mubr.f32.gmra.mxu0 %v1240
  %v1310 = vpop.f32.mrf.mxu0
  %v1311 = vadd.f32 0.0, %v1310
  %v1312 = vpop.f32.mrf.mxu0
  %1313 = vdwg.mxu0
  %1314 = vrot.lane.b32.xlu0 %v814, 104
  %v1315 = vpop.permute.xlu0 %1314
  %1316 = vrot.lane.b32.xlu0 %v814, 72
  %v1317 = vpop.permute.xlu0 %1316
  %v1318 = vsel %vm129, %v1315, 0
  %v1320 = vsel %vm129, %v1317, 0
  %1322 = vmatprep.subr.mxu0 0.0
  %1323 = vmatpush1.xpose.msra.mxu0 0.0
  %1324 = vmatprep.subr.mxu0 0.0
  %1325 = vmatpush1.xpose.msra.mxu0 0.0
  %1326 = vmatprep.subr.mxu0 0.0
  %1327 = vmatpush1.xpose.msra.mxu0 0.0
  %1328 = vmatprep.subr.mxu0 0.0
  %1329 = vmatpush1.xpose.msra.mxu0 0.0
  %1330 = vmatprep.subr.mxu0 0.0
  %1331 = vmatpush1.xpose.msra.mxu0 0.0
  %1332 = vmatprep.subr.mxu0 0.0
  %1333 = vmatpush1.xpose.msra.mxu0 0.0
  %1334 = vmatprep.subr.mxu0 0.0
  %1335 = vmatpush1.xpose.msra.mxu0 0.0
  %1336 = vmatprep.subr.mxu0 0.0
  %1337 = vmatpush1.xpose.msra.mxu0 0.0
  %1338 = vmatprep.subr.mxu0 0.0
  %1339 = vmatpush1.xpose.msra.mxu0 0.0
  %1340 = vmatprep.subr.mxu0 0.0
  %1341 = vmatpush1.xpose.msra.mxu0 0.0
  %1342 = vmatprep.subr.mxu0 0.0
  %1343 = vmatpush1.xpose.msra.mxu0 0.0
  %1344 = vmatprep.subr.mxu0 0.0
  %1345 = vmatpush1.xpose.msra.mxu0 0.0
  %1346 = vmatprep.subr.mxu0 0.0
  %1347 = vmatpush1.xpose.msra.mxu0 0.0
  %1348 = vmatprep.subr.mxu0 0.0
  %1349 = vmatpush1.xpose.msra.mxu0 0.0
  %1350 = vmatprep.subr.mxu0 0.0
  %1351 = vmatpush1.xpose.msra.mxu0 0.0
  %1352 = vmatprep.subr.mxu0 0.0
  %1353 = vmatpush1.xpose.msra.mxu0 %v1320
  %1354 = vmatprep.subr.mxu0 0.0
  %1355 = vmatpush2.xpose.msra.mxu0 0.0
  %1356 = vmatprep.subr.mxu0 0.0
  %1357 = vmatpush2.xpose.msra.mxu0 0.0
  %1358 = vmatprep.subr.mxu0 0.0
  %1359 = vmatpush2.xpose.msra.mxu0 0.0
  %1360 = vmatprep.subr.mxu0 0.0
  %1361 = vmatpush2.xpose.msra.mxu0 0.0
  %1362 = vmatprep.subr.mxu0 0.0
  %1363 = vmatpush2.xpose.msra.mxu0 0.0
  %1364 = vmatprep.subr.mxu0 0.0
  %1365 = vmatpush2.xpose.msra.mxu0 0.0
  %1366 = vmatprep.subr.mxu0 0.0
  %1367 = vmatpush2.xpose.msra.mxu0 0.0
  %1368 = vmatprep.subr.mxu0 0.0
  %1369 = vmatpush2.xpose.msra.mxu0 0.0
  %1370 = vmatprep.subr.mxu0 0.0
  %1371 = vmatpush2.xpose.msra.mxu0 0.0
  %1372 = vmatprep.subr.mxu0 0.0
  %1373 = vmatpush2.xpose.msra.mxu0 0.0
  %1374 = vmatprep.subr.mxu0 0.0
  %1375 = vmatpush2.xpose.msra.mxu0 0.0
  %1376 = vmatprep.subr.mxu0 0.0
  %1377 = vmatpush2.xpose.msra.mxu0 0.0
  %1378 = vmatprep.subr.mxu0 0.0
  %1379 = vmatpush2.xpose.msra.mxu0 0.0
  %1380 = vmatprep.subr.mxu0 0.0
  %1381 = vmatpush2.xpose.msra.mxu0 0.0
  %1382 = vmatprep.subr.mxu0 0.0
  %1383 = vmatpush2.xpose.msra.mxu0 0.0
  %1384 = vmatprep.subr.mxu0 0.0
  %1385 = vmatpush2.xpose.msra.mxu0 0.0
  %1386 = vmatprep.mubr.f32.mxu0 0.0
  %1387 = vmatmul.mubr.f32.gmra.mxu0 %v1318
  %v1388 = vpop.f32.mrf.mxu0
  %v1389 = vadd.f32 0.0, %v1388
  %v1390 = vpop.f32.mrf.mxu0
  %1391 = vdwg.mxu0
  %v1392 = vmul.f32 %v1389, 0.35355338
  %v1393 = vsel %vm205, %v1392, -inf
  %1394 = vmax.xlane.f32.xlu0 %v1393
  %v1395 = vpop.xlane.xlu0 %1394
  %v1396 = vsub.f32 %v1392, %v1395
  %v1397 = vmul.f32 %v1396, 1.442695
  %v1398 = vpow.pop %v1397
  %v1399 = vsel %vm205, %v1398, 0.0
  %1400 = vadd.xlane.f32.xlu0 %v1399
  %v1401 = vpop.xlane.xlu0 %1400
  %v1402 = vrcp.pop %v1401
  %v1403 = vmul.f32 %v1398, %v1402
  %1404 = vrot.lane.b32.xlu0 %v814, 40
  %v1405 = vpop.permute.xlu0 %1404
  %v1407 = vsel %vm219, %v1403, 0
  %v1409 = vsel %vm223, %v1405, 0
  %1411 = vmatprep.subr.mxu0 0.0
  %1412 = vmatpush1.msra.mxu0 0.0
  %1413 = vmatprep.subr.mxu0 0.0
  %1414 = vmatpush1.msra.mxu0 0.0
  %1415 = vmatprep.subr.mxu0 0.0
  %1416 = vmatpush1.msra.mxu0 0.0
  %1417 = vmatprep.subr.mxu0 0.0
  %1418 = vmatpush1.msra.mxu0 0.0
  %1419 = vmatprep.subr.mxu0 0.0
  %1420 = vmatpush1.msra.mxu0 0.0
  %1421 = vmatprep.subr.mxu0 0.0
  %1422 = vmatpush1.msra.mxu0 0.0
  %1423 = vmatprep.subr.mxu0 0.0
  %1424 = vmatpush1.msra.mxu0 0.0
  %1425 = vmatprep.subr.mxu0 0.0
  %1426 = vmatpush1.msra.mxu0 0.0
  %1427 = vmatprep.subr.mxu0 0.0
  %1428 = vmatpush1.msra.mxu0 0.0
  %1429 = vmatprep.subr.mxu0 0.0
  %1430 = vmatpush1.msra.mxu0 0.0
  %1431 = vmatprep.subr.mxu0 0.0
  %1432 = vmatpush1.msra.mxu0 0.0
  %1433 = vmatprep.subr.mxu0 0.0
  %1434 = vmatpush1.msra.mxu0 0.0
  %1435 = vmatprep.subr.mxu0 0.0
  %1436 = vmatpush1.msra.mxu0 0.0
  %1437 = vmatprep.subr.mxu0 0.0
  %1438 = vmatpush1.msra.mxu0 0.0
  %1439 = vmatprep.subr.mxu0 0.0
  %1440 = vmatpush1.msra.mxu0 0.0
  %1441 = vmatprep.subr.mxu0 0.0
  %1442 = vmatpush1.msra.mxu0 %v1409
  %1443 = vmatprep.subr.mxu0 0.0
  %1444 = vmatpush2.msra.mxu0 0.0
  %1445 = vmatprep.subr.mxu0 0.0
  %1446 = vmatpush2.msra.mxu0 0.0
  %1447 = vmatprep.subr.mxu0 0.0
  %1448 = vmatpush2.msra.mxu0 0.0
  %1449 = vmatprep.subr.mxu0 0.0
  %1450 = vmatpush2.msra.mxu0 0.0
  %1451 = vmatprep.subr.mxu0 0.0
  %1452 = vmatpush2.msra.mxu0 0.0
  %1453 = vmatprep.subr.mxu0 0.0
  %1454 = vmatpush2.msra.mxu0 0.0
  %1455 = vmatprep.subr.mxu0 0.0
  %1456 = vmatpush2.msra.mxu0 0.0
  %1457 = vmatprep.subr.mxu0 0.0
  %1458 = vmatpush2.msra.mxu0 0.0
  %1459 = vmatprep.subr.mxu0 0.0
  %1460 = vmatpush2.msra.mxu0 0.0
  %1461 = vmatprep.subr.mxu0 0.0
  %1462 = vmatpush2.msra.mxu0 0.0
  %1463 = vmatprep.subr.mxu0 0.0
  %1464 = vmatpush2.msra.mxu0 0.0
  %1465 = vmatprep.subr.mxu0 0.0
  %1466 = vmatpush2.msra.mxu0 0.0
  %1467 = vmatprep.subr.mxu0 0.0
  %1468 = vmatpush2.msra.mxu0 0.0
  %1469 = vmatprep.subr.mxu0 0.0
  %1470 = vmatpush2.msra.mxu0 0.0
  %1471 = vmatprep.subr.mxu0 0.0
  %1472 = vmatpush2.msra.mxu0 0.0
  %1473 = vmatprep.subr.mxu0 0.0
  %1474 = vmatpush2.msra.mxu0 0.0
  %1475 = vmatprep.mubr.f32.mxu0 0.0
  %1476 = vmatmul.mubr.f32.gmra.mxu0 %v1407
  %v1477 = vpop.f32.mrf.mxu0
  %v1478 = vadd.f32 0.0, %v1477
  %v1479 = vpop.f32.mrf.mxu0
  %1480 = vdwg.mxu0
  %1482 = vrot.lane.b32.xlu0 %v1144, 8
  %v1483 = vpop.permute.xlu0 %1482
  %1486 = vrot.lane.b32.xlu0 %v1311, 16
  %v1487 = vpop.permute.xlu0 %1486
  %1490 = vrot.lane.b32.xlu0 %v1478, 24
  %v1491 = vpop.permute.xlu0 %1490
  %v1493 = vsel %vm129, %v977, %v1483
  %v1494 = vsel %vm810, %v1493, %v1487
  %v1495 = vsel %vm812, %v1494, %v1491
  %v1496 = vrot.slane %v121, 4
  %1497 = vrot.lane.b32.xlu0 %v1496, 96
  %v1498 = vpop.permute.xlu0 %1497
  %v1499 = vsel %vm129, %v1496, 0
  %v1501 = vsel %vm129, %v1498, 0
  %1503 = vmatprep.subr.mxu0 0.0
  %1504 = vmatpush1.xpose.msra.mxu0 0.0
  %1505 = vmatprep.subr.mxu0 0.0
  %1506 = vmatpush1.xpose.msra.mxu0 0.0
  %1507 = vmatprep.subr.mxu0 0.0
  %1508 = vmatpush1.xpose.msra.mxu0 0.0
  %1509 = vmatprep.subr.mxu0 0.0
  %1510 = vmatpush1.xpose.msra.mxu0 0.0
  %1511 = vmatprep.subr.mxu0 0.0
  %1512 = vmatpush1.xpose.msra.mxu0 0.0
  %1513 = vmatprep.subr.mxu0 0.0
  %1514 = vmatpush1.xpose.msra.mxu0 0.0
  %1515 = vmatprep.subr.mxu0 0.0
  %1516 = vmatpush1.xpose.msra.mxu0 0.0
  %1517 = vmatprep.subr.mxu0 0.0
  %1518 = vmatpush1.xpose.msra.mxu0 0.0
  %1519 = vmatprep.subr.mxu0 0.0
  %1520 = vmatpush1.xpose.msra.mxu0 0.0
  %1521 = vmatprep.subr.mxu0 0.0
  %1522 = vmatpush1.xpose.msra.mxu0 0.0
  %1523 = vmatprep.subr.mxu0 0.0
  %1524 = vmatpush1.xpose.msra.mxu0 0.0
  %1525 = vmatprep.subr.mxu0 0.0
  %1526 = vmatpush1.xpose.msra.mxu0 0.0
  %1527 = vmatprep.subr.mxu0 0.0
  %1528 = vmatpush1.xpose.msra.mxu0 0.0
  %1529 = vmatprep.subr.mxu0 0.0
  %1530 = vmatpush1.xpose.msra.mxu0 0.0
  %1531 = vmatprep.subr.mxu0 0.0
  %1532 = vmatpush1.xpose.msra.mxu0 0.0
  %1533 = vmatprep.subr.mxu0 0.0
  %1534 = vmatpush1.xpose.msra.mxu0 %v1501
  %1535 = vmatprep.subr.mxu0 0.0
  %1536 = vmatpush2.xpose.msra.mxu0 0.0
  %1537 = vmatprep.subr.mxu0 0.0
  %1538 = vmatpush2.xpose.msra.mxu0 0.0
  %1539 = vmatprep.subr.mxu0 0.0
  %1540 = vmatpush2.xpose.msra.mxu0 0.0
  %1541 = vmatprep.subr.mxu0 0.0
  %1542 = vmatpush2.xpose.msra.mxu0 0.0
  %1543 = vmatprep.subr.mxu0 0.0
  %1544 = vmatpush2.xpose.msra.mxu0 0.0
  %1545 = vmatprep.subr.mxu0 0.0
  %1546 = vmatpush2.xpose.msra.mxu0 0.0
  %1547 = vmatprep.subr.mxu0 0.0
  %1548 = vmatpush2.xpose.msra.mxu0 0.0
  %1549 = vmatprep.subr.mxu0 0.0
  %1550 = vmatpush2.xpose.msra.mxu0 0.0
  %1551 = vmatprep.subr.mxu0 0.0
  %1552 = vmatpush2.xpose.msra.mxu0 0.0
  %1553 = vmatprep.subr.mxu0 0.0
  %1554 = vmatpush2.xpose.msra.mxu0 0.0
  %1555 = vmatprep.subr.mxu0 0.0
  %1556 = vmatpush2.xpose.msra.mxu0 0.0
  %1557 = vmatprep.subr.mxu0 0.0
  %1558 = vmatpush2.xpose.msra.mxu0 0.0
  %1559 = vmatprep.subr.mxu0 0.0
  %1560 = vmatpush2.xpose.msra.mxu0 0.0
  %1561 = vmatprep.subr.mxu0 0.0
  %1562 = vmatpush2.xpose.msra.mxu0 0.0
  %1563 = vmatprep.subr.mxu0 0.0
  %1564 = vmatpush2.xpose.msra.mxu0 0.0
  %1565 = vmatprep.subr.mxu0 0.0
  %1566 = vmatpush2.xpose.msra.mxu0 0.0
  %1567 = vmatprep.mubr.f32.mxu0 0.0
  %1568 = vmatmul.mubr.f32.gmra.mxu0 %v1499
  %v1569 = vpop.f32.mrf.mxu0
  %v1570 = vadd.f32 0.0, %v1569
  %v1571 = vpop.f32.mrf.mxu0
  %1572 = vdwg.mxu0
  %v1573 = vmul.f32 %v1570, 0.35355338
  %v1574 = vsel %vm205, %v1573, -inf
  %1575 = vmax.xlane.f32.xlu0 %v1574
  %v1576 = vpop.xlane.xlu0 %1575
  %v1577 = vsub.f32 %v1573, %v1576
  %v1578 = vmul.f32 %v1577, 1.442695
  %v1579 = vpow.pop %v1578
  %v1580 = vsel %vm205, %v1579, 0.0
  %1581 = vadd.xlane.f32.xlu0 %v1580
  %v1582 = vpop.xlane.xlu0 %1581
  %v1583 = vrcp.pop %v1582
  %v1584 = vmul.f32 %v1579, %v1583
  %1585 = vrot.lane.b32.xlu0 %v1496, 64
  %v1586 = vpop.permute.xlu0 %1585
  %v1588 = vsel %vm219, %v1584, 0
  %v1590 = vsel %vm223, %v1586, 0
  %1592 = vmatprep.subr.mxu0 0.0
  %1593 = vmatpush1.msra.mxu0 0.0
  %1594 = vmatprep.subr.mxu0 0.0
  %1595 = vmatpush1.msra.mxu0 0.0
  %1596 = vmatprep.subr.mxu0 0.0
  %1597 = vmatpush1.msra.mxu0 0.0
  %1598 = vmatprep.subr.mxu0 0.0
  %1599 = vmatpush1.msra.mxu0 0.0
  %1600 = vmatprep.subr.mxu0 0.0
  %1601 = vmatpush1.msra.mxu0 0.0
  %1602 = vmatprep.subr.mxu0 0.0
  %1603 = vmatpush1.msra.mxu0 0.0
  %1604 = vmatprep.subr.mxu0 0.0
  %1605 = vmatpush1.msra.mxu0 0.0
  %1606 = vmatprep.subr.mxu0 0.0
  %1607 = vmatpush1.msra.mxu0 0.0
  %1608 = vmatprep.subr.mxu0 0.0
  %1609 = vmatpush1.msra.mxu0 0.0
  %1610 = vmatprep.subr.mxu0 0.0
  %1611 = vmatpush1.msra.mxu0 0.0
  %1612 = vmatprep.subr.mxu0 0.0
  %1613 = vmatpush1.msra.mxu0 0.0
  %1614 = vmatprep.subr.mxu0 0.0
  %1615 = vmatpush1.msra.mxu0 0.0
  %1616 = vmatprep.subr.mxu0 0.0
  %1617 = vmatpush1.msra.mxu0 0.0
  %1618 = vmatprep.subr.mxu0 0.0
  %1619 = vmatpush1.msra.mxu0 0.0
  %1620 = vmatprep.subr.mxu0 0.0
  %1621 = vmatpush1.msra.mxu0 0.0
  %1622 = vmatprep.subr.mxu0 0.0
  %1623 = vmatpush1.msra.mxu0 %v1590
  %1624 = vmatprep.subr.mxu0 0.0
  %1625 = vmatpush2.msra.mxu0 0.0
  %1626 = vmatprep.subr.mxu0 0.0
  %1627 = vmatpush2.msra.mxu0 0.0
  %1628 = vmatprep.subr.mxu0 0.0
  %1629 = vmatpush2.msra.mxu0 0.0
  %1630 = vmatprep.subr.mxu0 0.0
  %1631 = vmatpush2.msra.mxu0 0.0
  %1632 = vmatprep.subr.mxu0 0.0
  %1633 = vmatpush2.msra.mxu0 0.0
  %1634 = vmatprep.subr.mxu0 0.0
  %1635 = vmatpush2.msra.mxu0 0.0
  %1636 = vmatprep.subr.mxu0 0.0
  %1637 = vmatpush2.msra.mxu0 0.0
  %1638 = vmatprep.subr.mxu0 0.0
  %1639 = vmatpush2.msra.mxu0 0.0
  %1640 = vmatprep.subr.mxu0 0.0
  %1641 = vmatpush2.msra.mxu0 0.0
  %1642 = vmatprep.subr.mxu0 0.0
  %1643 = vmatpush2.msra.mxu0 0.0
  %1644 = vmatprep.subr.mxu0 0.0
  %1645 = vmatpush2.msra.mxu0 0.0
  %1646 = vmatprep.subr.mxu0 0.0
  %1647 = vmatpush2.msra.mxu0 0.0
  %1648 = vmatprep.subr.mxu0 0.0
  %1649 = vmatpush2.msra.mxu0 0.0
  %1650 = vmatprep.subr.mxu0 0.0
  %1651 = vmatpush2.msra.mxu0 0.0
  %1652 = vmatprep.subr.mxu0 0.0
  %1653 = vmatpush2.msra.mxu0 0.0
  %1654 = vmatprep.subr.mxu0 0.0
  %1655 = vmatpush2.msra.mxu0 0.0
  %1656 = vmatprep.mubr.f32.mxu0 0.0
  %1657 = vmatmul.mubr.f32.gmra.mxu0 %v1588
  %v1658 = vpop.f32.mrf.mxu0
  %v1659 = vadd.f32 0.0, %v1658
  %v1660 = vpop.f32.mrf.mxu0
  %1661 = vdwg.mxu0
  %1662 = vrot.lane.b32.xlu0 %v1496, 120
  %v1663 = vpop.permute.xlu0 %1662
  %1664 = vrot.lane.b32.xlu0 %v1496, 88
  %v1665 = vpop.permute.xlu0 %1664
  %v1666 = vsel %vm129, %v1663, 0
  %v1668 = vsel %vm129, %v1665, 0
  %1670 = vmatprep.subr.mxu0 0.0
  %1671 = vmatpush1.xpose.msra.mxu0 0.0
  %1672 = vmatprep.subr.mxu0 0.0
  %1673 = vmatpush1.xpose.msra.mxu0 0.0
  %1674 = vmatprep.subr.mxu0 0.0
  %1675 = vmatpush1.xpose.msra.mxu0 0.0
  %1676 = vmatprep.subr.mxu0 0.0
  %1677 = vmatpush1.xpose.msra.mxu0 0.0
  %1678 = vmatprep.subr.mxu0 0.0
  %1679 = vmatpush1.xpose.msra.mxu0 0.0
  %1680 = vmatprep.subr.mxu0 0.0
  %1681 = vmatpush1.xpose.msra.mxu0 0.0
  %1682 = vmatprep.subr.mxu0 0.0
  %1683 = vmatpush1.xpose.msra.mxu0 0.0
  %1684 = vmatprep.subr.mxu0 0.0
  %1685 = vmatpush1.xpose.msra.mxu0 0.0
  %1686 = vmatprep.subr.mxu0 0.0
  %1687 = vmatpush1.xpose.msra.mxu0 0.0
  %1688 = vmatprep.subr.mxu0 0.0
  %1689 = vmatpush1.xpose.msra.mxu0 0.0
  %1690 = vmatprep.subr.mxu0 0.0
  %1691 = vmatpush1.xpose.msra.mxu0 0.0
  %1692 = vmatprep.subr.mxu0 0.0
  %1693 = vmatpush1.xpose.msra.mxu0 0.0
  %1694 = vmatprep.subr.mxu0 0.0
  %1695 = vmatpush1.xpose.msra.mxu0 0.0
  %1696 = vmatprep.subr.mxu0 0.0
  %1697 = vmatpush1.xpose.msra.mxu0 0.0
  %1698 = vmatprep.subr.mxu0 0.0
  %1699 = vmatpush1.xpose.msra.mxu0 0.0
  %1700 = vmatprep.subr.mxu0 0.0
  %1701 = vmatpush1.xpose.msra.mxu0 %v1668
  %1702 = vmatprep.subr.mxu0 0.0
  %1703 = vmatpush2.xpose.msra.mxu0 0.0
  %1704 = vmatprep.subr.mxu0 0.0
  %1705 = vmatpush2.xpose.msra.mxu0 0.0
  %1706 = vmatprep.subr.mxu0 0.0
  %1707 = vmatpush2.xpose.msra.mxu0 0.0
  %1708 = vmatprep.subr.mxu0 0.0
  %1709 = vmatpush2.xpose.msra.mxu0 0.0
  %1710 = vmatprep.subr.mxu0 0.0
  %1711 = vmatpush2.xpose.msra.mxu0 0.0
  %1712 = vmatprep.subr.mxu0 0.0
  %1713 = vmatpush2.xpose.msra.mxu0 0.0
  %1714 = vmatprep.subr.mxu0 0.0
  %1715 = vmatpush2.xpose.msra.mxu0 0.0
  %1716 = vmatprep.subr.mxu0 0.0
  %1717 = vmatpush2.xpose.msra.mxu0 0.0
  %1718 = vmatprep.subr.mxu0 0.0
  %1719 = vmatpush2.xpose.msra.mxu0 0.0
  %1720 = vmatprep.subr.mxu0 0.0
  %1721 = vmatpush2.xpose.msra.mxu0 0.0
  %1722 = vmatprep.subr.mxu0 0.0
  %1723 = vmatpush2.xpose.msra.mxu0 0.0
  %1724 = vmatprep.subr.mxu0 0.0
  %1725 = vmatpush2.xpose.msra.mxu0 0.0
  %1726 = vmatprep.subr.mxu0 0.0
  %1727 = vmatpush2.xpose.msra.mxu0 0.0
  %1728 = vmatprep.subr.mxu0 0.0
  %1729 = vmatpush2.xpose.msra.mxu0 0.0
  %1730 = vmatprep.subr.mxu0 0.0
  %1731 = vmatpush2.xpose.msra.mxu0 0.0
  %1732 = vmatprep.subr.mxu0 0.0
  %1733 = vmatpush2.xpose.msra.mxu0 0.0
  %1734 = vmatprep.mubr.f32.mxu0 0.0
  %1735 = vmatmul.mubr.f32.gmra.mxu0 %v1666
  %v1736 = vpop.f32.mrf.mxu0
  %v1737 = vadd.f32 0.0, %v1736
  %v1738 = vpop.f32.mrf.mxu0
  %1739 = vdwg.mxu0
  %v1740 = vmul.f32 %v1737, 0.35355338
  %v1741 = vsel %vm205, %v1740, -inf
  %1742 = vmax.xlane.f32.xlu0 %v1741
  %v1743 = vpop.xlane.xlu0 %1742
  %v1744 = vsub.f32 %v1740, %v1743
  %v1745 = vmul.f32 %v1744, 1.442695
  %v1746 = vpow.pop %v1745
  %v1747 = vsel %vm205, %v1746, 0.0
  %1748 = vadd.xlane.f32.xlu0 %v1747
  %v1749 = vpop.xlane.xlu0 %1748
  %v1750 = vrcp.pop %v1749
  %v1751 = vmul.f32 %v1746, %v1750
  %1752 = vrot.lane.b32.xlu0 %v1496, 56
  %v1753 = vpop.permute.xlu0 %1752
  %v1755 = vsel %vm219, %v1751, 0
  %v1757 = vsel %vm223, %v1753, 0
  %1759 = vmatprep.subr.mxu0 0.0
  %1760 = vmatpush1.msra.mxu0 0.0
  %1761 = vmatprep.subr.mxu0 0.0
  %1762 = vmatpush1.msra.mxu0 0.0
  %1763 = vmatprep.subr.mxu0 0.0
  %1764 = vmatpush1.msra.mxu0 0.0
  %1765 = vmatprep.subr.mxu0 0.0
  %1766 = vmatpush1.msra.mxu0 0.0
  %1767 = vmatprep.subr.mxu0 0.0
  %1768 = vmatpush1.msra.mxu0 0.0
  %1769 = vmatprep.subr.mxu0 0.0
  %1770 = vmatpush1.msra.mxu0 0.0
  %1771 = vmatprep.subr.mxu0 0.0
  %1772 = vmatpush1.msra.mxu0 0.0
  %1773 = vmatprep.subr.mxu0 0.0
  %1774 = vmatpush1.msra.mxu0 0.0
  %1775 = vmatprep.subr.mxu0 0.0
  %1776 = vmatpush1.msra.mxu0 0.0
  %1777 = vmatprep.subr.mxu0 0.0
  %1778 = vmatpush1.msra.mxu0 0.0
  %1779 = vmatprep.subr.mxu0 0.0
  %1780 = vmatpush1.msra.mxu0 0.0
  %1781 = vmatprep.subr.mxu0 0.0
  %1782 = vmatpush1.msra.mxu0 0.0
  %1783 = vmatprep.subr.mxu0 0.0
  %1784 = vmatpush1.msra.mxu0 0.0
  %1785 = vmatprep.subr.mxu0 0.0
  %1786 = vmatpush1.msra.mxu0 0.0
  %1787 = vmatprep.subr.mxu0 0.0
  %1788 = vmatpush1.msra.mxu0 0.0
  %1789 = vmatprep.subr.mxu0 0.0
  %1790 = vmatpush1.msra.mxu0 %v1757
  %1791 = vmatprep.subr.mxu0 0.0
  %1792 = vmatpush2.msra.mxu0 0.0
  %1793 = vmatprep.subr.mxu0 0.0
  %1794 = vmatpush2.msra.mxu0 0.0
  %1795 = vmatprep.subr.mxu0 0.0
  %1796 = vmatpush2.msra.mxu0 0.0
  %1797 = vmatprep.subr.mxu0 0.0
  %1798 = vmatpush2.msra.mxu0 0.0
  %1799 = vmatprep.subr.mxu0 0.0
  %1800 = vmatpush2.msra.mxu0 0.0
  %1801 = vmatprep.subr.mxu0 0.0
  %1802 = vmatpush2.msra.mxu0 0.0
  %1803 = vmatprep.subr.mxu0 0.0
  %1804 = vmatpush2.msra.mxu0 0.0
  %1805 = vmatprep.subr.mxu0 0.0
  %1806 = vmatpush2.msra.mxu0 0.0
  %1807 = vmatprep.subr.mxu0 0.0
  %1808 = vmatpush2.msra.mxu0 0.0
  %1809 = vmatprep.subr.mxu0 0.0
  %1810 = vmatpush2.msra.mxu0 0.0
  %1811 = vmatprep.subr.mxu0 0.0
  %1812 = vmatpush2.msra.mxu0 0.0
  %1813 = vmatprep.subr.mxu0 0.0
  %1814 = vmatpush2.msra.mxu0 0.0
  %1815 = vmatprep.subr.mxu0 0.0
  %1816 = vmatpush2.msra.mxu0 0.0
  %1817 = vmatprep.subr.mxu0 0.0
  %1818 = vmatpush2.msra.mxu0 0.0
  %1819 = vmatprep.subr.mxu0 0.0
  %1820 = vmatpush2.msra.mxu0 0.0
  %1821 = vmatprep.subr.mxu0 0.0
  %1822 = vmatpush2.msra.mxu0 0.0
  %1823 = vmatprep.mubr.f32.mxu0 0.0
  %1824 = vmatmul.mubr.f32.gmra.mxu0 %v1755
  %v1825 = vpop.f32.mrf.mxu0
  %v1826 = vadd.f32 0.0, %v1825
  %v1827 = vpop.f32.mrf.mxu0
  %1828 = vdwg.mxu0
  %1829 = vrot.lane.b32.xlu0 %v1496, 112
  %v1830 = vpop.permute.xlu0 %1829
  %1831 = vrot.lane.b32.xlu0 %v1496, 80
  %v1832 = vpop.permute.xlu0 %1831
  %v1833 = vsel %vm129, %v1830, 0
  %v1835 = vsel %vm129, %v1832, 0
  %1837 = vmatprep.subr.mxu0 0.0
  %1838 = vmatpush1.xpose.msra.mxu0 0.0
  %1839 = vmatprep.subr.mxu0 0.0
  %1840 = vmatpush1.xpose.msra.mxu0 0.0
  %1841 = vmatprep.subr.mxu0 0.0
  %1842 = vmatpush1.xpose.msra.mxu0 0.0
  %1843 = vmatprep.subr.mxu0 0.0
  %1844 = vmatpush1.xpose.msra.mxu0 0.0
  %1845 = vmatprep.subr.mxu0 0.0
  %1846 = vmatpush1.xpose.msra.mxu0 0.0
  %1847 = vmatprep.subr.mxu0 0.0
  %1848 = vmatpush1.xpose.msra.mxu0 0.0
  %1849 = vmatprep.subr.mxu0 0.0
  %1850 = vmatpush1.xpose.msra.mxu0 0.0
  %1851 = vmatprep.subr.mxu0 0.0
  %1852 = vmatpush1.xpose.msra.mxu0 0.0
  %1853 = vmatprep.subr.mxu0 0.0
  %1854 = vmatpush1.xpose.msra.mxu0 0.0
  %1855 = vmatprep.subr.mxu0 0.0
  %1856 = vmatpush1.xpose.msra.mxu0 0.0
  %1857 = vmatprep.subr.mxu0 0.0
  %1858 = vmatpush1.xpose.msra.mxu0 0.0
  %1859 = vmatprep.subr.mxu0 0.0
  %1860 = vmatpush1.xpose.msra.mxu0 0.0
  %1861 = vmatprep.subr.mxu0 0.0
  %1862 = vmatpush1.xpose.msra.mxu0 0.0
  %1863 = vmatprep.subr.mxu0 0.0
  %1864 = vmatpush1.xpose.msra.mxu0 0.0
  %1865 = vmatprep.subr.mxu0 0.0
  %1866 = vmatpush1.xpose.msra.mxu0 0.0
  %1867 = vmatprep.subr.mxu0 0.0
  %1868 = vmatpush1.xpose.msra.mxu0 %v1835
  %1869 = vmatprep.subr.mxu0 0.0
  %1870 = vmatpush2.xpose.msra.mxu0 0.0
  %1871 = vmatprep.subr.mxu0 0.0
  %1872 = vmatpush2.xpose.msra.mxu0 0.0
  %1873 = vmatprep.subr.mxu0 0.0
  %1874 = vmatpush2.xpose.msra.mxu0 0.0
  %1875 = vmatprep.subr.mxu0 0.0
  %1876 = vmatpush2.xpose.msra.mxu0 0.0
  %1877 = vmatprep.subr.mxu0 0.0
  %1878 = vmatpush2.xpose.msra.mxu0 0.0
  %1879 = vmatprep.subr.mxu0 0.0
  %1880 = vmatpush2.xpose.msra.mxu0 0.0
  %1881 = vmatprep.subr.mxu0 0.0
  %1882 = vmatpush2.xpose.msra.mxu0 0.0
  %1883 = vmatprep.subr.mxu0 0.0
  %1884 = vmatpush2.xpose.msra.mxu0 0.0
  %1885 = vmatprep.subr.mxu0 0.0
  %1886 = vmatpush2.xpose.msra.mxu0 0.0
  %1887 = vmatprep.subr.mxu0 0.0
  %1888 = vmatpush2.xpose.msra.mxu0 0.0
  %1889 = vmatprep.subr.mxu0 0.0
  %1890 = vmatpush2.xpose.msra.mxu0 0.0
  %1891 = vmatprep.subr.mxu0 0.0
  %1892 = vmatpush2.xpose.msra.mxu0 0.0
  %1893 = vmatprep.subr.mxu0 0.0
  %1894 = vmatpush2.xpose.msra.mxu0 0.0
  %1895 = vmatprep.subr.mxu0 0.0
  %1896 = vmatpush2.xpose.msra.mxu0 0.0
  %1897 = vmatprep.subr.mxu0 0.0
  %1898 = vmatpush2.xpose.msra.mxu0 0.0
  %1899 = vmatprep.subr.mxu0 0.0
  %1900 = vmatpush2.xpose.msra.mxu0 0.0
  %1901 = vmatprep.mubr.f32.mxu0 0.0
  %1902 = vmatmul.mubr.f32.gmra.mxu0 %v1833
  %v1903 = vpop.f32.mrf.mxu0
  %v1904 = vadd.f32 0.0, %v1903
  %v1905 = vpop.f32.mrf.mxu0
  %1906 = vdwg.mxu0
  %v1907 = vmul.f32 %v1904, 0.35355338
  %v1908 = vsel %vm205, %v1907, -inf
  %1909 = vmax.xlane.f32.xlu0 %v1908
  %v1910 = vpop.xlane.xlu0 %1909
  %v1911 = vsub.f32 %v1907, %v1910
  %v1912 = vmul.f32 %v1911, 1.442695
  %v1913 = vpow.pop %v1912
  %v1914 = vsel %vm205, %v1913, 0.0
  %1915 = vadd.xlane.f32.xlu0 %v1914
  %v1916 = vpop.xlane.xlu0 %1915
  %v1917 = vrcp.pop %v1916
  %v1918 = vmul.f32 %v1913, %v1917
  %1919 = vrot.lane.b32.xlu0 %v1496, 48
  %v1920 = vpop.permute.xlu0 %1919
  %v1922 = vsel %vm219, %v1918, 0
  %v1924 = vsel %vm223, %v1920, 0
  %1926 = vmatprep.subr.mxu0 0.0
  %1927 = vmatpush1.msra.mxu0 0.0
  %1928 = vmatprep.subr.mxu0 0.0
  %1929 = vmatpush1.msra.mxu0 0.0
  %1930 = vmatprep.subr.mxu0 0.0
  %1931 = vmatpush1.msra.mxu0 0.0
  %1932 = vmatprep.subr.mxu0 0.0
  %1933 = vmatpush1.msra.mxu0 0.0
  %1934 = vmatprep.subr.mxu0 0.0
  %1935 = vmatpush1.msra.mxu0 0.0
  %1936 = vmatprep.subr.mxu0 0.0
  %1937 = vmatpush1.msra.mxu0 0.0
  %1938 = vmatprep.subr.mxu0 0.0
  %1939 = vmatpush1.msra.mxu0 0.0
  %1940 = vmatprep.subr.mxu0 0.0
  %1941 = vmatpush1.msra.mxu0 0.0
  %1942 = vmatprep.subr.mxu0 0.0
  %1943 = vmatpush1.msra.mxu0 0.0
  %1944 = vmatprep.subr.mxu0 0.0
  %1945 = vmatpush1.msra.mxu0 0.0
  %1946 = vmatprep.subr.mxu0 0.0
  %1947 = vmatpush1.msra.mxu0 0.0
  %1948 = vmatprep.subr.mxu0 0.0
  %1949 = vmatpush1.msra.mxu0 0.0
  %1950 = vmatprep.subr.mxu0 0.0
  %1951 = vmatpush1.msra.mxu0 0.0
  %1952 = vmatprep.subr.mxu0 0.0
  %1953 = vmatpush1.msra.mxu0 0.0
  %1954 = vmatprep.subr.mxu0 0.0
  %1955 = vmatpush1.msra.mxu0 0.0
  %1956 = vmatprep.subr.mxu0 0.0
  %1957 = vmatpush1.msra.mxu0 %v1924
  %1958 = vmatprep.subr.mxu0 0.0
  %1959 = vmatpush2.msra.mxu0 0.0
  %1960 = vmatprep.subr.mxu0 0.0
  %1961 = vmatpush2.msra.mxu0 0.0
  %1962 = vmatprep.subr.mxu0 0.0
  %1963 = vmatpush2.msra.mxu0 0.0
  %1964 = vmatprep.subr.mxu0 0.0
  %1965 = vmatpush2.msra.mxu0 0.0
  %1966 = vmatprep.subr.mxu0 0.0
  %1967 = vmatpush2.msra.mxu0 0.0
  %1968 = vmatprep.subr.mxu0 0.0
  %1969 = vmatpush2.msra.mxu0 0.0
  %1970 = vmatprep.subr.mxu0 0.0
  %1971 = vmatpush2.msra.mxu0 0.0
  %1972 = vmatprep.subr.mxu0 0.0
  %1973 = vmatpush2.msra.mxu0 0.0
  %1974 = vmatprep.subr.mxu0 0.0
  %1975 = vmatpush2.msra.mxu0 0.0
  %1976 = vmatprep.subr.mxu0 0.0
  %1977 = vmatpush2.msra.mxu0 0.0
  %1978 = vmatprep.subr.mxu0 0.0
  %1979 = vmatpush2.msra.mxu0 0.0
  %1980 = vmatprep.subr.mxu0 0.0
  %1981 = vmatpush2.msra.mxu0 0.0
  %1982 = vmatprep.subr.mxu0 0.0
  %1983 = vmatpush2.msra.mxu0 0.0
  %1984 = vmatprep.subr.mxu0 0.0
  %1985 = vmatpush2.msra.mxu0 0.0
  %1986 = vmatprep.subr.mxu0 0.0
  %1987 = vmatpush2.msra.mxu0 0.0
  %1988 = vmatprep.subr.mxu0 0.0
  %1989 = vmatpush2.msra.mxu0 0.0
  %1990 = vmatprep.mubr.f32.mxu0 0.0
  %1991 = vmatmul.mubr.f32.gmra.mxu0 %v1922
  %v1992 = vpop.f32.mrf.mxu0
  %v1993 = vadd.f32 0.0, %v1992
  %v1994 = vpop.f32.mrf.mxu0
  %1995 = vdwg.mxu0
  %1996 = vrot.lane.b32.xlu0 %v1496, 104
  %v1997 = vpop.permute.xlu0 %1996
  %1998 = vrot.lane.b32.xlu0 %v1496, 72
  %v1999 = vpop.permute.xlu0 %1998
  %v2000 = vsel %vm129, %v1997, 0
  %v2002 = vsel %vm129, %v1999, 0
  %2004 = vmatprep.subr.mxu0 0.0
  %2005 = vmatpush1.xpose.msra.mxu0 0.0
  %2006 = vmatprep.subr.mxu0 0.0
  %2007 = vmatpush1.xpose.msra.mxu0 0.0
  %2008 = vmatprep.subr.mxu0 0.0
  %2009 = vmatpush1.xpose.msra.mxu0 0.0
  %2010 = vmatprep.subr.mxu0 0.0
  %2011 = vmatpush1.xpose.msra.mxu0 0.0
  %2012 = vmatprep.subr.mxu0 0.0
  %2013 = vmatpush1.xpose.msra.mxu0 0.0
  %2014 = vmatprep.subr.mxu0 0.0
  %2015 = vmatpush1.xpose.msra.mxu0 0.0
  %2016 = vmatprep.subr.mxu0 0.0
  %2017 = vmatpush1.xpose.msra.mxu0 0.0
  %2018 = vmatprep.subr.mxu0 0.0
  %2019 = vmatpush1.xpose.msra.mxu0 0.0
  %2020 = vmatprep.subr.mxu0 0.0
  %2021 = vmatpush1.xpose.msra.mxu0 0.0
  %2022 = vmatprep.subr.mxu0 0.0
  %2023 = vmatpush1.xpose.msra.mxu0 0.0
  %2024 = vmatprep.subr.mxu0 0.0
  %2025 = vmatpush1.xpose.msra.mxu0 0.0
  %2026 = vmatprep.subr.mxu0 0.0
  %2027 = vmatpush1.xpose.msra.mxu0 0.0
  %2028 = vmatprep.subr.mxu0 0.0
  %2029 = vmatpush1.xpose.msra.mxu0 0.0
  %2030 = vmatprep.subr.mxu0 0.0
  %2031 = vmatpush1.xpose.msra.mxu0 0.0
  %2032 = vmatprep.subr.mxu0 0.0
  %2033 = vmatpush1.xpose.msra.mxu0 0.0
  %2034 = vmatprep.subr.mxu0 0.0
  %2035 = vmatpush1.xpose.msra.mxu0 %v2002
  %2036 = vmatprep.subr.mxu0 0.0
  %2037 = vmatpush2.xpose.msra.mxu0 0.0
  %2038 = vmatprep.subr.mxu0 0.0
  %2039 = vmatpush2.xpose.msra.mxu0 0.0
  %2040 = vmatprep.subr.mxu0 0.0
  %2041 = vmatpush2.xpose.msra.mxu0 0.0
  %2042 = vmatprep.subr.mxu0 0.0
  %2043 = vmatpush2.xpose.msra.mxu0 0.0
  %2044 = vmatprep.subr.mxu0 0.0
  %2045 = vmatpush2.xpose.msra.mxu0 0.0
  %2046 = vmatprep.subr.mxu0 0.0
  %2047 = vmatpush2.xpose.msra.mxu0 0.0
  %2048 = vmatprep.subr.mxu0 0.0
  %2049 = vmatpush2.xpose.msra.mxu0 0.0
  %2050 = vmatprep.subr.mxu0 0.0
  %2051 = vmatpush2.xpose.msra.mxu0 0.0
  %2052 = vmatprep.subr.mxu0 0.0
  %2053 = vmatpush2.xpose.msra.mxu0 0.0
  %2054 = vmatprep.subr.mxu0 0.0
  %2055 = vmatpush2.xpose.msra.mxu0 0.0
  %2056 = vmatprep.subr.mxu0 0.0
  %2057 = vmatpush2.xpose.msra.mxu0 0.0
  %2058 = vmatprep.subr.mxu0 0.0
  %2059 = vmatpush2.xpose.msra.mxu0 0.0
  %2060 = vmatprep.subr.mxu0 0.0
  %2061 = vmatpush2.xpose.msra.mxu0 0.0
  %2062 = vmatprep.subr.mxu0 0.0
  %2063 = vmatpush2.xpose.msra.mxu0 0.0
  %2064 = vmatprep.subr.mxu0 0.0
  %2065 = vmatpush2.xpose.msra.mxu0 0.0
  %2066 = vmatprep.subr.mxu0 0.0
  %2067 = vmatpush2.xpose.msra.mxu0 0.0
  %2068 = vmatprep.mubr.f32.mxu0 0.0
  %2069 = vmatmul.mubr.f32.gmra.mxu0 %v2000
  %v2070 = vpop.f32.mrf.mxu0
  %v2071 = vadd.f32 0.0, %v2070
  %v2072 = vpop.f32.mrf.mxu0
  %2073 = vdwg.mxu0
  %v2074 = vmul.f32 %v2071, 0.35355338
  %v2075 = vsel %vm205, %v2074, -inf
  %2076 = vmax.xlane.f32.xlu0 %v2075
  %v2077 = vpop.xlane.xlu0 %2076
  %v2078 = vsub.f32 %v2074, %v2077
  %v2079 = vmul.f32 %v2078, 1.442695
  %v2080 = vpow.pop %v2079
  %v2081 = vsel %vm205, %v2080, 0.0
  %2082 = vadd.xlane.f32.xlu0 %v2081
  %v2083 = vpop.xlane.xlu0 %2082
  %v2084 = vrcp.pop %v2083
  %v2085 = vmul.f32 %v2080, %v2084
  %2086 = vrot.lane.b32.xlu0 %v1496, 40
  %v2087 = vpop.permute.xlu0 %2086
  %v2089 = vsel %vm219, %v2085, 0
  %v2091 = vsel %vm223, %v2087, 0
  %2093 = vmatprep.subr.mxu0 0.0
  %2094 = vmatpush1.msra.mxu0 0.0
  %2095 = vmatprep.subr.mxu0 0.0
  %2096 = vmatpush1.msra.mxu0 0.0
  %2097 = vmatprep.subr.mxu0 0.0
  %2098 = vmatpush1.msra.mxu0 0.0
  %2099 = vmatprep.subr.mxu0 0.0
  %2100 = vmatpush1.msra.mxu0 0.0
  %2101 = vmatprep.subr.mxu0 0.0
  %2102 = vmatpush1.msra.mxu0 0.0
  %2103 = vmatprep.subr.mxu0 0.0
  %2104 = vmatpush1.msra.mxu0 0.0
  %2105 = vmatprep.subr.mxu0 0.0
  %2106 = vmatpush1.msra.mxu0 0.0
  %2107 = vmatprep.subr.mxu0 0.0
  %2108 = vmatpush1.msra.mxu0 0.0
  %2109 = vmatprep.subr.mxu0 0.0
  %2110 = vmatpush1.msra.mxu0 0.0
  %2111 = vmatprep.subr.mxu0 0.0
  %2112 = vmatpush1.msra.mxu0 0.0
  %2113 = vmatprep.subr.mxu0 0.0
  %2114 = vmatpush1.msra.mxu0 0.0
  %2115 = vmatprep.subr.mxu0 0.0
  %2116 = vmatpush1.msra.mxu0 0.0
  %2117 = vmatprep.subr.mxu0 0.0
  %2118 = vmatpush1.msra.mxu0 0.0
  %2119 = vmatprep.subr.mxu0 0.0
  %2120 = vmatpush1.msra.mxu0 0.0
  %2121 = vmatprep.subr.mxu0 0.0
  %2122 = vmatpush1.msra.mxu0 0.0
  %2123 = vmatprep.subr.mxu0 0.0
  %2124 = vmatpush1.msra.mxu0 %v2091
  %2125 = vmatprep.subr.mxu0 0.0
  %2126 = vmatpush2.msra.mxu0 0.0
  %2127 = vmatprep.subr.mxu0 0.0
  %2128 = vmatpush2.msra.mxu0 0.0
  %2129 = vmatprep.subr.mxu0 0.0
  %2130 = vmatpush2.msra.mxu0 0.0
  %2131 = vmatprep.subr.mxu0 0.0
  %2132 = vmatpush2.msra.mxu0 0.0
  %2133 = vmatprep.subr.mxu0 0.0
  %2134 = vmatpush2.msra.mxu0 0.0
  %2135 = vmatprep.subr.mxu0 0.0
  %2136 = vmatpush2.msra.mxu0 0.0
  %2137 = vmatprep.subr.mxu0 0.0
  %2138 = vmatpush2.msra.mxu0 0.0
  %2139 = vmatprep.subr.mxu0 0.0
  %2140 = vmatpush2.msra.mxu0 0.0
  %2141 = vmatprep.subr.mxu0 0.0
  %2142 = vmatpush2.msra.mxu0 0.0
  %2143 = vmatprep.subr.mxu0 0.0
  %2144 = vmatpush2.msra.mxu0 0.0
  %2145 = vmatprep.subr.mxu0 0.0
  %2146 = vmatpush2.msra.mxu0 0.0
  %2147 = vmatprep.subr.mxu0 0.0
  %2148 = vmatpush2.msra.mxu0 0.0
  %2149 = vmatprep.subr.mxu0 0.0
  %2150 = vmatpush2.msra.mxu0 0.0
  %2151 = vmatprep.subr.mxu0 0.0
  %2152 = vmatpush2.msra.mxu0 0.0
  %2153 = vmatprep.subr.mxu0 0.0
  %2154 = vmatpush2.msra.mxu0 0.0
  %2155 = vmatprep.subr.mxu0 0.0
  %2156 = vmatpush2.msra.mxu0 0.0
  %2157 = vmatprep.mubr.f32.mxu0 0.0
  %2158 = vmatmul.mubr.f32.gmra.mxu0 %v2089
  %v2159 = vpop.f32.mrf.mxu0
  %v2160 = vadd.f32 0.0, %v2159
  %v2161 = vpop.f32.mrf.mxu0
  %2162 = vdwg.mxu0
  %2164 = vrot.lane.b32.xlu0 %v1826, 8
  %v2165 = vpop.permute.xlu0 %2164
  %2168 = vrot.lane.b32.xlu0 %v1993, 16
  %v2169 = vpop.permute.xlu0 %2168
  %2172 = vrot.lane.b32.xlu0 %v2160, 24
  %v2173 = vpop.permute.xlu0 %2172
  %v2175 = vsel %vm129, %v1659, %v2165
  %v2176 = vsel %vm810, %v2175, %v2169
  %v2177 = vsel %vm812, %v2176, %v2173
  %v2178 = vrot.slane %v121, 6
  %2179 = vrot.lane.b32.xlu0 %v2178, 96
  %v2180 = vpop.permute.xlu0 %2179
  %v2181 = vsel %vm129, %v2178, 0
  %v2183 = vsel %vm129, %v2180, 0
  %2185 = vmatprep.subr.mxu0 0.0
  %2186 = vmatpush1.xpose.msra.mxu0 0.0
  %2187 = vmatprep.subr.mxu0 0.0
  %2188 = vmatpush1.xpose.msra.mxu0 0.0
  %2189 = vmatprep.subr.mxu0 0.0
  %2190 = vmatpush1.xpose.msra.mxu0 0.0
  %2191 = vmatprep.subr.mxu0 0.0
  %2192 = vmatpush1.xpose.msra.mxu0 0.0
  %2193 = vmatprep.subr.mxu0 0.0
  %2194 = vmatpush1.xpose.msra.mxu0 0.0
  %2195 = vmatprep.subr.mxu0 0.0
  %2196 = vmatpush1.xpose.msra.mxu0 0.0
  %2197 = vmatprep.subr.mxu0 0.0
  %2198 = vmatpush1.xpose.msra.mxu0 0.0
  %2199 = vmatprep.subr.mxu0 0.0
  %2200 = vmatpush1.xpose.msra.mxu0 0.0
  %2201 = vmatprep.subr.mxu0 0.0
  %2202 = vmatpush1.xpose.msra.mxu0 0.0
  %2203 = vmatprep.subr.mxu0 0.0
  %2204 = vmatpush1.xpose.msra.mxu0 0.0
  %2205 = vmatprep.subr.mxu0 0.0
  %2206 = vmatpush1.xpose.msra.mxu0 0.0
  %2207 = vmatprep.subr.mxu0 0.0
  %2208 = vmatpush1.xpose.msra.mxu0 0.0
  %2209 = vmatprep.subr.mxu0 0.0
  %2210 = vmatpush1.xpose.msra.mxu0 0.0
  %2211 = vmatprep.subr.mxu0 0.0
  %2212 = vmatpush1.xpose.msra.mxu0 0.0
  %2213 = vmatprep.subr.mxu0 0.0
  %2214 = vmatpush1.xpose.msra.mxu0 0.0
  %2215 = vmatprep.subr.mxu0 0.0
  %2216 = vmatpush1.xpose.msra.mxu0 %v2183
  %2217 = vmatprep.subr.mxu0 0.0
  %2218 = vmatpush2.xpose.msra.mxu0 0.0
  %2219 = vmatprep.subr.mxu0 0.0
  %2220 = vmatpush2.xpose.msra.mxu0 0.0
  %2221 = vmatprep.subr.mxu0 0.0
  %2222 = vmatpush2.xpose.msra.mxu0 0.0
  %2223 = vmatprep.subr.mxu0 0.0
  %2224 = vmatpush2.xpose.msra.mxu0 0.0
  %2225 = vmatprep.subr.mxu0 0.0
  %2226 = vmatpush2.xpose.msra.mxu0 0.0
  %2227 = vmatprep.subr.mxu0 0.0
  %2228 = vmatpush2.xpose.msra.mxu0 0.0
  %2229 = vmatprep.subr.mxu0 0.0
  %2230 = vmatpush2.xpose.msra.mxu0 0.0
  %2231 = vmatprep.subr.mxu0 0.0
  %2232 = vmatpush2.xpose.msra.mxu0 0.0
  %2233 = vmatprep.subr.mxu0 0.0
  %2234 = vmatpush2.xpose.msra.mxu0 0.0
  %2235 = vmatprep.subr.mxu0 0.0
  %2236 = vmatpush2.xpose.msra.mxu0 0.0
  %2237 = vmatprep.subr.mxu0 0.0
  %2238 = vmatpush2.xpose.msra.mxu0 0.0
  %2239 = vmatprep.subr.mxu0 0.0
  %2240 = vmatpush2.xpose.msra.mxu0 0.0
  %2241 = vmatprep.subr.mxu0 0.0
  %2242 = vmatpush2.xpose.msra.mxu0 0.0
  %2243 = vmatprep.subr.mxu0 0.0
  %2244 = vmatpush2.xpose.msra.mxu0 0.0
  %2245 = vmatprep.subr.mxu0 0.0
  %2246 = vmatpush2.xpose.msra.mxu0 0.0
  %2247 = vmatprep.subr.mxu0 0.0
  %2248 = vmatpush2.xpose.msra.mxu0 0.0
  %2249 = vmatprep.mubr.f32.mxu0 0.0
  %2250 = vmatmul.mubr.f32.gmra.mxu0 %v2181
  %v2251 = vpop.f32.mrf.mxu0
  %v2252 = vadd.f32 0.0, %v2251
  %v2253 = vpop.f32.mrf.mxu0
  %2254 = vdwg.mxu0
  %v2255 = vmul.f32 %v2252, 0.35355338
  %v2256 = vsel %vm205, %v2255, -inf
  %2257 = vmax.xlane.f32.xlu0 %v2256
  %v2258 = vpop.xlane.xlu0 %2257
  %v2259 = vsub.f32 %v2255, %v2258
  %v2260 = vmul.f32 %v2259, 1.442695
  %v2261 = vpow.pop %v2260
  %v2262 = vsel %vm205, %v2261, 0.0
  %2263 = vadd.xlane.f32.xlu0 %v2262
  %v2264 = vpop.xlane.xlu0 %2263
  %v2265 = vrcp.pop %v2264
  %v2266 = vmul.f32 %v2261, %v2265
  %2267 = vrot.lane.b32.xlu0 %v2178, 64
  %v2268 = vpop.permute.xlu0 %2267
  %v2270 = vsel %vm219, %v2266, 0
  %v2272 = vsel %vm223, %v2268, 0
  %2274 = vmatprep.subr.mxu0 0.0
  %2275 = vmatpush1.msra.mxu0 0.0
  %2276 = vmatprep.subr.mxu0 0.0
  %2277 = vmatpush1.msra.mxu0 0.0
  %2278 = vmatprep.subr.mxu0 0.0
  %2279 = vmatpush1.msra.mxu0 0.0
  %2280 = vmatprep.subr.mxu0 0.0
  %2281 = vmatpush1.msra.mxu0 0.0
  %2282 = vmatprep.subr.mxu0 0.0
  %2283 = vmatpush1.msra.mxu0 0.0
  %2284 = vmatprep.subr.mxu0 0.0
  %2285 = vmatpush1.msra.mxu0 0.0
  %2286 = vmatprep.subr.mxu0 0.0
  %2287 = vmatpush1.msra.mxu0 0.0
  %2288 = vmatprep.subr.mxu0 0.0
  %2289 = vmatpush1.msra.mxu0 0.0
  %2290 = vmatprep.subr.mxu0 0.0
  %2291 = vmatpush1.msra.mxu0 0.0
  %2292 = vmatprep.subr.mxu0 0.0
  %2293 = vmatpush1.msra.mxu0 0.0
  %2294 = vmatprep.subr.mxu0 0.0
  %2295 = vmatpush1.msra.mxu0 0.0
  %2296 = vmatprep.subr.mxu0 0.0
  %2297 = vmatpush1.msra.mxu0 0.0
  %2298 = vmatprep.subr.mxu0 0.0
  %2299 = vmatpush1.msra.mxu0 0.0
  %2300 = vmatprep.subr.mxu0 0.0
  %2301 = vmatpush1.msra.mxu0 0.0
  %2302 = vmatprep.subr.mxu0 0.0
  %2303 = vmatpush1.msra.mxu0 0.0
  %2304 = vmatprep.subr.mxu0 0.0
  %2305 = vmatpush1.msra.mxu0 %v2272
  %2306 = vmatprep.subr.mxu0 0.0
  %2307 = vmatpush2.msra.mxu0 0.0
  %2308 = vmatprep.subr.mxu0 0.0
  %2309 = vmatpush2.msra.mxu0 0.0
  %2310 = vmatprep.subr.mxu0 0.0
  %2311 = vmatpush2.msra.mxu0 0.0
  %2312 = vmatprep.subr.mxu0 0.0
  %2313 = vmatpush2.msra.mxu0 0.0
  %2314 = vmatprep.subr.mxu0 0.0
  %2315 = vmatpush2.msra.mxu0 0.0
  %2316 = vmatprep.subr.mxu0 0.0
  %2317 = vmatpush2.msra.mxu0 0.0
  %2318 = vmatprep.subr.mxu0 0.0
  %2319 = vmatpush2.msra.mxu0 0.0
  %2320 = vmatprep.subr.mxu0 0.0
  %2321 = vmatpush2.msra.mxu0 0.0
  %2322 = vmatprep.subr.mxu0 0.0
  %2323 = vmatpush2.msra.mxu0 0.0
  %2324 = vmatprep.subr.mxu0 0.0
  %2325 = vmatpush2.msra.mxu0 0.0
  %2326 = vmatprep.subr.mxu0 0.0
  %2327 = vmatpush2.msra.mxu0 0.0
  %2328 = vmatprep.subr.mxu0 0.0
  %2329 = vmatpush2.msra.mxu0 0.0
  %2330 = vmatprep.subr.mxu0 0.0
  %2331 = vmatpush2.msra.mxu0 0.0
  %2332 = vmatprep.subr.mxu0 0.0
  %2333 = vmatpush2.msra.mxu0 0.0
  %2334 = vmatprep.subr.mxu0 0.0
  %2335 = vmatpush2.msra.mxu0 0.0
  %2336 = vmatprep.subr.mxu0 0.0
  %2337 = vmatpush2.msra.mxu0 0.0
  %2338 = vmatprep.mubr.f32.mxu0 0.0
  %2339 = vmatmul.mubr.f32.gmra.mxu0 %v2270
  %v2340 = vpop.f32.mrf.mxu0
  %v2341 = vadd.f32 0.0, %v2340
  %v2342 = vpop.f32.mrf.mxu0
  %2343 = vdwg.mxu0
  %2344 = vrot.lane.b32.xlu0 %v2178, 120
  %v2345 = vpop.permute.xlu0 %2344
  %2346 = vrot.lane.b32.xlu0 %v2178, 88
  %v2347 = vpop.permute.xlu0 %2346
  %v2348 = vsel %vm129, %v2345, 0
  %v2350 = vsel %vm129, %v2347, 0
  %2352 = vmatprep.subr.mxu0 0.0
  %2353 = vmatpush1.xpose.msra.mxu0 0.0
  %2354 = vmatprep.subr.mxu0 0.0
  %2355 = vmatpush1.xpose.msra.mxu0 0.0
  %2356 = vmatprep.subr.mxu0 0.0
  %2357 = vmatpush1.xpose.msra.mxu0 0.0
  %2358 = vmatprep.subr.mxu0 0.0
  %2359 = vmatpush1.xpose.msra.mxu0 0.0
  %2360 = vmatprep.subr.mxu0 0.0
  %2361 = vmatpush1.xpose.msra.mxu0 0.0
  %2362 = vmatprep.subr.mxu0 0.0
  %2363 = vmatpush1.xpose.msra.mxu0 0.0
  %2364 = vmatprep.subr.mxu0 0.0
  %2365 = vmatpush1.xpose.msra.mxu0 0.0
  %2366 = vmatprep.subr.mxu0 0.0
  %2367 = vmatpush1.xpose.msra.mxu0 0.0
  %2368 = vmatprep.subr.mxu0 0.0
  %2369 = vmatpush1.xpose.msra.mxu0 0.0
  %2370 = vmatprep.subr.mxu0 0.0
  %2371 = vmatpush1.xpose.msra.mxu0 0.0
  %2372 = vmatprep.subr.mxu0 0.0
  %2373 = vmatpush1.xpose.msra.mxu0 0.0
  %2374 = vmatprep.subr.mxu0 0.0
  %2375 = vmatpush1.xpose.msra.mxu0 0.0
  %2376 = vmatprep.subr.mxu0 0.0
  %2377 = vmatpush1.xpose.msra.mxu0 0.0
  %2378 = vmatprep.subr.mxu0 0.0
  %2379 = vmatpush1.xpose.msra.mxu0 0.0
  %2380 = vmatprep.subr.mxu0 0.0
  %2381 = vmatpush1.xpose.msra.mxu0 0.0
  %2382 = vmatprep.subr.mxu0 0.0
  %2383 = vmatpush1.xpose.msra.mxu0 %v2350
  %2384 = vmatprep.subr.mxu0 0.0
  %2385 = vmatpush2.xpose.msra.mxu0 0.0
  %2386 = vmatprep.subr.mxu0 0.0
  %2387 = vmatpush2.xpose.msra.mxu0 0.0
  %2388 = vmatprep.subr.mxu0 0.0
  %2389 = vmatpush2.xpose.msra.mxu0 0.0
  %2390 = vmatprep.subr.mxu0 0.0
  %2391 = vmatpush2.xpose.msra.mxu0 0.0
  %2392 = vmatprep.subr.mxu0 0.0
  %2393 = vmatpush2.xpose.msra.mxu0 0.0
  %2394 = vmatprep.subr.mxu0 0.0
  %2395 = vmatpush2.xpose.msra.mxu0 0.0
  %2396 = vmatprep.subr.mxu0 0.0
  %2397 = vmatpush2.xpose.msra.mxu0 0.0
  %2398 = vmatprep.subr.mxu0 0.0
  %2399 = vmatpush2.xpose.msra.mxu0 0.0
  %2400 = vmatprep.subr.mxu0 0.0
  %2401 = vmatpush2.xpose.msra.mxu0 0.0
  %2402 = vmatprep.subr.mxu0 0.0
  %2403 = vmatpush2.xpose.msra.mxu0 0.0
  %2404 = vmatprep.subr.mxu0 0.0
  %2405 = vmatpush2.xpose.msra.mxu0 0.0
  %2406 = vmatprep.subr.mxu0 0.0
  %2407 = vmatpush2.xpose.msra.mxu0 0.0
  %2408 = vmatprep.subr.mxu0 0.0
  %2409 = vmatpush2.xpose.msra.mxu0 0.0
  %2410 = vmatprep.subr.mxu0 0.0
  %2411 = vmatpush2.xpose.msra.mxu0 0.0
  %2412 = vmatprep.subr.mxu0 0.0
  %2413 = vmatpush2.xpose.msra.mxu0 0.0
  %2414 = vmatprep.subr.mxu0 0.0
  %2415 = vmatpush2.xpose.msra.mxu0 0.0
  %2416 = vmatprep.mubr.f32.mxu0 0.0
  %2417 = vmatmul.mubr.f32.gmra.mxu0 %v2348
  %v2418 = vpop.f32.mrf.mxu0
  %v2419 = vadd.f32 0.0, %v2418
  %v2420 = vpop.f32.mrf.mxu0
  %2421 = vdwg.mxu0
  %v2422 = vmul.f32 %v2419, 0.35355338
  %v2423 = vsel %vm205, %v2422, -inf
  %2424 = vmax.xlane.f32.xlu0 %v2423
  %v2425 = vpop.xlane.xlu0 %2424
  %v2426 = vsub.f32 %v2422, %v2425
  %v2427 = vmul.f32 %v2426, 1.442695
  %v2428 = vpow.pop %v2427
  %v2429 = vsel %vm205, %v2428, 0.0
  %2430 = vadd.xlane.f32.xlu0 %v2429
  %v2431 = vpop.xlane.xlu0 %2430
  %v2432 = vrcp.pop %v2431
  %v2433 = vmul.f32 %v2428, %v2432
  %2434 = vrot.lane.b32.xlu0 %v2178, 56
  %v2435 = vpop.permute.xlu0 %2434
  %v2437 = vsel %vm219, %v2433, 0
  %v2439 = vsel %vm223, %v2435, 0
  %2441 = vmatprep.subr.mxu0 0.0
  %2442 = vmatpush1.msra.mxu0 0.0
  %2443 = vmatprep.subr.mxu0 0.0
  %2444 = vmatpush1.msra.mxu0 0.0
  %2445 = vmatprep.subr.mxu0 0.0
  %2446 = vmatpush1.msra.mxu0 0.0
  %2447 = vmatprep.subr.mxu0 0.0
  %2448 = vmatpush1.msra.mxu0 0.0
  %2449 = vmatprep.subr.mxu0 0.0
  %2450 = vmatpush1.msra.mxu0 0.0
  %2451 = vmatprep.subr.mxu0 0.0
  %2452 = vmatpush1.msra.mxu0 0.0
  %2453 = vmatprep.subr.mxu0 0.0
  %2454 = vmatpush1.msra.mxu0 0.0
  %2455 = vmatprep.subr.mxu0 0.0
  %2456 = vmatpush1.msra.mxu0 0.0
  %2457 = vmatprep.subr.mxu0 0.0
  %2458 = vmatpush1.msra.mxu0 0.0
  %2459 = vmatprep.subr.mxu0 0.0
  %2460 = vmatpush1.msra.mxu0 0.0
  %2461 = vmatprep.subr.mxu0 0.0
  %2462 = vmatpush1.msra.mxu0 0.0
  %2463 = vmatprep.subr.mxu0 0.0
  %2464 = vmatpush1.msra.mxu0 0.0
  %2465 = vmatprep.subr.mxu0 0.0
  %2466 = vmatpush1.msra.mxu0 0.0
  %2467 = vmatprep.subr.mxu0 0.0
  %2468 = vmatpush1.msra.mxu0 0.0
  %2469 = vmatprep.subr.mxu0 0.0
  %2470 = vmatpush1.msra.mxu0 0.0
  %2471 = vmatprep.subr.mxu0 0.0
  %2472 = vmatpush1.msra.mxu0 %v2439
  %2473 = vmatprep.subr.mxu0 0.0
  %2474 = vmatpush2.msra.mxu0 0.0
  %2475 = vmatprep.subr.mxu0 0.0
  %2476 = vmatpush2.msra.mxu0 0.0
  %2477 = vmatprep.subr.mxu0 0.0
  %2478 = vmatpush2.msra.mxu0 0.0
  %2479 = vmatprep.subr.mxu0 0.0
  %2480 = vmatpush2.msra.mxu0 0.0
  %2481 = vmatprep.subr.mxu0 0.0
  %2482 = vmatpush2.msra.mxu0 0.0
  %2483 = vmatprep.subr.mxu0 0.0
  %2484 = vmatpush2.msra.mxu0 0.0
  %2485 = vmatprep.subr.mxu0 0.0
  %2486 = vmatpush2.msra.mxu0 0.0
  %2487 = vmatprep.subr.mxu0 0.0
  %2488 = vmatpush2.msra.mxu0 0.0
  %2489 = vmatprep.subr.mxu0 0.0
  %2490 = vmatpush2.msra.mxu0 0.0
  %2491 = vmatprep.subr.mxu0 0.0
  %2492 = vmatpush2.msra.mxu0 0.0
  %2493 = vmatprep.subr.mxu0 0.0
  %2494 = vmatpush2.msra.mxu0 0.0
  %2495 = vmatprep.subr.mxu0 0.0
  %2496 = vmatpush2.msra.mxu0 0.0
  %2497 = vmatprep.subr.mxu0 0.0
  %2498 = vmatpush2.msra.mxu0 0.0
  %2499 = vmatprep.subr.mxu0 0.0
  %2500 = vmatpush2.msra.mxu0 0.0
  %2501 = vmatprep.subr.mxu0 0.0
  %2502 = vmatpush2.msra.mxu0 0.0
  %2503 = vmatprep.subr.mxu0 0.0
  %2504 = vmatpush2.msra.mxu0 0.0
  %2505 = vmatprep.mubr.f32.mxu0 0.0
  %2506 = vmatmul.mubr.f32.gmra.mxu0 %v2437
  %v2507 = vpop.f32.mrf.mxu0
  %v2508 = vadd.f32 0.0, %v2507
  %v2509 = vpop.f32.mrf.mxu0
  %2510 = vdwg.mxu0
  %2511 = vrot.lane.b32.xlu0 %v2178, 112
  %v2512 = vpop.permute.xlu0 %2511
  %2513 = vrot.lane.b32.xlu0 %v2178, 80
  %v2514 = vpop.permute.xlu0 %2513
  %v2515 = vsel %vm129, %v2512, 0
  %v2517 = vsel %vm129, %v2514, 0
  %2519 = vmatprep.subr.mxu0 0.0
  %2520 = vmatpush1.xpose.msra.mxu0 0.0
  %2521 = vmatprep.subr.mxu0 0.0
  %2522 = vmatpush1.xpose.msra.mxu0 0.0
  %2523 = vmatprep.subr.mxu0 0.0
  %2524 = vmatpush1.xpose.msra.mxu0 0.0
  %2525 = vmatprep.subr.mxu0 0.0
  %2526 = vmatpush1.xpose.msra.mxu0 0.0
  %2527 = vmatprep.subr.mxu0 0.0
  %2528 = vmatpush1.xpose.msra.mxu0 0.0
  %2529 = vmatprep.subr.mxu0 0.0
  %2530 = vmatpush1.xpose.msra.mxu0 0.0
  %2531 = vmatprep.subr.mxu0 0.0
  %2532 = vmatpush1.xpose.msra.mxu0 0.0
  %2533 = vmatprep.subr.mxu0 0.0
  %2534 = vmatpush1.xpose.msra.mxu0 0.0
  %2535 = vmatprep.subr.mxu0 0.0
  %2536 = vmatpush1.xpose.msra.mxu0 0.0
  %2537 = vmatprep.subr.mxu0 0.0
  %2538 = vmatpush1.xpose.msra.mxu0 0.0
  %2539 = vmatprep.subr.mxu0 0.0
  %2540 = vmatpush1.xpose.msra.mxu0 0.0
  %2541 = vmatprep.subr.mxu0 0.0
  %2542 = vmatpush1.xpose.msra.mxu0 0.0
  %2543 = vmatprep.subr.mxu0 0.0
  %2544 = vmatpush1.xpose.msra.mxu0 0.0
  %2545 = vmatprep.subr.mxu0 0.0
  %2546 = vmatpush1.xpose.msra.mxu0 0.0
  %2547 = vmatprep.subr.mxu0 0.0
  %2548 = vmatpush1.xpose.msra.mxu0 0.0
  %2549 = vmatprep.subr.mxu0 0.0
  %2550 = vmatpush1.xpose.msra.mxu0 %v2517
  %2551 = vmatprep.subr.mxu0 0.0
  %2552 = vmatpush2.xpose.msra.mxu0 0.0
  %2553 = vmatprep.subr.mxu0 0.0
  %2554 = vmatpush2.xpose.msra.mxu0 0.0
  %2555 = vmatprep.subr.mxu0 0.0
  %2556 = vmatpush2.xpose.msra.mxu0 0.0
  %2557 = vmatprep.subr.mxu0 0.0
  %2558 = vmatpush2.xpose.msra.mxu0 0.0
  %2559 = vmatprep.subr.mxu0 0.0
  %2560 = vmatpush2.xpose.msra.mxu0 0.0
  %2561 = vmatprep.subr.mxu0 0.0
  %2562 = vmatpush2.xpose.msra.mxu0 0.0
  %2563 = vmatprep.subr.mxu0 0.0
  %2564 = vmatpush2.xpose.msra.mxu0 0.0
  %2565 = vmatprep.subr.mxu0 0.0
  %2566 = vmatpush2.xpose.msra.mxu0 0.0
  %2567 = vmatprep.subr.mxu0 0.0
  %2568 = vmatpush2.xpose.msra.mxu0 0.0
  %2569 = vmatprep.subr.mxu0 0.0
  %2570 = vmatpush2.xpose.msra.mxu0 0.0
  %2571 = vmatprep.subr.mxu0 0.0
  %2572 = vmatpush2.xpose.msra.mxu0 0.0
  %2573 = vmatprep.subr.mxu0 0.0
  %2574 = vmatpush2.xpose.msra.mxu0 0.0
  %2575 = vmatprep.subr.mxu0 0.0
  %2576 = vmatpush2.xpose.msra.mxu0 0.0
  %2577 = vmatprep.subr.mxu0 0.0
  %2578 = vmatpush2.xpose.msra.mxu0 0.0
  %2579 = vmatprep.subr.mxu0 0.0
  %2580 = vmatpush2.xpose.msra.mxu0 0.0
  %2581 = vmatprep.subr.mxu0 0.0
  %2582 = vmatpush2.xpose.msra.mxu0 0.0
  %2583 = vmatprep.mubr.f32.mxu0 0.0
  %2584 = vmatmul.mubr.f32.gmra.mxu0 %v2515
  %v2585 = vpop.f32.mrf.mxu0
  %v2586 = vadd.f32 0.0, %v2585
  %v2587 = vpop.f32.mrf.mxu0
  %2588 = vdwg.mxu0
  %v2589 = vmul.f32 %v2586, 0.35355338
  %v2590 = vsel %vm205, %v2589, -inf
  %2591 = vmax.xlane.f32.xlu0 %v2590
  %v2592 = vpop.xlane.xlu0 %2591
  %v2593 = vsub.f32 %v2589, %v2592
  %v2594 = vmul.f32 %v2593, 1.442695
  %v2595 = vpow.pop %v2594
  %v2596 = vsel %vm205, %v2595, 0.0
  %2597 = vadd.xlane.f32.xlu0 %v2596
  %v2598 = vpop.xlane.xlu0 %2597
  %v2599 = vrcp.pop %v2598
  %v2600 = vmul.f32 %v2595, %v2599
  %2601 = vrot.lane.b32.xlu0 %v2178, 48
  %v2602 = vpop.permute.xlu0 %2601
  %v2604 = vsel %vm219, %v2600, 0
  %v2606 = vsel %vm223, %v2602, 0
  %2608 = vmatprep.subr.mxu0 0.0
  %2609 = vmatpush1.msra.mxu0 0.0
  %2610 = vmatprep.subr.mxu0 0.0
  %2611 = vmatpush1.msra.mxu0 0.0
  %2612 = vmatprep.subr.mxu0 0.0
  %2613 = vmatpush1.msra.mxu0 0.0
  %2614 = vmatprep.subr.mxu0 0.0
  %2615 = vmatpush1.msra.mxu0 0.0
  %2616 = vmatprep.subr.mxu0 0.0
  %2617 = vmatpush1.msra.mxu0 0.0
  %2618 = vmatprep.subr.mxu0 0.0
  %2619 = vmatpush1.msra.mxu0 0.0
  %2620 = vmatprep.subr.mxu0 0.0
  %2621 = vmatpush1.msra.mxu0 0.0
  %2622 = vmatprep.subr.mxu0 0.0
  %2623 = vmatpush1.msra.mxu0 0.0
  %2624 = vmatprep.subr.mxu0 0.0
  %2625 = vmatpush1.msra.mxu0 0.0
  %2626 = vmatprep.subr.mxu0 0.0
  %2627 = vmatpush1.msra.mxu0 0.0
  %2628 = vmatprep.subr.mxu0 0.0
  %2629 = vmatpush1.msra.mxu0 0.0
  %2630 = vmatprep.subr.mxu0 0.0
  %2631 = vmatpush1.msra.mxu0 0.0
  %2632 = vmatprep.subr.mxu0 0.0
  %2633 = vmatpush1.msra.mxu0 0.0
  %2634 = vmatprep.subr.mxu0 0.0
  %2635 = vmatpush1.msra.mxu0 0.0
  %2636 = vmatprep.subr.mxu0 0.0
  %2637 = vmatpush1.msra.mxu0 0.0
  %2638 = vmatprep.subr.mxu0 0.0
  %2639 = vmatpush1.msra.mxu0 %v2606
  %2640 = vmatprep.subr.mxu0 0.0
  %2641 = vmatpush2.msra.mxu0 0.0
  %2642 = vmatprep.subr.mxu0 0.0
  %2643 = vmatpush2.msra.mxu0 0.0
  %2644 = vmatprep.subr.mxu0 0.0
  %2645 = vmatpush2.msra.mxu0 0.0
  %2646 = vmatprep.subr.mxu0 0.0
  %2647 = vmatpush2.msra.mxu0 0.0
  %2648 = vmatprep.subr.mxu0 0.0
  %2649 = vmatpush2.msra.mxu0 0.0
  %2650 = vmatprep.subr.mxu0 0.0
  %2651 = vmatpush2.msra.mxu0 0.0
  %2652 = vmatprep.subr.mxu0 0.0
  %2653 = vmatpush2.msra.mxu0 0.0
  %2654 = vmatprep.subr.mxu0 0.0
  %2655 = vmatpush2.msra.mxu0 0.0
  %2656 = vmatprep.subr.mxu0 0.0
  %2657 = vmatpush2.msra.mxu0 0.0
  %2658 = vmatprep.subr.mxu0 0.0
  %2659 = vmatpush2.msra.mxu0 0.0
  %2660 = vmatprep.subr.mxu0 0.0
  %2661 = vmatpush2.msra.mxu0 0.0
  %2662 = vmatprep.subr.mxu0 0.0
  %2663 = vmatpush2.msra.mxu0 0.0
  %2664 = vmatprep.subr.mxu0 0.0
  %2665 = vmatpush2.msra.mxu0 0.0
  %2666 = vmatprep.subr.mxu0 0.0
  %2667 = vmatpush2.msra.mxu0 0.0
  %2668 = vmatprep.subr.mxu0 0.0
  %2669 = vmatpush2.msra.mxu0 0.0
  %2670 = vmatprep.subr.mxu0 0.0
  %2671 = vmatpush2.msra.mxu0 0.0
  %2672 = vmatprep.mubr.f32.mxu0 0.0
  %2673 = vmatmul.mubr.f32.gmra.mxu0 %v2604
  %v2674 = vpop.f32.mrf.mxu0
  %v2675 = vadd.f32 0.0, %v2674
  %v2676 = vpop.f32.mrf.mxu0
  %2677 = vdwg.mxu0
  %2678 = vrot.lane.b32.xlu0 %v2178, 104
  %v2679 = vpop.permute.xlu0 %2678
  %2680 = vrot.lane.b32.xlu0 %v2178, 72
  %v2681 = vpop.permute.xlu0 %2680
  %v2682 = vsel %vm129, %v2679, 0
  %v2684 = vsel %vm129, %v2681, 0
  %2686 = vmatprep.subr.mxu0 0.0
  %2687 = vmatpush1.xpose.msra.mxu0 0.0
  %2688 = vmatprep.subr.mxu0 0.0
  %2689 = vmatpush1.xpose.msra.mxu0 0.0
  %2690 = vmatprep.subr.mxu0 0.0
  %2691 = vmatpush1.xpose.msra.mxu0 0.0
  %2692 = vmatprep.subr.mxu0 0.0
  %2693 = vmatpush1.xpose.msra.mxu0 0.0
  %2694 = vmatprep.subr.mxu0 0.0
  %2695 = vmatpush1.xpose.msra.mxu0 0.0
  %2696 = vmatprep.subr.mxu0 0.0
  %2697 = vmatpush1.xpose.msra.mxu0 0.0
  %2698 = vmatprep.subr.mxu0 0.0
  %2699 = vmatpush1.xpose.msra.mxu0 0.0
  %2700 = vmatprep.subr.mxu0 0.0
  %2701 = vmatpush1.xpose.msra.mxu0 0.0
  %2702 = vmatprep.subr.mxu0 0.0
  %2703 = vmatpush1.xpose.msra.mxu0 0.0
  %2704 = vmatprep.subr.mxu0 0.0
  %2705 = vmatpush1.xpose.msra.mxu0 0.0
  %2706 = vmatprep.subr.mxu0 0.0
  %2707 = vmatpush1.xpose.msra.mxu0 0.0
  %2708 = vmatprep.subr.mxu0 0.0
  %2709 = vmatpush1.xpose.msra.mxu0 0.0
  %2710 = vmatprep.subr.mxu0 0.0
  %2711 = vmatpush1.xpose.msra.mxu0 0.0
  %2712 = vmatprep.subr.mxu0 0.0
  %2713 = vmatpush1.xpose.msra.mxu0 0.0
  %2714 = vmatprep.subr.mxu0 0.0
  %2715 = vmatpush1.xpose.msra.mxu0 0.0
  %2716 = vmatprep.subr.mxu0 0.0
  %2717 = vmatpush1.xpose.msra.mxu0 %v2684
  %2718 = vmatprep.subr.mxu0 0.0
  %2719 = vmatpush2.xpose.msra.mxu0 0.0
  %2720 = vmatprep.subr.mxu0 0.0
  %2721 = vmatpush2.xpose.msra.mxu0 0.0
  %2722 = vmatprep.subr.mxu0 0.0
  %2723 = vmatpush2.xpose.msra.mxu0 0.0
  %2724 = vmatprep.subr.mxu0 0.0
  %2725 = vmatpush2.xpose.msra.mxu0 0.0
  %2726 = vmatprep.subr.mxu0 0.0
  %2727 = vmatpush2.xpose.msra.mxu0 0.0
  %2728 = vmatprep.subr.mxu0 0.0
  %2729 = vmatpush2.xpose.msra.mxu0 0.0
  %2730 = vmatprep.subr.mxu0 0.0
  %2731 = vmatpush2.xpose.msra.mxu0 0.0
  %2732 = vmatprep.subr.mxu0 0.0
  %2733 = vmatpush2.xpose.msra.mxu0 0.0
  %2734 = vmatprep.subr.mxu0 0.0
  %2735 = vmatpush2.xpose.msra.mxu0 0.0
  %2736 = vmatprep.subr.mxu0 0.0
  %2737 = vmatpush2.xpose.msra.mxu0 0.0
  %2738 = vmatprep.subr.mxu0 0.0
  %2739 = vmatpush2.xpose.msra.mxu0 0.0
  %2740 = vmatprep.subr.mxu0 0.0
  %2741 = vmatpush2.xpose.msra.mxu0 0.0
  %2742 = vmatprep.subr.mxu0 0.0
  %2743 = vmatpush2.xpose.msra.mxu0 0.0
  %2744 = vmatprep.subr.mxu0 0.0
  %2745 = vmatpush2.xpose.msra.mxu0 0.0
  %2746 = vmatprep.subr.mxu0 0.0
  %2747 = vmatpush2.xpose.msra.mxu0 0.0
  %2748 = vmatprep.subr.mxu0 0.0
  %2749 = vmatpush2.xpose.msra.mxu0 0.0
  %2750 = vmatprep.mubr.f32.mxu0 0.0
  %2751 = vmatmul.mubr.f32.gmra.mxu0 %v2682
  %v2752 = vpop.f32.mrf.mxu0
  %v2753 = vadd.f32 0.0, %v2752
  %v2754 = vpop.f32.mrf.mxu0
  %2755 = vdwg.mxu0
  %v2756 = vmul.f32 %v2753, 0.35355338
  %v2757 = vsel %vm205, %v2756, -inf
  %2758 = vmax.xlane.f32.xlu0 %v2757
  %v2759 = vpop.xlane.xlu0 %2758
  %v2760 = vsub.f32 %v2756, %v2759
  %v2761 = vmul.f32 %v2760, 1.442695
  %v2762 = vpow.pop %v2761
  %v2763 = vsel %vm205, %v2762, 0.0
  %2764 = vadd.xlane.f32.xlu0 %v2763
  %v2765 = vpop.xlane.xlu0 %2764
  %v2766 = vrcp.pop %v2765
  %v2767 = vmul.f32 %v2762, %v2766
  %2768 = vrot.lane.b32.xlu0 %v2178, 40
  %v2769 = vpop.permute.xlu0 %2768
  %v2771 = vsel %vm219, %v2767, 0
  %v2773 = vsel %vm223, %v2769, 0
  %2775 = vmatprep.subr.mxu0 0.0
  %2776 = vmatpush1.msra.mxu0 0.0
  %2777 = vmatprep.subr.mxu0 0.0
  %2778 = vmatpush1.msra.mxu0 0.0
  %2779 = vmatprep.subr.mxu0 0.0
  %2780 = vmatpush1.msra.mxu0 0.0
  %2781 = vmatprep.subr.mxu0 0.0
  %2782 = vmatpush1.msra.mxu0 0.0
  %2783 = vmatprep.subr.mxu0 0.0
  %2784 = vmatpush1.msra.mxu0 0.0
  %2785 = vmatprep.subr.mxu0 0.0
  %2786 = vmatpush1.msra.mxu0 0.0
  %2787 = vmatprep.subr.mxu0 0.0
  %2788 = vmatpush1.msra.mxu0 0.0
  %2789 = vmatprep.subr.mxu0 0.0
  %2790 = vmatpush1.msra.mxu0 0.0
  %2791 = vmatprep.subr.mxu0 0.0
  %2792 = vmatpush1.msra.mxu0 0.0
  %2793 = vmatprep.subr.mxu0 0.0
  %2794 = vmatpush1.msra.mxu0 0.0
  %2795 = vmatprep.subr.mxu0 0.0
  %2796 = vmatpush1.msra.mxu0 0.0
  %2797 = vmatprep.subr.mxu0 0.0
  %2798 = vmatpush1.msra.mxu0 0.0
  %2799 = vmatprep.subr.mxu0 0.0
  %2800 = vmatpush1.msra.mxu0 0.0
  %2801 = vmatprep.subr.mxu0 0.0
  %2802 = vmatpush1.msra.mxu0 0.0
  %2803 = vmatprep.subr.mxu0 0.0
  %2804 = vmatpush1.msra.mxu0 0.0
  %2805 = vmatprep.subr.mxu0 0.0
  %2806 = vmatpush1.msra.mxu0 %v2773
  %2807 = vmatprep.subr.mxu0 0.0
  %2808 = vmatpush2.msra.mxu0 0.0
  %2809 = vmatprep.subr.mxu0 0.0
  %2810 = vmatpush2.msra.mxu0 0.0
  %2811 = vmatprep.subr.mxu0 0.0
  %2812 = vmatpush2.msra.mxu0 0.0
  %2813 = vmatprep.subr.mxu0 0.0
  %2814 = vmatpush2.msra.mxu0 0.0
  %2815 = vmatprep.subr.mxu0 0.0
  %2816 = vmatpush2.msra.mxu0 0.0
  %2817 = vmatprep.subr.mxu0 0.0
  %2818 = vmatpush2.msra.mxu0 0.0
  %2819 = vmatprep.subr.mxu0 0.0
  %2820 = vmatpush2.msra.mxu0 0.0
  %2821 = vmatprep.subr.mxu0 0.0
  %2822 = vmatpush2.msra.mxu0 0.0
  %2823 = vmatprep.subr.mxu0 0.0
  %2824 = vmatpush2.msra.mxu0 0.0
  %2825 = vmatprep.subr.mxu0 0.0
  %2826 = vmatpush2.msra.mxu0 0.0
  %2827 = vmatprep.subr.mxu0 0.0
  %2828 = vmatpush2.msra.mxu0 0.0
  %2829 = vmatprep.subr.mxu0 0.0
  %2830 = vmatpush2.msra.mxu0 0.0
  %2831 = vmatprep.subr.mxu0 0.0
  %2832 = vmatpush2.msra.mxu0 0.0
  %2833 = vmatprep.subr.mxu0 0.0
  %2834 = vmatpush2.msra.mxu0 0.0
  %2835 = vmatprep.subr.mxu0 0.0
  %2836 = vmatpush2.msra.mxu0 0.0
  %2837 = vmatprep.subr.mxu0 0.0
  %2838 = vmatpush2.msra.mxu0 0.0
  %2839 = vmatprep.mubr.f32.mxu0 0.0
  %2840 = vmatmul.mubr.f32.gmra.mxu0 %v2771
  %v2841 = vpop.f32.mrf.mxu0
  %v2842 = vadd.f32 0.0, %v2841
  %v2843 = vpop.f32.mrf.mxu0
  %2844 = vdwg.mxu0
  %2846 = vrot.lane.b32.xlu0 %v2508, 8
  %v2847 = vpop.permute.xlu0 %2846
  %2850 = vrot.lane.b32.xlu0 %v2675, 16
  %v2851 = vpop.permute.xlu0 %2850
  %2854 = vrot.lane.b32.xlu0 %v2842, 24
  %v2855 = vpop.permute.xlu0 %2854
  %v2857 = vsel %vm129, %v2341, %v2847
  %v2858 = vsel %vm810, %v2857, %v2851
  %v2859 = vsel %vm812, %v2858, %v2855
  %v2861 = vrot.slane %v1495, 6
  %v2864 = vrot.slane %v2177, 4
  %v2867 = vrot.slane %v2859, 2
  %v2869 = vsel %vm223, %v813, %v2861
  %vm2870 = vcmask 1043456
  %v2871 = vsel %vm2870, %v2869, %v2864
  %vm2872 = vcmask 1045504
  %v2873 = vsel %vm2872, %v2871, %v2867
  %v2874 = vpack.c.bf16 %v2873, %v2873
  %v2875 = vld [vmem:[%s3] sm:$0xf]
  %v2876 = vld [vmem:[%s3 + $0x4] sm:$0xf]
  %v2877 = vld [vmem:[%s3 + $0x8] sm:$0xf]
  %v2878 = vld [vmem:[%s3 + $0xc] sm:$0xf]
  %v2879 = vld [vmem:[%s4] sm:$0x1]
  %v2881 = vlaneseq
  %v2882 = vshrl.u32 %v2881, 7
  %v2883 = vsub.s32 0, %v2882
  %v2884 = vrot.slane %v2879, %v2883
  %v2890 = vunpack.c.l.b16 %v2875
  %v2891 = vunpack.c.l.b16 %v2876
  %v2892 = vunpack.c.l.b16 %v2877
  %v2893 = vunpack.c.l.b16 %v2878
  %v2894 = vpack.c.b16 %v2891, %v2890
  %v2895 = vpack.c.b16 %v2893, %v2892
  %v2899 = vsel %vm82, %v2874, 0
  %2901 = vmatprep.subr.bf16.mxu0 0
  %2902 = vmatpush1.bf16.msra.mxu0 0
  %2903 = vmatprep.subr.bf16.mxu0 0
  %2904 = vmatpush1.bf16.msra.mxu0 0
  %2905 = vmatprep.subr.bf16.mxu0 0
  %2906 = vmatpush1.bf16.msra.mxu0 0
  %2907 = vmatprep.subr.bf16.mxu0 0
  %2908 = vmatpush1.bf16.msra.mxu0 0
  %2909 = vmatprep.subr.bf16.mxu0 0
  %2910 = vmatpush1.bf16.msra.mxu0 0
  %2911 = vmatprep.subr.bf16.mxu0 0
  %2912 = vmatpush1.bf16.msra.mxu0 0
  %2913 = vmatprep.subr.bf16.mxu0 0
  %2914 = vmatpush1.bf16.msra.mxu0 %v2895
  %2915 = vmatprep.subr.bf16.mxu0 0
  %2916 = vmatpush1.bf16.msra.mxu0 %v2894
  %2917 = vmatprep.subr.bf16.mxu0 0
  %2918 = vmatpush2.bf16.msra.mxu0 0
  %2919 = vmatprep.subr.bf16.mxu0 0
  %2920 = vmatpush2.bf16.msra.mxu0 0
  %2921 = vmatprep.subr.bf16.mxu0 0
  %2922 = vmatpush2.bf16.msra.mxu0 0
  %2923 = vmatprep.subr.bf16.mxu0 0
  %2924 = vmatpush2.bf16.msra.mxu0 0
  %2925 = vmatprep.subr.bf16.mxu0 0
  %2926 = vmatpush2.bf16.msra.mxu0 0
  %2927 = vmatprep.subr.bf16.mxu0 0
  %2928 = vmatpush2.bf16.msra.mxu0 0
  %2929 = vmatprep.subr.bf16.mxu0 0
  %2930 = vmatpush2.bf16.msra.mxu0 0
  %2931 = vmatprep.subr.bf16.mxu0 0
  %2932 = vmatpush2.bf16.msra.mxu0 0
  %2933 = vmatprep.mubr.bf16.mxu0 0
  %2934 = vmatmul.mubr.bf16.gmra.mxu0 %v2899
  %v2935 = vpop.f32.mrf.mxu0
  %v2936 = vadd.f32 %v2884, %v2935
  %v2937 = vpop.f32.mrf.mxu0
  %v2938 = vpop.f32.mrf.mxu0
  %v2939 = vpop.f32.mrf.mxu0
  %2940 = vdwg.mxu0
  %v2941 = vadd.f32 %v57, %v2936
  %v2942 = vld [vmem:[%s5] sm:$0x1]
  %v2943 = vld [vmem:[%s6] sm:$0x1]
  %v2944 = vsel %vm82, %v2941, 0.0
  %2945 = vadd.xlane.f32.xlu0 %v2944
  %v2946 = vpop.xlane.xlu0 %2945
  %v2947 = vrcp.pop 32.0
  %v2948 = vmul.f32 %v2946, %v2947
  %v2949 = vsub.f32 %v2941, %v2948
  %v2950 = vmul.f32 %v2949, %v2949
  %v2951 = vsel %vm82, %v2950, 0.0
  %2952 = vadd.xlane.f32.xlu0 %v2951
  %v2953 = vpop.xlane.xlu0 %2952
  %v2954 = vmul.f32 %v2953, %v2947
  %v2955 = vadd.f32 %v2954, 1e-05
  %v2956 = vrsqrt.pop %v2955
  %v2957 = vmul.f32 %v2949, %v2956
  %v2959 = vlaneseq
  %v2960 = vshrl.u32 %v2959, 7
  %v2961 = vsub.s32 0, %v2960
  %v2962 = vrot.slane %v2942, %v2961
  %v2964 = vmul.f32 %v2957, %v2962
  %v2966 = vlaneseq
  %v2967 = vshrl.u32 %v2966, 7
  %v2968 = vsub.s32 0, %v2967
  %v2969 = vrot.slane %v2943, %v2968
  %v2971 = vadd.f32 %v2964, %v2969
  %v2972 = vpack.c.bf16 %v2971, %v2971
  %v2973 = vld [vmem:[%s7] sm:$0xf]
  %v2974 = vld [vmem:[%s7 + $0x4] sm:$0xf]
  %v2975 = vld [vmem:[%s7 + $0x8] sm:$0xf]
  %v2976 = vld [vmem:[%s7 + $0xc] sm:$0xf]
  %v2977 = vld [vmem:[%s8] sm:$0x1]
  %v2979 = vlaneseq
  %v2980 = vshrl.u32 %v2979, 7
  %v2981 = vsub.s32 0, %v2980
  %v2982 = vrot.slane %v2977, %v2981
  %v2988 = vunpack.c.l.b16 %v2973
  %v2989 = vunpack.c.l.b16 %v2974
  %v2990 = vunpack.c.l.b16 %v2975
  %v2991 = vunpack.c.l.b16 %v2976
  %v2992 = vpack.c.b16 %v2989, %v2988
  %v2993 = vpack.c.b16 %v2991, %v2990
  %v2997 = vsel %vm82, %v2972, 0
  %2999 = vmatprep.subr.bf16.mxu0 0
  %3000 = vmatpush1.bf16.msra.mxu0 0
  %3001 = vmatprep.subr.bf16.mxu0 0
  %3002 = vmatpush1.bf16.msra.mxu0 0
  %3003 = vmatprep.subr.bf16.mxu0 0
  %3004 = vmatpush1.bf16.msra.mxu0 0
  %3005 = vmatprep.subr.bf16.mxu0 0
  %3006 = vmatpush1.bf16.msra.mxu0 0
  %3007 = vmatprep.subr.bf16.mxu0 0
  %3008 = vmatpush1.bf16.msra.mxu0 0
  %3009 = vmatprep.subr.bf16.mxu0 0
  %3010 = vmatpush1.bf16.msra.mxu0 0
  %3011 = vmatprep.subr.bf16.mxu0 0
  %3012 = vmatpush1.bf16.msra.mxu0 %v2993
  %3013 = vmatprep.subr.bf16.mxu0 0
  %3014 = vmatpush1.bf16.msra.mxu0 %v2992
  %3015 = vmatprep.subr.bf16.mxu0 0
  %3016 = vmatpush2.bf16.msra.mxu0 0
  %3017 = vmatprep.subr.bf16.mxu0 0
  %3018 = vmatpush2.bf16.msra.mxu0 0
  %3019 = vmatprep.subr.bf16.mxu0 0
  %3020 = vmatpush2.bf16.msra.mxu0 0
  %3021 = vmatprep.subr.bf16.mxu0 0
  %3022 = vmatpush2.bf16.msra.mxu0 0
  %3023 = vmatprep.subr.bf16.mxu0 0
  %3024 = vmatpush2.bf16.msra.mxu0 0
  %3025 = vmatprep.subr.bf16.mxu0 0
  %3026 = vmatpush2.bf16.msra.mxu0 0
  %3027 = vmatprep.subr.bf16.mxu0 0
  %3028 = vmatpush2.bf16.msra.mxu0 0
  %3029 = vmatprep.subr.bf16.mxu0 0
  %3030 = vmatpush2.bf16.msra.mxu0 0
  %3031 = vmatprep.mubr.bf16.mxu0 0
  %3032 = vmatmul.mubr.bf16.gmra.mxu0 %v2997
  %v3033 = vpop.f32.mrf.mxu0
  %v3034 = vadd.f32 %v2982, %v3033
  %v3035 = vpop.f32.mrf.mxu0
  %v3036 = vpop.f32.mrf.mxu0
  %v3037 = vpop.f32.mrf.mxu0
  %3038 = vdwg.mxu0
  %v3039 = vmax.f32 %v3034, 0.0
  %v3040 = vpack.c.bf16 %v3039, %v3039
  %v3041 = vld [vmem:[%s9] sm:$0xf]
  %v3042 = vld [vmem:[%s9 + $0x4] sm:$0xf]
  %v3043 = vld [vmem:[%s9 + $0x8] sm:$0xf]
  %v3044 = vld [vmem:[%s9 + $0xc] sm:$0xf]
  %v3045 = vld [vmem:[%s9 + $0x10] sm:$0xf]
  %v3046 = vld [vmem:[%s9 + $0x14] sm:$0xf]
  %v3047 = vld [vmem:[%s9 + $0x18] sm:$0xf]
  %v3048 = vld [vmem:[%s9 + $0x1c] sm:$0xf]
  %v3049 = vld [vmem:[%s9 + $0x20] sm:$0xf]
  %v3050 = vld [vmem:[%s9 + $0x24] sm:$0xf]
  %v3051 = vld [vmem:[%s9 + $0x28] sm:$0xf]
  %v3052 = vld [vmem:[%s9 + $0x2c] sm:$0xf]
  %v3053 = vld [vmem:[%s9 + $0x30] sm:$0xf]
  %v3054 = vld [vmem:[%s9 + $0x34] sm:$0xf]
  %v3055 = vld [vmem:[%s9 + $0x38] sm:$0xf]
  %v3056 = vld [vmem:[%s9 + $0x3c] sm:$0xf]
  %v3057 = vld [vmem:[%s10] sm:$0x1]
  %v3059 = vlaneseq
  %v3060 = vshrl.u32 %v3059, 7
  %v3061 = vsub.s32 0, %v3060
  %v3062 = vrot.slane %v3057, %v3061
  %v3080 = vunpack.c.l.b16 %v3041
  %v3081 = vunpack.c.l.b16 %v3042
  %v3082 = vunpack.c.l.b16 %v3043
  %v3083 = vunpack.c.l.b16 %v3044
  %v3084 = vunpack.c.l.b16 %v3045
  %v3085 = vunpack.c.l.b16 %v3046
  %v3086 = vunpack.c.l.b16 %v3047
  %v3087 = vunpack.c.l.b16 %v3048
  %v3088 = vunpack.c.l.b16 %v3049
  %v3089 = vunpack.c.l.b16 %v3050
  %v3090 = vunpack.c.l.b16 %v3051
  %v3091 = vunpack.c.l.b16 %v3052
  %v3092 = vunpack.c.l.b16 %v3053
  %v3093 = vunpack.c.l.b16 %v3054
  %v3094 = vunpack.c.l.b16 %v3055
  %v3095 = vunpack.c.l.b16 %v3056
  %v3096 = vpack.c.b16 %v3081, %v3080
  %v3097 = vpack.c.b16 %v3083, %v3082
  %v3098 = vpack.c.b16 %v3085, %v3084
  %v3099 = vpack.c.b16 %v3087, %v3086
  %v3100 = vpack.c.b16 %v3089, %v3088
  %v3101 = vpack.c.b16 %v3091, %v3090
  %v3102 = vpack.c.b16 %v3093, %v3092
  %v3103 = vpack.c.b16 %v3095, %v3094
  %3112 = vmatprep.subr.bf16.mxu0 0
  %3113 = vmatpush1.bf16.msra.mxu0 %v3103
  %3114 = vmatprep.subr.bf16.mxu0 0
  %3115 = vmatpush1.bf16.msra.mxu0 %v3102
  %3116 = vmatprep.subr.bf16.mxu0 0
  %3117 = vmatpush1.bf16.msra.mxu0 %v3101
  %3118 = vmatprep.subr.bf16.mxu0 0
  %3119 = vmatpush1.bf16.msra.mxu0 %v3100
  %3120 = vmatprep.subr.bf16.mxu0 0
  %3121 = vmatpush1.bf16.msra.mxu0 %v3099
  %3122 = vmatprep.subr.bf16.mxu0 0
  %3123 = vmatpush1.bf16.msra.mxu0 %v3098
  %3124 = vmatprep.subr.bf16.mxu0 0
  %3125 = vmatpush1.bf16.msra.mxu0 %v3097
  %3126 = vmatprep.subr.bf16.mxu0 0
  %3127 = vmatpush1.bf16.msra.mxu0 %v3096
  %3128 = vmatprep.subr.bf16.mxu0 0
  %3129 = vmatpush2.bf16.msra.mxu0 0
  %3130 = vmatprep.subr.bf16.mxu0 0
  %3131 = vmatpush2.bf16.msra.mxu0 0
  %3132 = vmatprep.subr.bf16.mxu0 0
  %3133 = vmatpush2.bf16.msra.mxu0 0
  %3134 = vmatprep.subr.bf16.mxu0 0
  %3135 = vmatpush2.bf16.msra.mxu0 0
  %3136 = vmatprep.subr.bf16.mxu0 0
  %3137 = vmatpush2.bf16.msra.mxu0 0
  %3138 = vmatprep.subr.bf16.mxu0 0
  %3139 = vmatpush2.bf16.msra.mxu0 0
  %3140 = vmatprep.subr.bf16.mxu0 0
  %3141 = vmatpush2.bf16.msra.mxu0 0
  %3142 = vmatprep.subr.bf16.mxu0 0
  %3143 = vmatpush2.bf16.msra.mxu0 0
  %3144 = vmatprep.mubr.bf16.mxu0 0
  %3145 = vmatmul.mubr.bf16.gmra.mxu0 %v3040
  %v3146 = vpop.f32.mrf.mxu0
  %v3147 = vadd.f32 %v3062, %v3146
  %v3148 = vpop.f32.mrf.mxu0
  %v3149 = vpop.f32.mrf.mxu0
  %v3150 = vpop.f32.mrf.mxu0
  %3151 = vdwg.mxu0
  %v3152 = vadd.f32 %v2971, %v3147
  %v3153 = vld [vmem:[%s11] sm:$0x1]
  %v3154 = vld [vmem:[%s12] sm:$0x1]
  %v3155 = vsel %vm82, %v3152, 0.0
  %3156 = vadd.xlane.f32.xlu0 %v3155
  %v3157 = vpop.xlane.xlu0 %3156
  %v3158 = vmul.f32 %v3157, %v2947
  %v3159 = vsub.f32 %v3152, %v3158
  %v3160 = vmul.f32 %v3159, %v3159
  %v3161 = vsel %vm82, %v3160, 0.0
  %3162 = vadd.xlane.f32.xlu0 %v3161
  %v3163 = vpop.xlane.xlu0 %3162
  %v3164 = vmul.f32 %v3163, %v2947
  %v3165 = vadd.f32 %v3164, 1e-05
  %v3166 = vrsqrt.pop %v3165
  %v3167 = vmul.f32 %v3159, %v3166
  %v3169 = vlaneseq
  %v3170 = vshrl.u32 %v3169, 7
  %v3171 = vsub.s32 0, %v3170
  %v3172 = vrot.slane %v3153, %v3171
  %v3174 = vmul.f32 %v3167, %v3172
  %v3176 = vlaneseq
  %v3177 = vshrl.u32 %v3176, 7
  %v3178 = vsub.s32 0, %v3177
  %v3179 = vrot.slane %v3154, %v3178
  %v3181 = vadd.f32 %v3174, %v3179
  %v3183 = vrot.slane %v3181, 2
  %v3185 = vadd.f32 %v3181, %v3183
  %v3186 = vrot.slane %v3181, 4
  %v3188 = vadd.f32 %v3185, %v3186
  %v3189 = vrot.slane %v3181, 6
  %v3191 = vadd.f32 %v3188, %v3189
  %v3192 = vmul.f32 %v3191, 0.25
  %v3193 = vpack.c.bf16 %v3192, %v3192
  %v3194 = vld [vmem:[%s13] sm:$0xf]
  %v3195 = vld [vmem:[%s13 + $0x4] sm:$0xf]
  %v3196 = vld [vmem:[%s13 + $0x8] sm:$0xf]
  %v3197 = vld [vmem:[%s13 + $0xc] sm:$0xf]
  %v3198 = vld [vmem:[%s14] sm:$0x1]
  %v3200 = vlaneseq
  %v3201 = vshrl.u32 %v3200, 7
  %v3202 = vsub.s32 0, %v3201
  %v3203 = vrot.slane %v3198, %v3202
  %v3209 = vunpack.c.l.b16 %v3194
  %v3210 = vunpack.c.l.b16 %v3195
  %v3211 = vunpack.c.l.b16 %v3196
  %v3212 = vunpack.c.l.b16 %v3197
  %v3213 = vpack.c.b16 %v3210, %v3209
  %v3214 = vpack.c.b16 %v3212, %v3211
  %v3218 = vsel %vm82, %v3193, 0
  %3220 = vmatprep.subr.bf16.mxu0 0
  %3221 = vmatpush1.bf16.msra.mxu0 0
  %3222 = vmatprep.subr.bf16.mxu0 0
  %3223 = vmatpush1.bf16.msra.mxu0 0
  %3224 = vmatprep.subr.bf16.mxu0 0
  %3225 = vmatpush1.bf16.msra.mxu0 0
  %3226 = vmatprep.subr.bf16.mxu0 0
  %3227 = vmatpush1.bf16.msra.mxu0 0
  %3228 = vmatprep.subr.bf16.mxu0 0
  %3229 = vmatpush1.bf16.msra.mxu0 0
  %3230 = vmatprep.subr.bf16.mxu0 0
  %3231 = vmatpush1.bf16.msra.mxu0 0
  %3232 = vmatprep.subr.bf16.mxu0 0
  %3233 = vmatpush1.bf16.msra.mxu0 %v3214
  %3234 = vmatprep.subr.bf16.mxu0 0
  %3235 = vmatpush1.bf16.msra.mxu0 %v3213
  %3236 = vmatprep.subr.bf16.mxu0 0
  %3237 = vmatpush2.bf16.msra.mxu0 0
  %3238 = vmatprep.subr.bf16.mxu0 0
  %3239 = vmatpush2.bf16.msra.mxu0 0
  %3240 = vmatprep.subr.bf16.mxu0 0
  %3241 = vmatpush2.bf16.msra.mxu0 0
  %3242 = vmatprep.subr.bf16.mxu0 0
  %3243 = vmatpush2.bf16.msra.mxu0 0
  %3244 = vmatprep.subr.bf16.mxu0 0
  %3245 = vmatpush2.bf16.msra.mxu0 0
  %3246 = vmatprep.subr.bf16.mxu0 0
  %3247 = vmatpush2.bf16.msra.mxu0 0
  %3248 = vmatprep.subr.bf16.mxu0 0
  %3249 = vmatpush2.bf16.msra.mxu0 0
  %3250 = vmatprep.subr.bf16.mxu0 0
  %3251 = vmatpush2.bf16.msra.mxu0 0
  %3252 = vmatprep.mubr.bf16.mxu0 0
  %3253 = vmatmul.mubr.bf16.gmra.mxu0 %v3218
  %v3254 = vpop.f32.mrf.mxu0
  %v3255 = vadd.f32 %v3203, %v3254
  %v3256 = vpop.f32.mrf.mxu0
  %v3257 = vpop.f32.mrf.mxu0
  %v3258 = vpop.f32.mrf.mxu0
  %3259 = vdwg.mxu0
  %v3260 = vmax.f32 %v3255, 0.0
  %v3261 = vpack.c.bf16 %v3260, %v3260
  %v3262 = vld [vmem:[%s15] sm:$0xf]
  %v3263 = vld [vmem:[%s15 + $0x4] sm:$0xf]
  %v3264 = vld [vmem:[%s15 + $0x8] sm:$0xf]
  %v3265 = vld [vmem:[%s15 + $0xc] sm:$0xf]
  %v3266 = vld [vmem:[%s15 + $0x10] sm:$0xf]
  %v3267 = vld [vmem:[%s15 + $0x14] sm:$0xf]
  %v3268 = vld [vmem:[%s15 + $0x18] sm:$0xf]
  %v3269 = vld [vmem:[%s15 + $0x1c] sm:$0xf]
  %v3270 = vld [vmem:[%s16] sm:$0x1]
  %v3272 = vlaneseq
  %v3273 = vshrl.u32 %v3272, 7
  %v3274 = vsub.s32 0, %v3273
  %v3275 = vrot.slane %v3270, %v3274
  %v3285 = vunpack.c.l.b16 %v3262
  %v3286 = vunpack.c.l.b16 %v3263
  %v3287 = vunpack.c.l.b16 %v3264
  %v3288 = vunpack.c.l.b16 %v3265
  %v3289 = vunpack.c.l.b16 %v3266
  %v3290 = vunpack.c.l.b16 %v3267
  %v3291 = vunpack.c.l.b16 %v3268
  %v3292 = vunpack.c.l.b16 %v3269
  %v3293 = vpack.c.b16 %v3286, %v3285
  %v3294 = vpack.c.b16 %v3288, %v3287
  %v3295 = vpack.c.b16 %v3290, %v3289
  %v3296 = vpack.c.b16 %v3292, %v3291
  %vm3301 = vcmask 523264
  %v3303 = vsel %vm3301, %v3261, 0
  %3305 = vmatprep.subr.bf16.mxu0 0
  %3306 = vmatpush1.bf16.msra.mxu0 0
  %3307 = vmatprep.subr.bf16.mxu0 0
  %3308 = vmatpush1.bf16.msra.mxu0 0
  %3309 = vmatprep.subr.bf16.mxu0 0
  %3310 = vmatpush1.bf16.msra.mxu0 0
  %3311 = vmatprep.subr.bf16.mxu0 0
  %3312 = vmatpush1.bf16.msra.mxu0 0
  %3313 = vmatprep.subr.bf16.mxu0 0
  %3314 = vmatpush1.bf16.msra.mxu0 %v3296
  %3315 = vmatprep.subr.bf16.mxu0 0
  %3316 = vmatpush1.bf16.msra.mxu0 %v3295
  %3317 = vmatprep.subr.bf16.mxu0 0
  %3318 = vmatpush1.bf16.msra.mxu0 %v3294
  %3319 = vmatprep.subr.bf16.mxu0 0
  %3320 = vmatpush1.bf16.msra.mxu0 %v3293
  %3321 = vmatprep.subr.bf16.mxu0 0
  %3322 = vmatpush2.bf16.msra.mxu0 0
  %3323 = vmatprep.subr.bf16.mxu0 0
  %3324 = vmatpush2.bf16.msra.mxu0 0
  %3325 = vmatprep.subr.bf16.mxu0 0
  %3326 = vmatpush2.bf16.msra.mxu0 0
  %3327 = vmatprep.subr.bf16.mxu0 0
  %3328 = vmatpush2.bf16.msra.mxu0 0
  %3329 = vmatprep.subr.bf16.mxu0 0
  %3330 = vmatpush2.bf16.msra.mxu0 0
  %3331 = vmatprep.subr.bf16.mxu0 0
  %3332 = vmatpush2.bf16.msra.mxu0 0
  %3333 = vmatprep.subr.bf16.mxu0 0
  %3334 = vmatpush2.bf16.msra.mxu0 0
  %3335 = vmatprep.subr.bf16.mxu0 0
  %3336 = vmatpush2.bf16.msra.mxu0 0
  %3337 = vmatprep.mubr.bf16.mxu0 0
  %3338 = vmatmul.mubr.bf16.gmra.mxu0 %v3303
  %v3339 = vpop.f32.mrf.mxu0
  %v3340 = vadd.f32 %v3275, %v3339
  %v3341 = vpop.f32.mrf.mxu0
  %v3342 = vpop.f32.mrf.mxu0
  %v3343 = vpop.f32.mrf.mxu0
  %3344 = vdwg.mxu0
  %3345 = vst [vmem:[%s17] sm:$0x3] %v3340
  // Predicated region
  $region70: #{roi_encoder_forward.3} parent=0 // pred_check
    _
  $region71: #{roi_encoder_forward.3} parent=0 // pred_check_branch
    %3347 = sbr.rel (0) target = $region73
  $region72: #{roi_encoder_forward.3} parent=0 // pred_region
    _
  $region73: #{roi_encoder_forward.3} parent=0 // pred_fallthru
    _
  // Predicated region
  $region74: #{roi_encoder_forward.3} parent=0 // pred_check
    _
  $region75: #{roi_encoder_forward.3} parent=0 // pred_check_branch
    %3349 = sbr.rel (0) target = $region77
  $region76: #{roi_encoder_forward.3} parent=0 // pred_region
    _
  $region77: #{roi_encoder_forward.3} parent=0 // pred_fallthru
    _

</llo_original>
